<compile_context>
chip_gen: v6e
topology: v6e:2x2x1
jax: 0.10.0
libtpu: 0.0.40
codegen_flags: <defaults>
</compile_context>

<pallas_src>
import math
import functools

import numpy as np
import jax
import jax.numpy as jnp
from jax.experimental import pallas as pl
from jax.experimental.pallas import tpu as pltpu

LANE = 128  # all real feature dims in this config are <= 128


def _ceil_to(v, m):
    return ((v + m - 1) // m) * m


def _pad2d(a, rows, cols):
    a = jnp.asarray(a, jnp.float32)
    return jnp.zeros((rows, cols), jnp.float32).at[: a.shape[0], : a.shape[1]].set(a)


def _pad_row(a, cols):
    a = jnp.asarray(a, jnp.float32).reshape(1, -1)
    return _pad2d(a, 1, cols)


# ----------------------------- Packed-parameter layouts -----------------------------

def _weight_layout(n_hg, n_tfe, n_fc):
    """All weight matrices share a 128-row contraction dim -> pack along lanes."""
    entries = []
    for i in range(n_hg):
        entries.append((f"hg_w{i}", LANE))
    entries.append(("proj_w", LANE))
    for l in range(n_tfe):
        entries.append((f"wqkv{l}", 3 * LANE))   # Wq | Wk | Wv fused
        entries.append((f"wo{l}", LANE))
        entries.append((f"wm1{l}", LANE))
        entries.append((f"wm2{l}", LANE))
    for i in range(n_fc):
        entries.append((f"fc_w{i}", LANE))
    entries.append(("m_head", LANE))
    offs, c = {}, 0
    for name, width in entries:
        offs[name] = c
        c += width
    return entries, offs, c


def _vec_layout(n_hg, n_tfe, n_fc):
    names = ["lane_mask"]
    names += [f"hg_b{i}" for i in range(n_hg)]
    names += ["proj_b"]
    for l in range(n_tfe):
        names += [f"{nm}{l}" for nm in
                  ("ln1_g", "ln1_b", "bq", "bk", "bv", "bo",
                   "ln2_g", "ln2_b", "bm1", "bm2")]
    names += [f"fc_b{i}" for i in range(n_fc)]
    offs = {nm: i for i, nm in enumerate(names)}
    return names, offs, len(names)


# ----------------------------- Fused forward kernel -----------------------------

def _make_fused_kernel(cfg, n_rows):
    n_hg = len(cfg["hyper_gnns_hidden"])
    n_tfe = cfg["tfe_depth"]
    n_fc = len(cfg["fcs_hidden"]) + 1
    d_model = cfg["tfe_dim"]
    scale = 1.0 / math.sqrt(cfg["tfe_head_dim"])
    _, w_off, _ = _weight_layout(n_hg, n_tfe, n_fc)
    _, v_off, _ = _vec_layout(n_hg, n_tfe, n_fc)

    eps = 1e-5
    inv_d = 1.0 / float(d_model)
    N = n_rows

    def kernel(x_ref, a_ref, w_ref, v_ref, out_ref):
        # ---- packed-parameter accessors (static offsets, 128-lane aligned) ----
        def wmat(name, width=LANE):
            return w_ref[:, pl.ds(w_off[name], width)]        # bf16 [128, width]

        def vrow(name):
            return v_ref[v_off[name]]                          # f32 [1, 128]

        def mm(a, b):
            # bf16 x bf16 MXU matmul with f32 accumulation.
            return jnp.dot(a.astype(jnp.bfloat16), b.astype(jnp.bfloat16),
                           preferred_element_type=jnp.float32)

        mask = vrow("lane_mask")                               # 1.0 on real lanes

        def layernorm(x, g, b):
            # Padded lanes of x are zero; mask keeps (x - mu) zero there so the
            # mean((x-mu)^2) variance is exact and padded output lanes stay 0.
            mu = jnp.sum(x, axis=-1, keepdims=True) * inv_d
            xc = (x - mu) * mask
            var = jnp.sum(xc * xc, axis=-1, keepdims=True) * inv_d
            return xc * jax.lax.rsqrt(var + eps) * g + b

        x_in = x_ref[...]                                      # [N, 128]
        A = a_ref[...]                                         # [N, N]

        # ---- HypergraphsBlock:  h <- A (h Theta) + bias ----
        h = x_in
        for i in range(n_hg):
            z = mm(A, mm(h, wmat(f"hg_w{i}"))) + vrow(f"hg_b{i}")
            h = jnp.maximum(z, 0.0) if i < n_hg - 1 else z
        hyper_x = h                                            # token 1

        # ---- Project (token 0) + stack tokens along rows: [2N, 128] ----
        x0 = mm(x_in, wmat("proj_w")) + vrow("proj_b")
        xt = jnp.concatenate([x0, hyper_x], axis=0)            # rows [0:N]=tok0, [N:2N]=tok1

        mhead = wmat("m_head")                                 # block-diag ones per head

        # ---- TransformerEncoder: pre-LN, seq len 2, heads packed on lanes ----
        for l in range(n_tfe):
            hN = layernorm(xt, vrow(f"ln1_g{l}"), vrow(f"ln1_b{l}"))
            qkv = mm(hN, wmat(f"wqkv{l}", 3 * LANE))           # [2N, 384], one MXU push
            q = qkv[:, 0:LANE] + vrow(f"bq{l}")
            k = qkv[:, LANE:2 * LANE] + vrow(f"bk{l}")
            v = qkv[:, 2 * LANE:3 * LANE] + vrow(f"bv{l}")
            q0, q1 = q[0:N], q[N:2 * N]
            k0, k1 = k[0:N], k[N:2 * N]
            v0, v1 = v[0:N], v[N:2 * N]

            # All 4 (query, key) head-score products in ONE matmul: the
            # block-diagonal ones matrix reduces within each head's lane block
            # and broadcasts the per-head score back over those lanes.
            qk = jnp.concatenate([q0 * k0, q0 * k1, q1 * k0, q1 * k1], axis=0)  # [4N,128]
            s = mm(qk, mhead) * scale
            s00, s01 = s[0:N], s[N:2 * N]
            s10, s11 = s[2 * N:3 * N], s[3 * N:4 * N]

            m0 = jnp.maximum(s00, s01)
            e00 = jnp.exp(s00 - m0)
            e01 = jnp.exp(s01 - m0)
            a0 = (e00 * v0 + e01 * v1) / (e00 + e01)
            m1 = jnp.maximum(s10, s11)
            e10 = jnp.exp(s10 - m1)
            e11 = jnp.exp(s11 - m1)
            a1 = (e10 * v0 + e11 * v1) / (e10 + e11)

            att = jnp.concatenate([a0, a1], axis=0)            # [2N, 128]
            xt = xt + mm(att, wmat(f"wo{l}")) + vrow(f"bo{l}")

            hN = layernorm(xt, vrow(f"ln2_g{l}"), vrow(f"ln2_b{l}"))
            u = jax.nn.gelu(mm(hN, wmat(f"wm1{l}")) + vrow(f"bm1{l}"), approximate=True)
            xt = xt + mm(u, wmat(f"wm2{l}")) + vrow(f"bm2{l}")

        # ---- tfe_type == '1st' readout + FCsBlock ----
        z = xt[0:N]
        for i in range(n_fc):
            z = mm(z, wmat(f"fc_w{i}")) + vrow(f"fc_b{i}")
            if i < n_fc - 1:
                z = jnp.maximum(z, 0.0)
        out_ref[...] = z

    return kernel


# ----------------------------- Forward wrapper -----------------------------

def sgnn_forward(params, addr_x, hyperedge_index, hyperedge_weight, cfg):
    N, _ = addr_x.shape
    E = hyperedge_weight.shape[0]
    n_pad = _ceil_to(max(N, 8), 8)

    # --- XLA-side graph preprocessing, re-associated into a single [N, N]
    #     propagation matrix  A = D^-1 H W B^-1 H^T  so the kernel never sees
    #     the E-padded incidence.  Degrees use scatter-add (duplicates counted,
    #     matching PyG).
    # TODO(synk): cache A across forward calls when the hypergraph is static,
    # and switch to a gather/scatter Pallas kernel for large sparse graphs.
    w = hyperedge_weight.astype(jnp.float32)
    Hinc = jnp.zeros((N, E), jnp.float32).at[hyperedge_index[0], hyperedge_index[1]].add(1.0)
    B_deg = jnp.sum(Hinc, axis=0)                      # edge degree        [E]
    D_deg = Hinc @ w                                   # weighted node deg  [N]
    B_inv = jnp.where(B_deg > 0, 1.0 / B_deg, 0.0)
    D_inv = jnp.where(D_deg > 0, 1.0 / D_deg, 0.0)
    A = (D_inv[:, None] * Hinc * (w * B_inv)[None, :]) @ Hinc.T          # [N, N]

    x_p = _pad2d(addr_x, n_pad, LANE)
    a_p = _pad2d(A, n_pad, n_pad)

    kernel = _make_fused_kernel(cfg, n_pad)

    # Single invocation (no grid): whole operands resident in VMEM, no extra
    # pipeline buffer, lane-dense 128-wide output.
    # TODO(synk): add a 'parallel' leading grid axis over a batch of graphs /
    # node-row tiles to use v7x's second TensorCore and bound VMEM for large N.
    out = pl.pallas_call(
        kernel,
        out_shape=jax.ShapeDtypeStruct((n_pad, LANE), jnp.float32),
    )(x_p, a_p, params["w_pack"], params["v_pack"])
    return out[:N, : cfg["n_classes"]]


# ----------------------------- Parameter init (pre-padded, packed) -----------------------------

def init_params(key, cfg):
    n_hg = len(cfg["hyper_gnns_hidden"])
    L = cfg["tfe_depth"]
    n_fc = len(cfg["fcs_hidden"]) + 1
    D = cfg["tfe_dim"]
    F = cfg["n_features"]
    heads, hd = cfg["tfe_heads"], cfg["tfe_head_dim"]
    inner = heads * hd
    mlp = cfg["tfe_mlp_hidden"]

    w_entries, _, _ = _weight_layout(n_hg, L, n_fc)
    v_names, _, _ = _vec_layout(n_hg, L, n_fc)

    keys = iter(jax.random.split(key, 256))

    def nrm(shape, fan_in):
        return jax.random.normal(next(keys), shape, jnp.float32) / math.sqrt(fan_in)

    # ---- weight matrices, all zero-padded to 128 rows x 128 lanes ----
    wblk = {}
    dims = [F] + list(cfg["hyper_gnns_hidden"])
    for i in range(n_hg):
        wblk[f"hg_w{i}"] = _pad2d(nrm((dims[i], dims[i + 1]), dims[i]), LANE, LANE)
    wblk["proj_w"] = _pad2d(nrm((F, D), F), LANE, LANE)
    for l in range(L):
        wq = _pad2d(nrm((D, inner), D), LANE, LANE)
        wk = _pad2d(nrm((D, inner), D), LANE, LANE)
        wv = _pad2d(nrm((D, inner), D), LANE, LANE)
        wblk[f"wqkv{l}"] = jnp.concatenate([wq, wk, wv], axis=1)          # [128, 384]
        wblk[f"wo{l}"] = _pad2d(nrm((inner, D), inner), LANE, LANE)
        wblk[f"wm1{l}"] = _pad2d(nrm((D, mlp), D), LANE, LANE)
        wblk[f"wm2{l}"] = _pad2d(nrm((mlp, D), mlp), LANE, LANE)
    fdims = [D] + list(cfg["fcs_hidden"]) + [cfg["n_classes"]]
    for i in range(n_fc):
        wblk[f"fc_w{i}"] = _pad2d(nrm((fdims[i], fdims[i + 1]), fdims[i]), LANE, LANE)
    mh = np.zeros((LANE, LANE), np.float32)
    for h in range(heads):
        mh[h * hd:(h + 1) * hd, h * hd:(h + 1) * hd] = 1.0                # head sum/broadcast
    wblk["m_head"] = jnp.asarray(mh)
    w_pack = jnp.concatenate([wblk[nm] for nm, _ in w_entries], axis=1).astype(jnp.bfloat16)

    # ---- bias / LayerNorm / mask vectors, packed as [K, 1, 128] f32 ----
    def zeros_row(width):
        return _pad_row(jnp.zeros((width,), jnp.float32), LANE)

    def ones_row(width):
        return _pad_row(jnp.ones((width,), jnp.float32), LANE)

    vblk = {"lane_mask": ones_row(D), "proj_b": zeros_row(D)}
    for i in range(n_hg):
        vblk[f"hg_b{i}"] = zeros_row(dims[i + 1])
    for l in range(L):
        vblk[f"ln1_g{l}"] = ones_row(D)
        vblk[f"ln1_b{l}"] = zeros_row(D)
        vblk[f"bq{l}"] = zeros_row(inner)
        vblk[f"bk{l}"] = zeros_row(inner)
        vblk[f"bv{l}"] = zeros_row(inner)
        vblk[f"bo{l}"] = zeros_row(D)
        vblk[f"ln2_g{l}"] = ones_row(D)
        vblk[f"ln2_b{l}"] = zeros_row(D)
        vblk[f"bm1{l}"] = zeros_row(mlp)
        vblk[f"bm2{l}"] = zeros_row(D)
    for i in range(n_fc):
        vblk[f"fc_b{i}"] = zeros_row(fdims[i + 1])
    v_pack = jnp.stack([vblk[nm] for nm in v_names], axis=0)              # [K, 1, 128]

    return {"w_pack": w_pack, "v_pack": v_pack}


# ----------------------------- Main -----------------------------

if __name__ == "__main__":
    cfg = dict(
        n_features=8,
        hyper_gnns_hidden=[16, 32],   # last hidden == tfe_dim so tokens stack
        tfe_dim=32,
        tfe_mlp_hidden=64,
        tfe_depth=2,
        tfe_heads=2,
        tfe_head_dim=16,
        tfe_type="1st",
        fcs_hidden=[16],
        n_classes=4,
    )
    N_nodes, N_edges, nnz = 16, 12, 48

    key = jax.random.PRNGKey(0)
    k_param, k_x, k_ni, k_ei, k_w = jax.random.split(key, 5)

    params = init_params(k_param, cfg)
    addr_x = jax.random.normal(k_x, (N_nodes, cfg["n_features"]), jnp.float32)
    node_idx = jax.random.randint(k_ni, (nnz,), 0, N_nodes)
    edge_idx = jax.random.randint(k_ei, (nnz,), 0, N_edges)
    hyperedge_index = jnp.stack([node_idx, edge_idx], axis=0)             # [2, nnz]
    hyperedge_weight = jax.random.uniform(k_w, (N_edges,), jnp.float32, 0.5, 1.5)

    fwd = jax.jit(functools.partial(sgnn_forward, cfg=cfg))
    out = fwd(params, addr_x, hyperedge_index, hyperedge_weight)
    out = jax.block_until_ready(out)

    assert out.shape == (N_nodes, cfg["n_classes"])
    assert bool(jnp.all(jnp.isfinite(out)))
    print("KERNEL_OK")
</pallas_src>

<mosaic_0001>
module attributes {stable_mosaic.version = 11 : i64} {
  func.func private @main(%arg0: i32) attributes {dimension_semantics = [#tpu.dimension_semantics<core_parallel>], iteration_bounds = array<i64: 2>, tpu.core_type = #tpu.core_type<sc_scalar_subcore>, window_params = []} {
    return
  }
}

module attributes {stable_mosaic.version = 11 : i64} {
  func.func private @main(%arg0: i32) attributes {dimension_semantics = [#tpu.dimension_semantics<core_parallel>], iteration_bounds = array<i64: 2>, tpu.core_type = #tpu.core_type<sc_scalar_subcore>, window_params = []} {
    return
  }
}

module attributes {stable_mosaic.version = 11 : i64} {
  func.func @kernel(%arg0: memref<16x128xf32, #tpu.memory_space<vmem>>, %arg1: memref<16x16xf32, #tpu.memory_space<vmem>>, %arg2: memref<128x2304xbf16, #tpu.memory_space<vmem>>, %arg3: memref<26x1x128xf32, #tpu.memory_space<vmem>>, %arg4: memref<16x128xf32, #tpu.memory_space<vmem>>) attributes {dimension_semantics = [], scalar_prefetch = 0 : i64, scratch_operands = 0 : i64, tpu.core_type = #tpu.core_type<tc>} {
    %c0 = arith.constant 0 : index
    %c0_0 = arith.constant 0 : index
    %c0_1 = arith.constant 0 : index
    %0 = vector.load %arg3[%c0, %c0_0, %c0_1] : memref<26x1x128xf32, #tpu.memory_space<vmem>>, vector<1x1x128xf32>
    %1 = vector.shape_cast %0 : vector<1x1x128xf32> to vector<1x128xf32>
    %c0_2 = arith.constant 0 : index
    %c0_3 = arith.constant 0 : index
    %2 = vector.load %arg0[%c0_2, %c0_3] : memref<16x128xf32, #tpu.memory_space<vmem>>, vector<16x128xf32>
    %c0_4 = arith.constant 0 : index
    %c0_5 = arith.constant 0 : index
    %3 = vector.load %arg1[%c0_4, %c0_5] : memref<16x16xf32, #tpu.memory_space<vmem>>, vector<16x16xf32>
    %c0_6 = arith.constant 0 : index
    %c0_7 = arith.constant 0 : index
    %4 = vector.load %arg2[%c0_6, %c0_7] : memref<128x2304xbf16, #tpu.memory_space<vmem>>, vector<128x128xbf16>
    %5 = arith.truncf %2 : vector<16x128xf32> to vector<16x128xbf16>
    %cst = arith.constant dense<0.000000e+00> : vector<16x128xf32>
    %6 = tpu.matmul %5, %4, %cst {dimension_numbers = #tpu.dot_dimension_numbers<[1], [0], [0], [1], [0, 0, 1, 1], [], []>} : vector<16x128xbf16>, vector<128x128xbf16>, vector<16x128xf32> -> vector<16x128xf32>
    %7 = arith.truncf %3 : vector<16x16xf32> to vector<16x16xbf16>
    %8 = arith.truncf %6 : vector<16x128xf32> to vector<16x128xbf16>
    %cst_8 = arith.constant dense<0.000000e+00> : vector<16x128xf32>
    %9 = tpu.matmul %7, %8, %cst_8 {dimension_numbers = #tpu.dot_dimension_numbers<[1], [0], [0], [1], [0, 0, 1, 1], [], []>} : vector<16x16xbf16>, vector<16x128xbf16>, vector<16x128xf32> -> vector<16x128xf32>
    %c1 = arith.constant 1 : index
    %c0_9 = arith.constant 0 : index
    %c0_10 = arith.constant 0 : index
    %10 = vector.load %arg3[%c1, %c0_9, %c0_10] : memref<26x1x128xf32, #tpu.memory_space<vmem>>, vector<1x1x128xf32>
    %11 = vector.shape_cast %10 : vector<1x1x128xf32> to vector<1x128xf32>
    %12 = vector.broadcast %11 : vector<1x128xf32> to vector<16x128xf32>
    %13 = arith.addf %9, %12 : vector<16x128xf32>
    %cst_11 = arith.constant 0.000000e+00 : f32
    %14 = vector.broadcast %cst_11 : f32 to vector<16x128xf32>
    %15 = arith.maximumf %13, %14 : vector<16x128xf32>
    %c0_12 = arith.constant 0 : index
    %c128 = arith.constant 128 : index
    %16 = vector.load %arg2[%c0_12, %c128] : memref<128x2304xbf16, #tpu.memory_space<vmem>>, vector<128x128xbf16>
    %17 = arith.truncf %15 : vector<16x128xf32> to vector<16x128xbf16>
    %cst_13 = arith.constant dense<0.000000e+00> : vector<16x128xf32>
    %18 = tpu.matmul %17, %16, %cst_13 {dimension_numbers = #tpu.dot_dimension_numbers<[1], [0], [0], [1], [0, 0, 1, 1], [], []>} : vector<16x128xbf16>, vector<128x128xbf16>, vector<16x128xf32> -> vector<16x128xf32>
    %19 = arith.truncf %3 : vector<16x16xf32> to vector<16x16xbf16>
    %20 = arith.truncf %18 : vector<16x128xf32> to vector<16x128xbf16>
    %cst_14 = arith.constant dense<0.000000e+00> : vector<16x128xf32>
    %21 = tpu.matmul %19, %20, %cst_14 {dimension_numbers = #tpu.dot_dimension_numbers<[1], [0], [0], [1], [0, 0, 1, 1], [], []>} : vector<16x16xbf16>, vector<16x128xbf16>, vector<16x128xf32> -> vector<16x128xf32>
    %c2 = arith.constant 2 : index
    %c0_15 = arith.constant 0 : index
    %c0_16 = arith.constant 0 : index
    %22 = vector.load %arg3[%c2, %c0_15, %c0_16] : memref<26x1x128xf32, #tpu.memory_space<vmem>>, vector<1x1x128xf32>
    %23 = vector.shape_cast %22 : vector<1x1x128xf32> to vector<1x128xf32>
    %24 = vector.broadcast %23 : vector<1x128xf32> to vector<16x128xf32>
    %25 = arith.addf %21, %24 : vector<16x128xf32>
    %c0_17 = arith.constant 0 : index
    %c256 = arith.constant 256 : index
    %26 = vector.load %arg2[%c0_17, %c256] : memref<128x2304xbf16, #tpu.memory_space<vmem>>, vector<128x128xbf16>
    %27 = arith.truncf %2 : vector<16x128xf32> to vector<16x128xbf16>
    %cst_18 = arith.constant dense<0.000000e+00> : vector<16x128xf32>
    %28 = tpu.matmul %27, %26, %cst_18 {dimension_numbers = #tpu.dot_dimension_numbers<[1], [0], [0], [1], [0, 0, 1, 1], [], []>} : vector<16x128xbf16>, vector<128x128xbf16>, vector<16x128xf32> -> vector<16x128xf32>
    %c3 = arith.constant 3 : index
    %c0_19 = arith.constant 0 : index
    %c0_20 = arith.constant 0 : index
    %29 = vector.load %arg3[%c3, %c0_19, %c0_20] : memref<26x1x128xf32, #tpu.memory_space<vmem>>, vector<1x1x128xf32>
    %30 = vector.shape_cast %29 : vector<1x1x128xf32> to vector<1x128xf32>
    %31 = vector.broadcast %30 : vector<1x128xf32> to vector<16x128xf32>
    %32 = arith.addf %28, %31 : vector<16x128xf32>
    %33 = tpu.concatenate %32, %25 in 0 : vector<16x128xf32>, vector<16x128xf32> -> vector<32x128xf32>
    %c0_21 = arith.constant 0 : index
    %c2176 = arith.constant 2176 : index
    %34 = vector.load %arg2[%c0_21, %c2176] : memref<128x2304xbf16, #tpu.memory_space<vmem>>, vector<128x128xbf16>
    %c4 = arith.constant 4 : index
    %c0_22 = arith.constant 0 : index
    %c0_23 = arith.constant 0 : index
    %35 = vector.load %arg3[%c4, %c0_22, %c0_23] : memref<26x1x128xf32, #tpu.memory_space<vmem>>, vector<1x1x128xf32>
    %36 = vector.shape_cast %35 : vector<1x1x128xf32> to vector<1x128xf32>
    %c5 = arith.constant 5 : index
    %c0_24 = arith.constant 0 : index
    %c0_25 = arith.constant 0 : index
    %37 = vector.load %arg3[%c5, %c0_24, %c0_25] : memref<26x1x128xf32, #tpu.memory_space<vmem>>, vector<1x1x128xf32>
    %38 = vector.shape_cast %37 : vector<1x1x128xf32> to vector<1x128xf32>
    %cst_26 = arith.constant dense<0.000000e+00> : vector<32xf32>
    %39 = vector.multi_reduction <add>, %33, %cst_26 [1] : vector<32x128xf32> to vector<32xf32>
    %40 = vector.shape_cast %39 : vector<32xf32> to vector<32x1xf32>
    %cst_27 = arith.constant 3.125000e-02 : f32
    %41 = vector.broadcast %cst_27 : f32 to vector<32x1xf32>
    %42 = arith.mulf %40, %41 : vector<32x1xf32>
    %43 = vector.broadcast %42 : vector<32x1xf32> to vector<32x128xf32>
    %44 = arith.subf %33, %43 : vector<32x128xf32>
    %45 = vector.broadcast %1 : vector<1x128xf32> to vector<32x128xf32>
    %46 = arith.mulf %44, %45 : vector<32x128xf32>
    %47 = arith.mulf %46, %46 : vector<32x128xf32>
    %cst_28 = arith.constant dense<0.000000e+00> : vector<32xf32>
    %48 = vector.multi_reduction <add>, %47, %cst_28 [1] : vector<32x128xf32> to vector<32xf32>
    %49 = vector.shape_cast %48 : vector<32xf32> to vector<32x1xf32>
    %cst_29 = arith.constant 3.125000e-02 : f32
    %50 = vector.broadcast %cst_29 : f32 to vector<32x1xf32>
    %51 = arith.mulf %49, %50 : vector<32x1xf32>
    %cst_30 = arith.constant 9.99999974E-6 : f32
    %52 = vector.broadcast %cst_30 : f32 to vector<32x1xf32>
    %53 = arith.addf %51, %52 : vector<32x1xf32>
    %54 = math.rsqrt %53 : vector<32x1xf32>
    %55 = vector.broadcast %54 : vector<32x1xf32> to vector<32x128xf32>
    %56 = arith.mulf %46, %55 : vector<32x128xf32>
    %57 = vector.broadcast %36 : vector<1x128xf32> to vector<32x128xf32>
    %58 = arith.mulf %56, %57 : vector<32x128xf32>
    %59 = vector.broadcast %38 : vector<1x128xf32> to vector<32x128xf32>
    %60 = arith.addf %58, %59 : vector<32x128xf32>
    %c0_31 = arith.constant 0 : index
    %c384 = arith.constant 384 : index
    %61 = vector.load %arg2[%c0_31, %c384] : memref<128x2304xbf16, #tpu.memory_space<vmem>>, vector<128x384xbf16>
    %62 = arith.truncf %60 : vector<32x128xf32> to vector<32x128xbf16>
    %cst_32 = arith.constant dense<0.000000e+00> : vector<32x384xf32>
    %63 = tpu.matmul %62, %61, %cst_32 {dimension_numbers = #tpu.dot_dimension_numbers<[1], [0], [0], [1], [0, 0, 1, 1], [], []>} : vector<32x128xbf16>, vector<128x384xbf16>, vector<32x384xf32> -> vector<32x384xf32>
    %64 = vector.extract_strided_slice %63 {offsets = [0, 0], sizes = [32, 128], strides = [1, 1]} : vector<32x384xf32> to vector<32x128xf32>
    %c6 = arith.constant 6 : index
    %c0_33 = arith.constant 0 : index
    %c0_34 = arith.constant 0 : index
    %65 = vector.load %arg3[%c6, %c0_33, %c0_34] : memref<26x1x128xf32, #tpu.memory_space<vmem>>, vector<1x1x128xf32>
    %66 = vector.shape_cast %65 : vector<1x1x128xf32> to vector<1x128xf32>
    %67 = vector.broadcast %66 : vector<1x128xf32> to vector<32x128xf32>
    %68 = arith.addf %64, %67 : vector<32x128xf32>
    %69 = vector.extract_strided_slice %63 {offsets = [0, 128], sizes = [32, 128], strides = [1, 1]} : vector<32x384xf32> to vector<32x128xf32>
    %c7 = arith.constant 7 : index
    %c0_35 = arith.constant 0 : index
    %c0_36 = arith.constant 0 : index
    %70 = vector.load %arg3[%c7, %c0_35, %c0_36] : memref<26x1x128xf32, #tpu.memory_space<vmem>>, vector<1x1x128xf32>
    %71 = vector.shape_cast %70 : vector<1x1x128xf32> to vector<1x128xf32>
    %72 = vector.broadcast %71 : vector<1x128xf32> to vector<32x128xf32>
    %73 = arith.addf %69, %72 : vector<32x128xf32>
    %74 = vector.extract_strided_slice %63 {offsets = [0, 256], sizes = [32, 128], strides = [1, 1]} : vector<32x384xf32> to vector<32x128xf32>
    %c8 = arith.constant 8 : index
    %c0_37 = arith.constant 0 : index
    %c0_38 = arith.constant 0 : index
    %75 = vector.load %arg3[%c8, %c0_37, %c0_38] : memref<26x1x128xf32, #tpu.memory_space<vmem>>, vector<1x1x128xf32>
    %76 = vector.shape_cast %75 : vector<1x1x128xf32> to vector<1x128xf32>
    %77 = vector.broadcast %76 : vector<1x128xf32> to vector<32x128xf32>
    %78 = arith.addf %74, %77 : vector<32x128xf32>
    %79 = vector.extract_strided_slice %68 {offsets = [0, 0], sizes = [16, 128], strides = [1, 1]} : vector<32x128xf32> to vector<16x128xf32>
    %80 = vector.extract_strided_slice %68 {offsets = [16, 0], sizes = [16, 128], strides = [1, 1]} : vector<32x128xf32> to vector<16x128xf32>
    %81 = vector.extract_strided_slice %73 {offsets = [0, 0], sizes = [16, 128], strides = [1, 1]} : vector<32x128xf32> to vector<16x128xf32>
    %82 = vector.extract_strided_slice %73 {offsets = [16, 0], sizes = [16, 128], strides = [1, 1]} : vector<32x128xf32> to vector<16x128xf32>
    %83 = vector.extract_strided_slice %78 {offsets = [0, 0], sizes = [16, 128], strides = [1, 1]} : vector<32x128xf32> to vector<16x128xf32>
    %84 = vector.extract_strided_slice %78 {offsets = [16, 0], sizes = [16, 128], strides = [1, 1]} : vector<32x128xf32> to vector<16x128xf32>
    %85 = arith.mulf %79, %81 : vector<16x128xf32>
    %86 = arith.mulf %79, %82 : vector<16x128xf32>
    %87 = arith.mulf %80, %81 : vector<16x128xf32>
    %88 = arith.mulf %80, %82 : vector<16x128xf32>
    %89 = tpu.concatenate %85, %86, %87, %88 in 0 : vector<16x128xf32>, vector<16x128xf32>, vector<16x128xf32>, vector<16x128xf32> -> vector<64x128xf32>
    %90 = arith.truncf %89 : vector<64x128xf32> to vector<64x128xbf16>
    %cst_39 = arith.constant dense<0.000000e+00> : vector<64x128xf32>
    %91 = tpu.matmul %90, %34, %cst_39 {dimension_numbers = #tpu.dot_dimension_numbers<[1], [0], [0], [1], [0, 0, 1, 1], [], []>} : vector<64x128xbf16>, vector<128x128xbf16>, vector<64x128xf32> -> vector<64x128xf32>
    %cst_40 = arith.constant 2.500000e-01 : f32
    %92 = vector.broadcast %cst_40 : f32 to vector<64x128xf32>
    %93 = arith.mulf %91, %92 : vector<64x128xf32>
    %94 = vector.extract_strided_slice %93 {offsets = [0, 0], sizes = [16, 128], strides = [1, 1]} : vector<64x128xf32> to vector<16x128xf32>
    %95 = vector.extract_strided_slice %93 {offsets = [16, 0], sizes = [16, 128], strides = [1, 1]} : vector<64x128xf32> to vector<16x128xf32>
    %96 = vector.extract_strided_slice %93 {offsets = [32, 0], sizes = [16, 128], strides = [1, 1]} : vector<64x128xf32> to vector<16x128xf32>
    %97 = vector.extract_strided_slice %93 {offsets = [48, 0], sizes = [16, 128], strides = [1, 1]} : vector<64x128xf32> to vector<16x128xf32>
    %98 = arith.maximumf %94, %95 : vector<16x128xf32>
    %99 = arith.subf %94, %98 : vector<16x128xf32>
    %100 = math.exp %99 : vector<16x128xf32>
    %101 = arith.subf %95, %98 : vector<16x128xf32>
    %102 = math.exp %101 : vector<16x128xf32>
    %103 = arith.mulf %100, %83 : vector<16x128xf32>
    %104 = arith.mulf %102, %84 : vector<16x128xf32>
    %105 = arith.addf %103, %104 : vector<16x128xf32>
    %106 = arith.addf %100, %102 : vector<16x128xf32>
    %107 = arith.divf %105, %106 : vector<16x128xf32>
    %108 = arith.maximumf %96, %97 : vector<16x128xf32>
    %109 = arith.subf %96, %108 : vector<16x128xf32>
    %110 = math.exp %109 : vector<16x128xf32>
    %111 = arith.subf %97, %108 : vector<16x128xf32>
    %112 = math.exp %111 : vector<16x128xf32>
    %113 = arith.mulf %110, %83 : vector<16x128xf32>
    %114 = arith.mulf %112, %84 : vector<16x128xf32>
    %115 = arith.addf %113, %114 : vector<16x128xf32>
    %116 = arith.addf %110, %112 : vector<16x128xf32>
    %117 = arith.divf %115, %116 : vector<16x128xf32>
    %118 = tpu.concatenate %107, %117 in 0 : vector<16x128xf32>, vector<16x128xf32> -> vector<32x128xf32>
    %c0_41 = arith.constant 0 : index
    %c768 = arith.constant 768 : index
    %119 = vector.load %arg2[%c0_41, %c768] : memref<128x2304xbf16, #tpu.memory_space<vmem>>, vector<128x128xbf16>
    %120 = arith.truncf %118 : vector<32x128xf32> to vector<32x128xbf16>
    %cst_42 = arith.constant dense<0.000000e+00> : vector<32x128xf32>
    %121 = tpu.matmul %120, %119, %cst_42 {dimension_numbers = #tpu.dot_dimension_numbers<[1], [0], [0], [1], [0, 0, 1, 1], [], []>} : vector<32x128xbf16>, vector<128x128xbf16>, vector<32x128xf32> -> vector<32x128xf32>
    %122 = arith.addf %33, %121 : vector<32x128xf32>
    %c9 = arith.constant 9 : index
    %c0_43 = arith.constant 0 : index
    %c0_44 = arith.constant 0 : index
    %123 = vector.load %arg3[%c9, %c0_43, %c0_44] : memref<26x1x128xf32, #tpu.memory_space<vmem>>, vector<1x1x128xf32>
    %124 = vector.shape_cast %123 : vector<1x1x128xf32> to vector<1x128xf32>
    %125 = vector.broadcast %124 : vector<1x128xf32> to vector<32x128xf32>
    %126 = arith.addf %122, %125 : vector<32x128xf32>
    %c10 = arith.constant 10 : index
    %c0_45 = arith.constant 0 : index
    %c0_46 = arith.constant 0 : index
    %127 = vector.load %arg3[%c10, %c0_45, %c0_46] : memref<26x1x128xf32, #tpu.memory_space<vmem>>, vector<1x1x128xf32>
    %128 = vector.shape_cast %127 : vector<1x1x128xf32> to vector<1x128xf32>
    %c11 = arith.constant 11 : index
    %c0_47 = arith.constant 0 : index
    %c0_48 = arith.constant 0 : index
    %129 = vector.load %arg3[%c11, %c0_47, %c0_48] : memref<26x1x128xf32, #tpu.memory_space<vmem>>, vector<1x1x128xf32>
    %130 = vector.shape_cast %129 : vector<1x1x128xf32> to vector<1x128xf32>
    %cst_49 = arith.constant dense<0.000000e+00> : vector<32xf32>
    %131 = vector.multi_reduction <add>, %126, %cst_49 [1] : vector<32x128xf32> to vector<32xf32>
    %132 = vector.shape_cast %131 : vector<32xf32> to vector<32x1xf32>
    %cst_50 = arith.constant 3.125000e-02 : f32
    %133 = vector.broadcast %cst_50 : f32 to vector<32x1xf32>
    %134 = arith.mulf %132, %133 : vector<32x1xf32>
    %135 = vector.broadcast %134 : vector<32x1xf32> to vector<32x128xf32>
    %136 = arith.subf %126, %135 : vector<32x128xf32>
    %137 = vector.broadcast %1 : vector<1x128xf32> to vector<32x128xf32>
    %138 = arith.mulf %136, %137 : vector<32x128xf32>
    %139 = arith.mulf %138, %138 : vector<32x128xf32>
    %cst_51 = arith.constant dense<0.000000e+00> : vector<32xf32>
    %140 = vector.multi_reduction <add>, %139, %cst_51 [1] : vector<32x128xf32> to vector<32xf32>
    %141 = vector.shape_cast %140 : vector<32xf32> to vector<32x1xf32>
    %cst_52 = arith.constant 3.125000e-02 : f32
    %142 = vector.broadcast %cst_52 : f32 to vector<32x1xf32>
    %143 = arith.mulf %141, %142 : vector<32x1xf32>
    %cst_53 = arith.constant 9.99999974E-6 : f32
    %144 = vector.broadcast %cst_53 : f32 to vector<32x1xf32>
    %145 = arith.addf %143, %144 : vector<32x1xf32>
    %146 = math.rsqrt %145 : vector<32x1xf32>
    %147 = vector.broadcast %146 : vector<32x1xf32> to vector<32x128xf32>
    %148 = arith.mulf %138, %147 : vector<32x128xf32>
    %149 = vector.broadcast %128 : vector<1x128xf32> to vector<32x128xf32>
    %150 = arith.mulf %148, %149 : vector<32x128xf32>
    %151 = vector.broadcast %130 : vector<1x128xf32> to vector<32x128xf32>
    %152 = arith.addf %150, %151 : vector<32x128xf32>
    %c0_54 = arith.constant 0 : index
    %c896 = arith.constant 896 : index
    %153 = vector.load %arg2[%c0_54, %c896] : memref<128x2304xbf16, #tpu.memory_space<vmem>>, vector<128x128xbf16>
    %154 = arith.truncf %152 : vector<32x128xf32> to vector<32x128xbf16>
    %cst_55 = arith.constant dense<0.000000e+00> : vector<32x128xf32>
    %155 = tpu.matmul %154, %153, %cst_55 {dimension_numbers = #tpu.dot_dimension_numbers<[1], [0], [0], [1], [0, 0, 1, 1], [], []>} : vector<32x128xbf16>, vector<128x128xbf16>, vector<32x128xf32> -> vector<32x128xf32>
    %c12 = arith.constant 12 : index
    %c0_56 = arith.constant 0 : index
    %c0_57 = arith.constant 0 : index
    %156 = vector.load %arg3[%c12, %c0_56, %c0_57] : memref<26x1x128xf32, #tpu.memory_space<vmem>>, vector<1x1x128xf32>
    %157 = vector.shape_cast %156 : vector<1x1x128xf32> to vector<1x128xf32>
    %158 = vector.broadcast %157 : vector<1x128xf32> to vector<32x128xf32>
    %159 = arith.addf %155, %158 : vector<32x128xf32>
    %160 = arith.mulf %159, %159 : vector<32x128xf32>
    %161 = arith.mulf %159, %160 : vector<32x128xf32>
    %cst_58 = arith.constant 4.471500e-02 : f32
    %162 = vector.broadcast %cst_58 : f32 to vector<32x128xf32>
    %163 = arith.mulf %162, %161 : vector<32x128xf32>
    %164 = arith.addf %159, %163 : vector<32x128xf32>
    %cst_59 = arith.constant 0.797884583 : f32
    %165 = vector.broadcast %cst_59 : f32 to vector<32x128xf32>
    %166 = arith.mulf %165, %164 : vector<32x128xf32>
    %167 = math.tanh %166 : vector<32x128xf32>
    %cst_60 = arith.constant 1.000000e+00 : f32
    %168 = vector.broadcast %cst_60 : f32 to vector<32x128xf32>
    %169 = arith.addf %168, %167 : vector<32x128xf32>
    %cst_61 = arith.constant 5.000000e-01 : f32
    %170 = vector.broadcast %cst_61 : f32 to vector<32x128xf32>
    %171 = arith.mulf %170, %169 : vector<32x128xf32>
    %172 = arith.mulf %159, %171 : vector<32x128xf32>
    %c0_62 = arith.constant 0 : index
    %c1024 = arith.constant 1024 : index
    %173 = vector.load %arg2[%c0_62, %c1024] : memref<128x2304xbf16, #tpu.memory_space<vmem>>, vector<128x128xbf16>
    %174 = arith.truncf %172 : vector<32x128xf32> to vector<32x128xbf16>
    %cst_63 = arith.constant dense<0.000000e+00> : vector<32x128xf32>
    %175 = tpu.matmul %174, %173, %cst_63 {dimension_numbers = #tpu.dot_dimension_numbers<[1], [0], [0], [1], [0, 0, 1, 1], [], []>} : vector<32x128xbf16>, vector<128x128xbf16>, vector<32x128xf32> -> vector<32x128xf32>
    %176 = arith.addf %126, %175 : vector<32x128xf32>
    %c13 = arith.constant 13 : index
    %c0_64 = arith.constant 0 : index
    %c0_65 = arith.constant 0 : index
    %177 = vector.load %arg3[%c13, %c0_64, %c0_65] : memref<26x1x128xf32, #tpu.memory_space<vmem>>, vector<1x1x128xf32>
    %178 = vector.shape_cast %177 : vector<1x1x128xf32> to vector<1x128xf32>
    %179 = vector.broadcast %178 : vector<1x128xf32> to vector<32x128xf32>
    %180 = arith.addf %176, %179 : vector<32x128xf32>
    %c14 = arith.constant 14 : index
    %c0_66 = arith.constant 0 : index
    %c0_67 = arith.constant 0 : index
    %181 = vector.load %arg3[%c14, %c0_66, %c0_67] : memref<26x1x128xf32, #tpu.memory_space<vmem>>, vector<1x1x128xf32>
    %182 = vector.shape_cast %181 : vector<1x1x128xf32> to vector<1x128xf32>
    %c15 = arith.constant 15 : index
    %c0_68 = arith.constant 0 : index
    %c0_69 = arith.constant 0 : index
    %183 = vector.load %arg3[%c15, %c0_68, %c0_69] : memref<26x1x128xf32, #tpu.memory_space<vmem>>, vector<1x1x128xf32>
    %184 = vector.shape_cast %183 : vector<1x1x128xf32> to vector<1x128xf32>
    %cst_70 = arith.constant dense<0.000000e+00> : vector<32xf32>
    %185 = vector.multi_reduction <add>, %180, %cst_70 [1] : vector<32x128xf32> to vector<32xf32>
    %186 = vector.shape_cast %185 : vector<32xf32> to vector<32x1xf32>
    %cst_71 = arith.constant 3.125000e-02 : f32
    %187 = vector.broadcast %cst_71 : f32 to vector<32x1xf32>
    %188 = arith.mulf %186, %187 : vector<32x1xf32>
    %189 = vector.broadcast %188 : vector<32x1xf32> to vector<32x128xf32>
    %190 = arith.subf %180, %189 : vector<32x128xf32>
    %191 = vector.broadcast %1 : vector<1x128xf32> to vector<32x128xf32>
    %192 = arith.mulf %190, %191 : vector<32x128xf32>
    %193 = arith.mulf %192, %192 : vector<32x128xf32>
    %cst_72 = arith.constant dense<0.000000e+00> : vector<32xf32>
    %194 = vector.multi_reduction <add>, %193, %cst_72 [1] : vector<32x128xf32> to vector<32xf32>
    %195 = vector.shape_cast %194 : vector<32xf32> to vector<32x1xf32>
    %cst_73 = arith.constant 3.125000e-02 : f32
    %196 = vector.broadcast %cst_73 : f32 to vector<32x1xf32>
    %197 = arith.mulf %195, %196 : vector<32x1xf32>
    %cst_74 = arith.constant 9.99999974E-6 : f32
    %198 = vector.broadcast %cst_74 : f32 to vector<32x1xf32>
    %199 = arith.addf %197, %198 : vector<32x1xf32>
    %200 = math.rsqrt %199 : vector<32x1xf32>
    %201 = vector.broadcast %200 : vector<32x1xf32> to vector<32x128xf32>
    %202 = arith.mulf %192, %201 : vector<32x128xf32>
    %203 = vector.broadcast %182 : vector<1x128xf32> to vector<32x128xf32>
    %204 = arith.mulf %202, %203 : vector<32x128xf32>
    %205 = vector.broadcast %184 : vector<1x128xf32> to vector<32x128xf32>
    %206 = arith.addf %204, %205 : vector<32x128xf32>
    %c0_75 = arith.constant 0 : index
    %c1152 = arith.constant 1152 : index
    %207 = vector.load %arg2[%c0_75, %c1152] : memref<128x2304xbf16, #tpu.memory_space<vmem>>, vector<128x384xbf16>
    %208 = arith.truncf %206 : vector<32x128xf32> to vector<32x128xbf16>
    %cst_76 = arith.constant dense<0.000000e+00> : vector<32x384xf32>
    %209 = tpu.matmul %208, %207, %cst_76 {dimension_numbers = #tpu.dot_dimension_numbers<[1], [0], [0], [1], [0, 0, 1, 1], [], []>} : vector<32x128xbf16>, vector<128x384xbf16>, vector<32x384xf32> -> vector<32x384xf32>
    %210 = vector.extract_strided_slice %209 {offsets = [0, 0], sizes = [32, 128], strides = [1, 1]} : vector<32x384xf32> to vector<32x128xf32>
    %c16 = arith.constant 16 : index
    %c0_77 = arith.constant 0 : index
    %c0_78 = arith.constant 0 : index
    %211 = vector.load %arg3[%c16, %c0_77, %c0_78] : memref<26x1x128xf32, #tpu.memory_space<vmem>>, vector<1x1x128xf32>
    %212 = vector.shape_cast %211 : vector<1x1x128xf32> to vector<1x128xf32>
    %213 = vector.broadcast %212 : vector<1x128xf32> to vector<32x128xf32>
    %214 = arith.addf %210, %213 : vector<32x128xf32>
    %215 = vector.extract_strided_slice %209 {offsets = [0, 128], sizes = [32, 128], strides = [1, 1]} : vector<32x384xf32> to vector<32x128xf32>
    %c17 = arith.constant 17 : index
    %c0_79 = arith.constant 0 : index
    %c0_80 = arith.constant 0 : index
    %216 = vector.load %arg3[%c17, %c0_79, %c0_80] : memref<26x1x128xf32, #tpu.memory_space<vmem>>, vector<1x1x128xf32>
    %217 = vector.shape_cast %216 : vector<1x1x128xf32> to vector<1x128xf32>
    %218 = vector.broadcast %217 : vector<1x128xf32> to vector<32x128xf32>
    %219 = arith.addf %215, %218 : vector<32x128xf32>
    %220 = vector.extract_strided_slice %209 {offsets = [0, 256], sizes = [32, 128], strides = [1, 1]} : vector<32x384xf32> to vector<32x128xf32>
    %c18 = arith.constant 18 : index
    %c0_81 = arith.constant 0 : index
    %c0_82 = arith.constant 0 : index
    %221 = vector.load %arg3[%c18, %c0_81, %c0_82] : memref<26x1x128xf32, #tpu.memory_space<vmem>>, vector<1x1x128xf32>
    %222 = vector.shape_cast %221 : vector<1x1x128xf32> to vector<1x128xf32>
    %223 = vector.broadcast %222 : vector<1x128xf32> to vector<32x128xf32>
    %224 = arith.addf %220, %223 : vector<32x128xf32>
    %225 = vector.extract_strided_slice %214 {offsets = [0, 0], sizes = [16, 128], strides = [1, 1]} : vector<32x128xf32> to vector<16x128xf32>
    %226 = vector.extract_strided_slice %214 {offsets = [16, 0], sizes = [16, 128], strides = [1, 1]} : vector<32x128xf32> to vector<16x128xf32>
    %227 = vector.extract_strided_slice %219 {offsets = [0, 0], sizes = [16, 128], strides = [1, 1]} : vector<32x128xf32> to vector<16x128xf32>
    %228 = vector.extract_strided_slice %219 {offsets = [16, 0], sizes = [16, 128], strides = [1, 1]} : vector<32x128xf32> to vector<16x128xf32>
    %229 = vector.extract_strided_slice %224 {offsets = [0, 0], sizes = [16, 128], strides = [1, 1]} : vector<32x128xf32> to vector<16x128xf32>
    %230 = vector.extract_strided_slice %224 {offsets = [16, 0], sizes = [16, 128], strides = [1, 1]} : vector<32x128xf32> to vector<16x128xf32>
    %231 = arith.mulf %225, %227 : vector<16x128xf32>
    %232 = arith.mulf %225, %228 : vector<16x128xf32>
    %233 = arith.mulf %226, %227 : vector<16x128xf32>
    %234 = arith.mulf %226, %228 : vector<16x128xf32>
    %235 = tpu.concatenate %231, %232, %233, %234 in 0 : vector<16x128xf32>, vector<16x128xf32>, vector<16x128xf32>, vector<16x128xf32> -> vector<64x128xf32>
    %236 = arith.truncf %235 : vector<64x128xf32> to vector<64x128xbf16>
    %cst_83 = arith.constant dense<0.000000e+00> : vector<64x128xf32>
    %237 = tpu.matmul %236, %34, %cst_83 {dimension_numbers = #tpu.dot_dimension_numbers<[1], [0], [0], [1], [0, 0, 1, 1], [], []>} : vector<64x128xbf16>, vector<128x128xbf16>, vector<64x128xf32> -> vector<64x128xf32>
    %cst_84 = arith.constant 2.500000e-01 : f32
    %238 = vector.broadcast %cst_84 : f32 to vector<64x128xf32>
    %239 = arith.mulf %237, %238 : vector<64x128xf32>
    %240 = vector.extract_strided_slice %239 {offsets = [0, 0], sizes = [16, 128], strides = [1, 1]} : vector<64x128xf32> to vector<16x128xf32>
    %241 = vector.extract_strided_slice %239 {offsets = [16, 0], sizes = [16, 128], strides = [1, 1]} : vector<64x128xf32> to vector<16x128xf32>
    %242 = vector.extract_strided_slice %239 {offsets = [32, 0], sizes = [16, 128], strides = [1, 1]} : vector<64x128xf32> to vector<16x128xf32>
    %243 = vector.extract_strided_slice %239 {offsets = [48, 0], sizes = [16, 128], strides = [1, 1]} : vector<64x128xf32> to vector<16x128xf32>
    %244 = arith.maximumf %240, %241 : vector<16x128xf32>
    %245 = arith.subf %240, %244 : vector<16x128xf32>
    %246 = math.exp %245 : vector<16x128xf32>
    %247 = arith.subf %241, %244 : vector<16x128xf32>
    %248 = math.exp %247 : vector<16x128xf32>
    %249 = arith.mulf %246, %229 : vector<16x128xf32>
    %250 = arith.mulf %248, %230 : vector<16x128xf32>
    %251 = arith.addf %249, %250 : vector<16x128xf32>
    %252 = arith.addf %246, %248 : vector<16x128xf32>
    %253 = arith.divf %251, %252 : vector<16x128xf32>
    %254 = arith.maximumf %242, %243 : vector<16x128xf32>
    %255 = arith.subf %242, %254 : vector<16x128xf32>
    %256 = math.exp %255 : vector<16x128xf32>
    %257 = arith.subf %243, %254 : vector<16x128xf32>
    %258 = math.exp %257 : vector<16x128xf32>
    %259 = arith.mulf %256, %229 : vector<16x128xf32>
    %260 = arith.mulf %258, %230 : vector<16x128xf32>
    %261 = arith.addf %259, %260 : vector<16x128xf32>
    %262 = arith.addf %256, %258 : vector<16x128xf32>
    %263 = arith.divf %261, %262 : vector<16x128xf32>
    %264 = tpu.concatenate %253, %263 in 0 : vector<16x128xf32>, vector<16x128xf32> -> vector<32x128xf32>
    %c0_85 = arith.constant 0 : index
    %c1536 = arith.constant 1536 : index
    %265 = vector.load %arg2[%c0_85, %c1536] : memref<128x2304xbf16, #tpu.memory_space<vmem>>, vector<128x128xbf16>
    %266 = arith.truncf %264 : vector<32x128xf32> to vector<32x128xbf16>
    %cst_86 = arith.constant dense<0.000000e+00> : vector<32x128xf32>
    %267 = tpu.matmul %266, %265, %cst_86 {dimension_numbers = #tpu.dot_dimension_numbers<[1], [0], [0], [1], [0, 0, 1, 1], [], []>} : vector<32x128xbf16>, vector<128x128xbf16>, vector<32x128xf32> -> vector<32x128xf32>
    %268 = arith.addf %180, %267 : vector<32x128xf32>
    %c19 = arith.constant 19 : index
    %c0_87 = arith.constant 0 : index
    %c0_88 = arith.constant 0 : index
    %269 = vector.load %arg3[%c19, %c0_87, %c0_88] : memref<26x1x128xf32, #tpu.memory_space<vmem>>, vector<1x1x128xf32>
    %270 = vector.shape_cast %269 : vector<1x1x128xf32> to vector<1x128xf32>
    %271 = vector.broadcast %270 : vector<1x128xf32> to vector<32x128xf32>
    %272 = arith.addf %268, %271 : vector<32x128xf32>
    %c20 = arith.constant 20 : index
    %c0_89 = arith.constant 0 : index
    %c0_90 = arith.constant 0 : index
    %273 = vector.load %arg3[%c20, %c0_89, %c0_90] : memref<26x1x128xf32, #tpu.memory_space<vmem>>, vector<1x1x128xf32>
    %274 = vector.shape_cast %273 : vector<1x1x128xf32> to vector<1x128xf32>
    %c21 = arith.constant 21 : index
    %c0_91 = arith.constant 0 : index
    %c0_92 = arith.constant 0 : index
    %275 = vector.load %arg3[%c21, %c0_91, %c0_92] : memref<26x1x128xf32, #tpu.memory_space<vmem>>, vector<1x1x128xf32>
    %276 = vector.shape_cast %275 : vector<1x1x128xf32> to vector<1x128xf32>
    %cst_93 = arith.constant dense<0.000000e+00> : vector<32xf32>
    %277 = vector.multi_reduction <add>, %272, %cst_93 [1] : vector<32x128xf32> to vector<32xf32>
    %278 = vector.shape_cast %277 : vector<32xf32> to vector<32x1xf32>
    %cst_94 = arith.constant 3.125000e-02 : f32
    %279 = vector.broadcast %cst_94 : f32 to vector<32x1xf32>
    %280 = arith.mulf %278, %279 : vector<32x1xf32>
    %281 = vector.broadcast %280 : vector<32x1xf32> to vector<32x128xf32>
    %282 = arith.subf %272, %281 : vector<32x128xf32>
    %283 = vector.broadcast %1 : vector<1x128xf32> to vector<32x128xf32>
    %284 = arith.mulf %282, %283 : vector<32x128xf32>
    %285 = arith.mulf %284, %284 : vector<32x128xf32>
    %cst_95 = arith.constant dense<0.000000e+00> : vector<32xf32>
    %286 = vector.multi_reduction <add>, %285, %cst_95 [1] : vector<32x128xf32> to vector<32xf32>
    %287 = vector.shape_cast %286 : vector<32xf32> to vector<32x1xf32>
    %cst_96 = arith.constant 3.125000e-02 : f32
    %288 = vector.broadcast %cst_96 : f32 to vector<32x1xf32>
    %289 = arith.mulf %287, %288 : vector<32x1xf32>
    %cst_97 = arith.constant 9.99999974E-6 : f32
    %290 = vector.broadcast %cst_97 : f32 to vector<32x1xf32>
    %291 = arith.addf %289, %290 : vector<32x1xf32>
    %292 = math.rsqrt %291 : vector<32x1xf32>
    %293 = vector.broadcast %292 : vector<32x1xf32> to vector<32x128xf32>
    %294 = arith.mulf %284, %293 : vector<32x128xf32>
    %295 = vector.broadcast %274 : vector<1x128xf32> to vector<32x128xf32>
    %296 = arith.mulf %294, %295 : vector<32x128xf32>
    %297 = vector.broadcast %276 : vector<1x128xf32> to vector<32x128xf32>
    %298 = arith.addf %296, %297 : vector<32x128xf32>
    %c0_98 = arith.constant 0 : index
    %c1664 = arith.constant 1664 : index
    %299 = vector.load %arg2[%c0_98, %c1664] : memref<128x2304xbf16, #tpu.memory_space<vmem>>, vector<128x128xbf16>
    %300 = arith.truncf %298 : vector<32x128xf32> to vector<32x128xbf16>
    %cst_99 = arith.constant dense<0.000000e+00> : vector<32x128xf32>
    %301 = tpu.matmul %300, %299, %cst_99 {dimension_numbers = #tpu.dot_dimension_numbers<[1], [0], [0], [1], [0, 0, 1, 1], [], []>} : vector<32x128xbf16>, vector<128x128xbf16>, vector<32x128xf32> -> vector<32x128xf32>
    %c22 = arith.constant 22 : index
    %c0_100 = arith.constant 0 : index
    %c0_101 = arith.constant 0 : index
    %302 = vector.load %arg3[%c22, %c0_100, %c0_101] : memref<26x1x128xf32, #tpu.memory_space<vmem>>, vector<1x1x128xf32>
    %303 = vector.shape_cast %302 : vector<1x1x128xf32> to vector<1x128xf32>
    %304 = vector.broadcast %303 : vector<1x128xf32> to vector<32x128xf32>
    %305 = arith.addf %301, %304 : vector<32x128xf32>
    %306 = arith.mulf %305, %305 : vector<32x128xf32>
    %307 = arith.mulf %305, %306 : vector<32x128xf32>
    %cst_102 = arith.constant 4.471500e-02 : f32
    %308 = vector.broadcast %cst_102 : f32 to vector<32x128xf32>
    %309 = arith.mulf %308, %307 : vector<32x128xf32>
    %310 = arith.addf %305, %309 : vector<32x128xf32>
    %cst_103 = arith.constant 0.797884583 : f32
    %311 = vector.broadcast %cst_103 : f32 to vector<32x128xf32>
    %312 = arith.mulf %311, %310 : vector<32x128xf32>
    %313 = math.tanh %312 : vector<32x128xf32>
    %cst_104 = arith.constant 1.000000e+00 : f32
    %314 = vector.broadcast %cst_104 : f32 to vector<32x128xf32>
    %315 = arith.addf %314, %313 : vector<32x128xf32>
    %cst_105 = arith.constant 5.000000e-01 : f32
    %316 = vector.broadcast %cst_105 : f32 to vector<32x128xf32>
    %317 = arith.mulf %316, %315 : vector<32x128xf32>
    %318 = arith.mulf %305, %317 : vector<32x128xf32>
    %c0_106 = arith.constant 0 : index
    %c1792 = arith.constant 1792 : index
    %319 = vector.load %arg2[%c0_106, %c1792] : memref<128x2304xbf16, #tpu.memory_space<vmem>>, vector<128x128xbf16>
    %320 = arith.truncf %318 : vector<32x128xf32> to vector<32x128xbf16>
    %cst_107 = arith.constant dense<0.000000e+00> : vector<32x128xf32>
    %321 = tpu.matmul %320, %319, %cst_107 {dimension_numbers = #tpu.dot_dimension_numbers<[1], [0], [0], [1], [0, 0, 1, 1], [], []>} : vector<32x128xbf16>, vector<128x128xbf16>, vector<32x128xf32> -> vector<32x128xf32>
    %322 = arith.addf %272, %321 : vector<32x128xf32>
    %c23 = arith.constant 23 : index
    %c0_108 = arith.constant 0 : index
    %c0_109 = arith.constant 0 : index
    %323 = vector.load %arg3[%c23, %c0_108, %c0_109] : memref<26x1x128xf32, #tpu.memory_space<vmem>>, vector<1x1x128xf32>
    %324 = vector.shape_cast %323 : vector<1x1x128xf32> to vector<1x128xf32>
    %325 = vector.broadcast %324 : vector<1x128xf32> to vector<32x128xf32>
    %326 = arith.addf %322, %325 : vector<32x128xf32>
    %327 = vector.extract_strided_slice %326 {offsets = [0, 0], sizes = [16, 128], strides = [1, 1]} : vector<32x128xf32> to vector<16x128xf32>
    %c0_110 = arith.constant 0 : index
    %c1920 = arith.constant 1920 : index
    %328 = vector.load %arg2[%c0_110, %c1920] : memref<128x2304xbf16, #tpu.memory_space<vmem>>, vector<128x128xbf16>
    %329 = arith.truncf %327 : vector<16x128xf32> to vector<16x128xbf16>
    %cst_111 = arith.constant dense<0.000000e+00> : vector<16x128xf32>
    %330 = tpu.matmul %329, %328, %cst_111 {dimension_numbers = #tpu.dot_dimension_numbers<[1], [0], [0], [1], [0, 0, 1, 1], [], []>} : vector<16x128xbf16>, vector<128x128xbf16>, vector<16x128xf32> -> vector<16x128xf32>
    %c24 = arith.constant 24 : index
    %c0_112 = arith.constant 0 : index
    %c0_113 = arith.constant 0 : index
    %331 = vector.load %arg3[%c24, %c0_112, %c0_113] : memref<26x1x128xf32, #tpu.memory_space<vmem>>, vector<1x1x128xf32>
    %332 = vector.shape_cast %331 : vector<1x1x128xf32> to vector<1x128xf32>
    %333 = vector.broadcast %332 : vector<1x128xf32> to vector<16x128xf32>
    %334 = arith.addf %330, %333 : vector<16x128xf32>
    %cst_114 = arith.constant 0.000000e+00 : f32
    %335 = vector.broadcast %cst_114 : f32 to vector<16x128xf32>
    %336 = arith.maximumf %334, %335 : vector<16x128xf32>
    %c0_115 = arith.constant 0 : index
    %c2048 = arith.constant 2048 : index
    %337 = vector.load %arg2[%c0_115, %c2048] : memref<128x2304xbf16, #tpu.memory_space<vmem>>, vector<128x128xbf16>
    %338 = arith.truncf %336 : vector<16x128xf32> to vector<16x128xbf16>
    %cst_116 = arith.constant dense<0.000000e+00> : vector<16x128xf32>
    %339 = tpu.matmul %338, %337, %cst_116 {dimension_numbers = #tpu.dot_dimension_numbers<[1], [0], [0], [1], [0, 0, 1, 1], [], []>} : vector<16x128xbf16>, vector<128x128xbf16>, vector<16x128xf32> -> vector<16x128xf32>
    %c25 = arith.constant 25 : index
    %c0_117 = arith.constant 0 : index
    %c0_118 = arith.constant 0 : index
    %340 = vector.load %arg3[%c25, %c0_117, %c0_118] : memref<26x1x128xf32, #tpu.memory_space<vmem>>, vector<1x1x128xf32>
    %341 = vector.shape_cast %340 : vector<1x1x128xf32> to vector<1x128xf32>
    %342 = vector.broadcast %341 : vector<1x128xf32> to vector<16x128xf32>
    %343 = arith.addf %339, %342 : vector<16x128xf32>
    %c0_119 = arith.constant 0 : index
    %c0_120 = arith.constant 0 : index
    %344 = vector.load %arg4[%c0_119, %c0_120] : memref<16x128xf32, #tpu.memory_space<vmem>>, vector<16x128xf32>
    tpu.vector_store %arg4[%c0_119, %c0_120], %343 {strides = array<i32>} : memref<16x128xf32, #tpu.memory_space<vmem>>, vector<16x128xf32>,
    return
  }
}

</mosaic_0001>

<llo_original>
// kernel: sgnn_forward.1
$region0: #{sgnn_forward.1}
  #allocation0 [shape = 'u32[]', space=smem, size = 0x4, offset = 0x4, fixed_abs, tag = 'smem constant byte address 0x4 - core index']
  #allocation1 [shape = 'u32[144,128]{1,0:T(1,128)}', space=vmem, size = 0x12000, scoped, tag = 'internal scratch']
  %s0 = inlined_call_operand.vmem [shape: f32[16,128], index: 0, kind: input, shape index: {}]
  %s1 = inlined_call_operand.vmem [shape: f32[16,16], index: 1, kind: input, shape index: {}]
  %s2 = inlined_call_operand.vmem [shape: bf16[128,2304], index: 2, kind: input, shape index: {}]
  %s3 = inlined_call_operand.vmem [shape: f32[26,1,128], index: 3, kind: input, shape index: {}]
  %s4 = inlined_call_operand.vmem [shape: f32[16,128], index: 4, kind: output, shape index: {}]
  %s5 = sld [smem:[#allocation0]]
  $region26: #{sgnn_forward.1} parent=0
    _
  %s7 = ssub.s32 1, %s5
  %s8 = scalar_select 0, %s7, %s5
  // Predicated region
  $region2: #{sgnn_forward.1} parent=0 // pred_check
    _
  $region3: #{sgnn_forward.1} parent=0 // pred_check_branch
    %10 = sbr.rel (0) target = $region5
  $region4: #{sgnn_forward.1} parent=0 // pred_region
    _
  $region5: #{sgnn_forward.1} parent=0 // pred_fallthru
    _
  // Predicated region
  $region6: #{sgnn_forward.1} parent=0 // pred_check
    _
  $region7: #{sgnn_forward.1} parent=0 // pred_check_branch
    %12 = sbr.rel (0) target = $region9
  $region8: #{sgnn_forward.1} parent=0 // pred_region
    _
  $region9: #{sgnn_forward.1} parent=0 // pred_fallthru
    _
  // Predicated region
  $region10: #{sgnn_forward.1} parent=0 // pred_check
    _
  $region11: #{sgnn_forward.1} parent=0 // pred_check_branch
    %14 = sbr.rel (0) target = $region13
  $region12: #{sgnn_forward.1} parent=0 // pred_region
    _
  $region13: #{sgnn_forward.1} parent=0 // pred_fallthru
    _
  // Predicated region
  $region14: #{sgnn_forward.1} parent=0 // pred_check
    _
  $region15: #{sgnn_forward.1} parent=0 // pred_check_branch
    %16 = sbr.rel (0) target = $region17
  $region16: #{sgnn_forward.1} parent=0 // pred_region
    _
  $region17: #{sgnn_forward.1} parent=0 // pred_fallthru
    _
  %v18 = vld [vmem:[%s3] sm:$0x1]
  %v19 = vld [vmem:[%s0] sm:$0xff]
  %v20 = vld [vmem:[%s0 + $0x8] sm:$0xff]
  %v21 = vld [vmem:[%s1] sm:$0xff]
  %v22 = vld [vmem:[%s1 + $0x8] sm:$0xff]
  %v23 = vld [vmem:[%s2] sm:$0xf]
  %v24 = vld [vmem:[%s2 + $0x48] sm:$0xf]
  %v25 = vld [vmem:[%s2 + $0x90] sm:$0xf]
  %v26 = vld [vmem:[%s2 + $0xd8] sm:$0xf]
  %v27 = vld [vmem:[%s2 + $0x120] sm:$0xf]
  %v28 = vld [vmem:[%s2 + $0x168] sm:$0xf]
  %v29 = vld [vmem:[%s2 + $0x1b0] sm:$0xf]
  %v30 = vld [vmem:[%s2 + $0x1f8] sm:$0xf]
  %v31 = vld [vmem:[%s2 + $0x240] sm:$0xf]
  %v32 = vld [vmem:[%s2 + $0x288] sm:$0xf]
  %v33 = vld [vmem:[%s2 + $0x2d0] sm:$0xf]
  %v34 = vld [vmem:[%s2 + $0x318] sm:$0xf]
  %v35 = vld [vmem:[%s2 + $0x360] sm:$0xf]
  %v36 = vld [vmem:[%s2 + $0x3a8] sm:$0xf]
  %v37 = vld [vmem:[%s2 + $0x3f0] sm:$0xf]
  %v38 = vld [vmem:[%s2 + $0x438] sm:$0xf]
  %v39 = vpack.c.bf16 %v20, %v19
  %v56 = vunpack.c.l.b16 %v23
  %v57 = vunpack.c.l.b16 %v24
  %v58 = vunpack.c.l.b16 %v25
  %v59 = vunpack.c.l.b16 %v26
  %v60 = vunpack.c.l.b16 %v27
  %v61 = vunpack.c.l.b16 %v28
  %v62 = vunpack.c.l.b16 %v29
  %v63 = vunpack.c.l.b16 %v30
  %v64 = vunpack.c.l.b16 %v31
  %v65 = vunpack.c.l.b16 %v32
  %v66 = vunpack.c.l.b16 %v33
  %v67 = vunpack.c.l.b16 %v34
  %v68 = vunpack.c.l.b16 %v35
  %v69 = vunpack.c.l.b16 %v36
  %v70 = vunpack.c.l.b16 %v37
  %v71 = vunpack.c.l.b16 %v38
  %v72 = vpack.c.b16 %v57, %v56
  %v73 = vpack.c.b16 %v59, %v58
  %v74 = vpack.c.b16 %v61, %v60
  %v75 = vpack.c.b16 %v63, %v62
  %v76 = vpack.c.b16 %v65, %v64
  %v77 = vpack.c.b16 %v67, %v66
  %v78 = vpack.c.b16 %v69, %v68
  %v79 = vpack.c.b16 %v71, %v70
  %88 = vmatprep.subr.bf16.mxu0 0
  %89 = vmatpush1.bf16.msra.mxu0 %v79
  %90 = vmatprep.subr.bf16.mxu0 0
  %91 = vmatpush1.bf16.msra.mxu0 %v78
  %92 = vmatprep.subr.bf16.mxu0 0
  %93 = vmatpush1.bf16.msra.mxu0 %v77
  %94 = vmatprep.subr.bf16.mxu0 0
  %95 = vmatpush1.bf16.msra.mxu0 %v76
  %96 = vmatprep.subr.bf16.mxu0 0
  %97 = vmatpush1.bf16.msra.mxu0 %v75
  %98 = vmatprep.subr.bf16.mxu0 0
  %99 = vmatpush1.bf16.msra.mxu0 %v74
  %100 = vmatprep.subr.bf16.mxu0 0
  %101 = vmatpush1.bf16.msra.mxu0 %v73
  %102 = vmatprep.subr.bf16.mxu0 0
  %103 = vmatpush1.bf16.msra.mxu0 %v72
  %104 = vmatprep.subr.bf16.mxu0 0
  %105 = vmatpush2.bf16.msra.mxu0 0
  %106 = vmatprep.subr.bf16.mxu0 0
  %107 = vmatpush2.bf16.msra.mxu0 0
  %108 = vmatprep.subr.bf16.mxu0 0
  %109 = vmatpush2.bf16.msra.mxu0 0
  %110 = vmatprep.subr.bf16.mxu0 0
  %111 = vmatpush2.bf16.msra.mxu0 0
  %112 = vmatprep.subr.bf16.mxu0 0
  %113 = vmatpush2.bf16.msra.mxu0 0
  %114 = vmatprep.subr.bf16.mxu0 0
  %115 = vmatpush2.bf16.msra.mxu0 0
  %116 = vmatprep.subr.bf16.mxu0 0
  %117 = vmatpush2.bf16.msra.mxu0 0
  %118 = vmatprep.subr.bf16.mxu0 0
  %119 = vmatpush2.bf16.msra.mxu0 0
  %120 = vmatprep.mubr.bf16.mxu0 0
  %121 = vmatmul.mubr.bf16.gmra.mxu0 %v39
  %v122 = vpop.f32.mrf.mxu0
  %v123 = vadd.f32 0.0, %v122
  %v124 = vpop.f32.mrf.mxu0
  %v125 = vpop.f32.mrf.mxu0
  %v126 = vadd.f32 0.0, %v125
  %v127 = vpop.f32.mrf.mxu0
  %128 = vdwg.mxu0
  %v129 = vpack.c.bf16 %v22, %v21
  %v130 = vpack.c.bf16 %v126, %v123
  %s131 = scalar_lea.vmem %s3, 1
  %v132 = vld [vmem:[%s131] sm:$0x1]
  %v134 = vlaneseq
  %v135 = vshrl.u32 %v134, 7
  %v136 = vsub.s32 0, %v135
  %v137 = vrot.slane %v132, %v136
  %vm139 = vcmask 130048
  %v141 = vsel %vm139, %v129, 0
  %143 = vmatprep.subr.bf16.mxu0 0
  %144 = vmatpush1.bf16.msra.mxu0 0
  %145 = vmatprep.subr.bf16.mxu0 0
  %146 = vmatpush1.bf16.msra.mxu0 0
  %147 = vmatprep.subr.bf16.mxu0 0
  %148 = vmatpush1.bf16.msra.mxu0 0
  %149 = vmatprep.subr.bf16.mxu0 0
  %150 = vmatpush1.bf16.msra.mxu0 0
  %151 = vmatprep.subr.bf16.mxu0 0
  %152 = vmatpush1.bf16.msra.mxu0 0
  %153 = vmatprep.subr.bf16.mxu0 0
  %154 = vmatpush1.bf16.msra.mxu0 0
  %155 = vmatprep.subr.bf16.mxu0 0
  %156 = vmatpush1.bf16.msra.mxu0 0
  %157 = vmatprep.subr.bf16.mxu0 0
  %158 = vmatpush1.bf16.msra.mxu0 %v130
  %159 = vmatprep.subr.bf16.mxu0 0
  %160 = vmatpush2.bf16.msra.mxu0 0
  %161 = vmatprep.subr.bf16.mxu0 0
  %162 = vmatpush2.bf16.msra.mxu0 0
  %163 = vmatprep.subr.bf16.mxu0 0
  %164 = vmatpush2.bf16.msra.mxu0 0
  %165 = vmatprep.subr.bf16.mxu0 0
  %166 = vmatpush2.bf16.msra.mxu0 0
  %167 = vmatprep.subr.bf16.mxu0 0
  %168 = vmatpush2.bf16.msra.mxu0 0
  %169 = vmatprep.subr.bf16.mxu0 0
  %170 = vmatpush2.bf16.msra.mxu0 0
  %171 = vmatprep.subr.bf16.mxu0 0
  %172 = vmatpush2.bf16.msra.mxu0 0
  %173 = vmatprep.subr.bf16.mxu0 0
  %174 = vmatpush2.bf16.msra.mxu0 0
  %175 = vmatprep.mubr.bf16.mxu0 0
  %176 = vmatmul.mubr.bf16.gmra.mxu0 %v141
  %v177 = vpop.f32.mrf.mxu0
  %v178 = vadd.f32 %v137, %v177
  %v179 = vpop.f32.mrf.mxu0
  %v180 = vpop.f32.mrf.mxu0
  %v181 = vadd.f32 %v137, %v180
  %v182 = vpop.f32.mrf.mxu0
  %183 = vdwg.mxu0
  %v184 = vmax.f32 %v178, 0.0
  %v185 = vmax.f32 %v181, 0.0
  %v186 = vld [vmem:[%s2 + $0x4] sm:$0xf]
  %v187 = vld [vmem:[%s2 + $0x4c] sm:$0xf]
  %v188 = vld [vmem:[%s2 + $0x94] sm:$0xf]
  %v189 = vld [vmem:[%s2 + $0xdc] sm:$0xf]
  %v190 = vld [vmem:[%s2 + $0x124] sm:$0xf]
  %v191 = vld [vmem:[%s2 + $0x16c] sm:$0xf]
  %v192 = vld [vmem:[%s2 + $0x1b4] sm:$0xf]
  %v193 = vld [vmem:[%s2 + $0x1fc] sm:$0xf]
  %v194 = vld [vmem:[%s2 + $0x244] sm:$0xf]
  %v195 = vld [vmem:[%s2 + $0x28c] sm:$0xf]
  %v196 = vld [vmem:[%s2 + $0x2d4] sm:$0xf]
  %v197 = vld [vmem:[%s2 + $0x31c] sm:$0xf]
  %v198 = vld [vmem:[%s2 + $0x364] sm:$0xf]
  %v199 = vld [vmem:[%s2 + $0x3ac] sm:$0xf]
  %v200 = vld [vmem:[%s2 + $0x3f4] sm:$0xf]
  %v201 = vld [vmem:[%s2 + $0x43c] sm:$0xf]
  %v202 = vpack.c.bf16 %v185, %v184
  %v219 = vunpack.c.l.b16 %v186
  %v220 = vunpack.c.l.b16 %v187
  %v221 = vunpack.c.l.b16 %v188
  %v222 = vunpack.c.l.b16 %v189
  %v223 = vunpack.c.l.b16 %v190
  %v224 = vunpack.c.l.b16 %v191
  %v225 = vunpack.c.l.b16 %v192
  %v226 = vunpack.c.l.b16 %v193
  %v227 = vunpack.c.l.b16 %v194
  %v228 = vunpack.c.l.b16 %v195
  %v229 = vunpack.c.l.b16 %v196
  %v230 = vunpack.c.l.b16 %v197
  %v231 = vunpack.c.l.b16 %v198
  %v232 = vunpack.c.l.b16 %v199
  %v233 = vunpack.c.l.b16 %v200
  %v234 = vunpack.c.l.b16 %v201
  %v235 = vpack.c.b16 %v220, %v219
  %v236 = vpack.c.b16 %v222, %v221
  %v237 = vpack.c.b16 %v224, %v223
  %v238 = vpack.c.b16 %v226, %v225
  %v239 = vpack.c.b16 %v228, %v227
  %v240 = vpack.c.b16 %v230, %v229
  %v241 = vpack.c.b16 %v232, %v231
  %v242 = vpack.c.b16 %v234, %v233
  %251 = vmatprep.subr.bf16.mxu0 0
  %252 = vmatpush1.bf16.msra.mxu0 %v242
  %253 = vmatprep.subr.bf16.mxu0 0
  %254 = vmatpush1.bf16.msra.mxu0 %v241
  %255 = vmatprep.subr.bf16.mxu0 0
  %256 = vmatpush1.bf16.msra.mxu0 %v240
  %257 = vmatprep.subr.bf16.mxu0 0
  %258 = vmatpush1.bf16.msra.mxu0 %v239
  %259 = vmatprep.subr.bf16.mxu0 0
  %260 = vmatpush1.bf16.msra.mxu0 %v238
  %261 = vmatprep.subr.bf16.mxu0 0
  %262 = vmatpush1.bf16.msra.mxu0 %v237
  %263 = vmatprep.subr.bf16.mxu0 0
  %264 = vmatpush1.bf16.msra.mxu0 %v236
  %265 = vmatprep.subr.bf16.mxu0 0
  %266 = vmatpush1.bf16.msra.mxu0 %v235
  %267 = vmatprep.subr.bf16.mxu0 0
  %268 = vmatpush2.bf16.msra.mxu0 0
  %269 = vmatprep.subr.bf16.mxu0 0
  %270 = vmatpush2.bf16.msra.mxu0 0
  %271 = vmatprep.subr.bf16.mxu0 0
  %272 = vmatpush2.bf16.msra.mxu0 0
  %273 = vmatprep.subr.bf16.mxu0 0
  %274 = vmatpush2.bf16.msra.mxu0 0
  %275 = vmatprep.subr.bf16.mxu0 0
  %276 = vmatpush2.bf16.msra.mxu0 0
  %277 = vmatprep.subr.bf16.mxu0 0
  %278 = vmatpush2.bf16.msra.mxu0 0
  %279 = vmatprep.subr.bf16.mxu0 0
  %280 = vmatpush2.bf16.msra.mxu0 0
  %281 = vmatprep.subr.bf16.mxu0 0
  %282 = vmatpush2.bf16.msra.mxu0 0
  %283 = vmatprep.mubr.bf16.mxu0 0
  %284 = vmatmul.mubr.bf16.gmra.mxu0 %v202
  %v285 = vpop.f32.mrf.mxu0
  %v286 = vadd.f32 0.0, %v285
  %v287 = vpop.f32.mrf.mxu0
  %v288 = vpop.f32.mrf.mxu0
  %v289 = vadd.f32 0.0, %v288
  %v290 = vpop.f32.mrf.mxu0
  %291 = vdwg.mxu0
  %v292 = vpack.c.bf16 %v289, %v286
  %s293 = scalar_lea.vmem %s3, 2
  %v294 = vld [vmem:[%s293] sm:$0x1]
  %v296 = vlaneseq
  %v297 = vshrl.u32 %v296, 7
  %v298 = vsub.s32 0, %v297
  %v299 = vrot.slane %v294, %v298
  %301 = vmatprep.subr.bf16.mxu0 0
  %302 = vmatpush1.bf16.msra.mxu0 0
  %303 = vmatprep.subr.bf16.mxu0 0
  %304 = vmatpush1.bf16.msra.mxu0 0
  %305 = vmatprep.subr.bf16.mxu0 0
  %306 = vmatpush1.bf16.msra.mxu0 0
  %307 = vmatprep.subr.bf16.mxu0 0
  %308 = vmatpush1.bf16.msra.mxu0 0
  %309 = vmatprep.subr.bf16.mxu0 0
  %310 = vmatpush1.bf16.msra.mxu0 0
  %311 = vmatprep.subr.bf16.mxu0 0
  %312 = vmatpush1.bf16.msra.mxu0 0
  %313 = vmatprep.subr.bf16.mxu0 0
  %314 = vmatpush1.bf16.msra.mxu0 0
  %315 = vmatprep.subr.bf16.mxu0 0
  %316 = vmatpush1.bf16.msra.mxu0 %v292
  %317 = vmatprep.subr.bf16.mxu0 0
  %318 = vmatpush2.bf16.msra.mxu0 0
  %319 = vmatprep.subr.bf16.mxu0 0
  %320 = vmatpush2.bf16.msra.mxu0 0
  %321 = vmatprep.subr.bf16.mxu0 0
  %322 = vmatpush2.bf16.msra.mxu0 0
  %323 = vmatprep.subr.bf16.mxu0 0
  %324 = vmatpush2.bf16.msra.mxu0 0
  %325 = vmatprep.subr.bf16.mxu0 0
  %326 = vmatpush2.bf16.msra.mxu0 0
  %327 = vmatprep.subr.bf16.mxu0 0
  %328 = vmatpush2.bf16.msra.mxu0 0
  %329 = vmatprep.subr.bf16.mxu0 0
  %330 = vmatpush2.bf16.msra.mxu0 0
  %331 = vmatprep.subr.bf16.mxu0 0
  %332 = vmatpush2.bf16.msra.mxu0 0
  %333 = vmatprep.mubr.bf16.mxu0 0
  %334 = vmatmul.mubr.bf16.gmra.mxu0 %v141
  %v335 = vpop.f32.mrf.mxu0
  %v336 = vadd.f32 %v299, %v335
  %v337 = vpop.f32.mrf.mxu0
  %v338 = vpop.f32.mrf.mxu0
  %v339 = vadd.f32 %v299, %v338
  %v340 = vpop.f32.mrf.mxu0
  %341 = vdwg.mxu0
  %v342 = vld [vmem:[%s2 + $0x8] sm:$0xf]
  %v343 = vld [vmem:[%s2 + $0x50] sm:$0xf]
  %v344 = vld [vmem:[%s2 + $0x98] sm:$0xf]
  %v345 = vld [vmem:[%s2 + $0xe0] sm:$0xf]
  %v346 = vld [vmem:[%s2 + $0x128] sm:$0xf]
  %v347 = vld [vmem:[%s2 + $0x170] sm:$0xf]
  %v348 = vld [vmem:[%s2 + $0x1b8] sm:$0xf]
  %v349 = vld [vmem:[%s2 + $0x200] sm:$0xf]
  %v350 = vld [vmem:[%s2 + $0x248] sm:$0xf]
  %v351 = vld [vmem:[%s2 + $0x290] sm:$0xf]
  %v352 = vld [vmem:[%s2 + $0x2d8] sm:$0xf]
  %v353 = vld [vmem:[%s2 + $0x320] sm:$0xf]
  %v354 = vld [vmem:[%s2 + $0x368] sm:$0xf]
  %v355 = vld [vmem:[%s2 + $0x3b0] sm:$0xf]
  %v356 = vld [vmem:[%s2 + $0x3f8] sm:$0xf]
  %v357 = vld [vmem:[%s2 + $0x440] sm:$0xf]
  %s358 = scalar_lea.vmem %s3, 3
  %v359 = vld [vmem:[%s358] sm:$0x1]
  %v361 = vlaneseq
  %v362 = vshrl.u32 %v361, 7
  %v363 = vsub.s32 0, %v362
  %v364 = vrot.slane %v359, %v363
  %v382 = vunpack.c.l.b16 %v342
  %v383 = vunpack.c.l.b16 %v343
  %v384 = vunpack.c.l.b16 %v344
  %v385 = vunpack.c.l.b16 %v345
  %v386 = vunpack.c.l.b16 %v346
  %v387 = vunpack.c.l.b16 %v347
  %v388 = vunpack.c.l.b16 %v348
  %v389 = vunpack.c.l.b16 %v349
  %v390 = vunpack.c.l.b16 %v350
  %v391 = vunpack.c.l.b16 %v351
  %v392 = vunpack.c.l.b16 %v352
  %v393 = vunpack.c.l.b16 %v353
  %v394 = vunpack.c.l.b16 %v354
  %v395 = vunpack.c.l.b16 %v355
  %v396 = vunpack.c.l.b16 %v356
  %v397 = vunpack.c.l.b16 %v357
  %v398 = vpack.c.b16 %v383, %v382
  %v399 = vpack.c.b16 %v385, %v384
  %v400 = vpack.c.b16 %v387, %v386
  %v401 = vpack.c.b16 %v389, %v388
  %v402 = vpack.c.b16 %v391, %v390
  %v403 = vpack.c.b16 %v393, %v392
  %v404 = vpack.c.b16 %v395, %v394
  %v405 = vpack.c.b16 %v397, %v396
  %414 = vmatprep.subr.bf16.mxu0 0
  %415 = vmatpush1.bf16.msra.mxu0 %v405
  %416 = vmatprep.subr.bf16.mxu0 0
  %417 = vmatpush1.bf16.msra.mxu0 %v404
  %418 = vmatprep.subr.bf16.mxu0 0
  %419 = vmatpush1.bf16.msra.mxu0 %v403
  %420 = vmatprep.subr.bf16.mxu0 0
  %421 = vmatpush1.bf16.msra.mxu0 %v402
  %422 = vmatprep.subr.bf16.mxu0 0
  %423 = vmatpush1.bf16.msra.mxu0 %v401
  %424 = vmatprep.subr.bf16.mxu0 0
  %425 = vmatpush1.bf16.msra.mxu0 %v400
  %426 = vmatprep.subr.bf16.mxu0 0
  %427 = vmatpush1.bf16.msra.mxu0 %v399
  %428 = vmatprep.subr.bf16.mxu0 0
  %429 = vmatpush1.bf16.msra.mxu0 %v398
  %430 = vmatprep.subr.bf16.mxu0 0
  %431 = vmatpush2.bf16.msra.mxu0 0
  %432 = vmatprep.subr.bf16.mxu0 0
  %433 = vmatpush2.bf16.msra.mxu0 0
  %434 = vmatprep.subr.bf16.mxu0 0
  %435 = vmatpush2.bf16.msra.mxu0 0
  %436 = vmatprep.subr.bf16.mxu0 0
  %437 = vmatpush2.bf16.msra.mxu0 0
  %438 = vmatprep.subr.bf16.mxu0 0
  %439 = vmatpush2.bf16.msra.mxu0 0
  %440 = vmatprep.subr.bf16.mxu0 0
  %441 = vmatpush2.bf16.msra.mxu0 0
  %442 = vmatprep.subr.bf16.mxu0 0
  %443 = vmatpush2.bf16.msra.mxu0 0
  %444 = vmatprep.subr.bf16.mxu0 0
  %445 = vmatpush2.bf16.msra.mxu0 0
  %446 = vmatprep.mubr.bf16.mxu0 0
  %447 = vmatmul.mubr.bf16.gmra.mxu0 %v39
  %v448 = vpop.f32.mrf.mxu0
  %v449 = vadd.f32 %v364, %v448
  %v450 = vpop.f32.mrf.mxu0
  %v451 = vpop.f32.mrf.mxu0
  %v452 = vadd.f32 %v364, %v451
  %v453 = vpop.f32.mrf.mxu0
  %454 = vdwg.mxu0
  %v455 = vld [vmem:[%s2 + $0x44] sm:$0xf]
  %v456 = vld [vmem:[%s2 + $0x8c] sm:$0xf]
  %v457 = vld [vmem:[%s2 + $0xd4] sm:$0xf]
  %v458 = vld [vmem:[%s2 + $0x11c] sm:$0xf]
  %v459 = vld [vmem:[%s2 + $0x164] sm:$0xf]
  %v460 = vld [vmem:[%s2 + $0x1ac] sm:$0xf]
  %v461 = vld [vmem:[%s2 + $0x1f4] sm:$0xf]
  %v462 = vld [vmem:[%s2 + $0x23c] sm:$0xf]
  %v463 = vld [vmem:[%s2 + $0x284] sm:$0xf]
  %v464 = vld [vmem:[%s2 + $0x2cc] sm:$0xf]
  %v465 = vld [vmem:[%s2 + $0x314] sm:$0xf]
  %v466 = vld [vmem:[%s2 + $0x35c] sm:$0xf]
  %v467 = vld [vmem:[%s2 + $0x3a4] sm:$0xf]
  %v468 = vld [vmem:[%s2 + $0x3ec] sm:$0xf]
  %v469 = vld [vmem:[%s2 + $0x434] sm:$0xf]
  %v470 = vld [vmem:[%s2 + $0x47c] sm:$0xf]
  %s471 = scalar_lea.vmem %s3, 4
  %v472 = vld [vmem:[%s471] sm:$0x1]
  %s473 = scalar_lea.vmem %s3, 5
  %v474 = vld [vmem:[%s473] sm:$0x1]
  %475 = vadd.xlane.f32.xlu0 %v449
  %v476 = vpop.xlane.xlu0 %475
  %477 = vadd.xlane.f32.xlu0 %v452
  %v478 = vpop.xlane.xlu0 %477
  %479 = vadd.xlane.f32.xlu0 %v336
  %v480 = vpop.xlane.xlu0 %479
  %481 = vadd.xlane.f32.xlu0 %v339
  %v482 = vpop.xlane.xlu0 %481
  %v483 = vmul.f32 %v476, 0.03125
  %v484 = vmul.f32 %v478, 0.03125
  %v485 = vmul.f32 %v480, 0.03125
  %v486 = vmul.f32 %v482, 0.03125
  %v487 = vsub.f32 %v449, %v483
  %v488 = vsub.f32 %v452, %v484
  %v489 = vsub.f32 %v336, %v485
  %v490 = vsub.f32 %v339, %v486
  %v492 = vlaneseq
  %v493 = vshrl.u32 %v492, 7
  %v494 = vsub.s32 0, %v493
  %v495 = vrot.slane %v18, %v494
  %v497 = vmul.f32 %v487, %v495
  %v498 = vmul.f32 %v488, %v495
  %v499 = vmul.f32 %v489, %v495
  %v500 = vmul.f32 %v490, %v495
  %v501 = vmul.f32 %v497, %v497
  %v502 = vmul.f32 %v498, %v498
  %v503 = vmul.f32 %v499, %v499
  %v504 = vmul.f32 %v500, %v500
  %505 = vadd.xlane.f32.xlu0 %v501
  %v506 = vpop.xlane.xlu0 %505
  %507 = vadd.xlane.f32.xlu0 %v502
  %v508 = vpop.xlane.xlu0 %507
  %509 = vadd.xlane.f32.xlu0 %v503
  %v510 = vpop.xlane.xlu0 %509
  %511 = vadd.xlane.f32.xlu0 %v504
  %v512 = vpop.xlane.xlu0 %511
  %v513 = vmul.f32 %v506, 0.03125
  %v514 = vmul.f32 %v508, 0.03125
  %v515 = vmul.f32 %v510, 0.03125
  %v516 = vmul.f32 %v512, 0.03125
  %v517 = vadd.f32 %v513, 1e-05
  %v518 = vadd.f32 %v514, 1e-05
  %v519 = vadd.f32 %v515, 1e-05
  %v520 = vadd.f32 %v516, 1e-05
  %v521 = vrsqrt.pop %v517
  %v522 = vrsqrt.pop %v518
  %v523 = vrsqrt.pop %v519
  %v524 = vrsqrt.pop %v520
  %v525 = vmul.f32 %v497, %v521
  %v526 = vmul.f32 %v498, %v522
  %v527 = vmul.f32 %v499, %v523
  %v528 = vmul.f32 %v500, %v524
  %v530 = vlaneseq
  %v531 = vshrl.u32 %v530, 7
  %v532 = vsub.s32 0, %v531
  %v533 = vrot.slane %v472, %v532
  %v535 = vmul.f32 %v525, %v533
  %v536 = vmul.f32 %v526, %v533
  %v537 = vmul.f32 %v527, %v533
  %v538 = vmul.f32 %v528, %v533
  %v540 = vlaneseq
  %v541 = vshrl.u32 %v540, 7
  %v542 = vsub.s32 0, %v541
  %v543 = vrot.slane %v474, %v542
  %v545 = vadd.f32 %v535, %v543
  %v546 = vadd.f32 %v536, %v543
  %v547 = vadd.f32 %v537, %v543
  %v548 = vadd.f32 %v538, %v543
  %v549 = vld [vmem:[%s2 + $0xc] sm:$0xff]
  %v550 = vld [vmem:[%s2 + $0x14] sm:$0xf]
  %v551 = vld [vmem:[%s2 + $0x54] sm:$0xff]
  %v552 = vld [vmem:[%s2 + $0x5c] sm:$0xf]
  %v553 = vld [vmem:[%s2 + $0x9c] sm:$0xff]
  %v554 = vld [vmem:[%s2 + $0xa4] sm:$0xf]
  %v555 = vld [vmem:[%s2 + $0xe4] sm:$0xff]
  %v556 = vld [vmem:[%s2 + $0xec] sm:$0xf]
  %v557 = vld [vmem:[%s2 + $0x12c] sm:$0xff]
  %v558 = vld [vmem:[%s2 + $0x134] sm:$0xf]
  %v559 = vld [vmem:[%s2 + $0x174] sm:$0xff]
  %v560 = vld [vmem:[%s2 + $0x17c] sm:$0xf]
  %v561 = vld [vmem:[%s2 + $0x1bc] sm:$0xff]
  %v562 = vld [vmem:[%s2 + $0x1c4] sm:$0xf]
  %v563 = vld [vmem:[%s2 + $0x204] sm:$0xff]
  %v564 = vld [vmem:[%s2 + $0x20c] sm:$0xf]
  %v565 = vld [vmem:[%s2 + $0x24c] sm:$0xff]
  %v566 = vld [vmem:[%s2 + $0x254] sm:$0xf]
  %v567 = vld [vmem:[%s2 + $0x294] sm:$0xff]
  %v568 = vld [vmem:[%s2 + $0x29c] sm:$0xf]
  %v569 = vld [vmem:[%s2 + $0x2dc] sm:$0xff]
  %v570 = vld [vmem:[%s2 + $0x2e4] sm:$0xf]
  %v571 = vld [vmem:[%s2 + $0x324] sm:$0xff]
  %v572 = vld [vmem:[%s2 + $0x32c] sm:$0xf]
  %v573 = vld [vmem:[%s2 + $0x36c] sm:$0xff]
  %v574 = vld [vmem:[%s2 + $0x374] sm:$0xf]
  %v575 = vld [vmem:[%s2 + $0x3b4] sm:$0xff]
  %v576 = vld [vmem:[%s2 + $0x3bc] sm:$0xf]
  %v577 = vld [vmem:[%s2 + $0x3fc] sm:$0xff]
  %v578 = vld [vmem:[%s2 + $0x404] sm:$0xf]
  %v579 = vld [vmem:[%s2 + $0x444] sm:$0xff]
  %v580 = vld [vmem:[%s2 + $0x44c] sm:$0xf]
  %v581 = vpack.c.bf16 %v546, %v545
  %v582 = vpack.c.bf16 %v548, %v547
  %v615 = vunpack.c.l.b16 %v549
  %v616 = vunpack.c.h.b16 %v549
  %v617 = vunpack.c.l.b16 %v550
  %v618 = vunpack.c.l.b16 %v551
  %v619 = vunpack.c.h.b16 %v551
  %v620 = vunpack.c.l.b16 %v552
  %v621 = vunpack.c.l.b16 %v553
  %v622 = vunpack.c.h.b16 %v553
  %v623 = vunpack.c.l.b16 %v554
  %v624 = vunpack.c.l.b16 %v555
  %v625 = vunpack.c.h.b16 %v555
  %v626 = vunpack.c.l.b16 %v556
  %v627 = vunpack.c.l.b16 %v557
  %v628 = vunpack.c.h.b16 %v557
  %v629 = vunpack.c.l.b16 %v558
  %v630 = vunpack.c.l.b16 %v559
  %v631 = vunpack.c.h.b16 %v559
  %v632 = vunpack.c.l.b16 %v560
  %v633 = vunpack.c.l.b16 %v561
  %v634 = vunpack.c.h.b16 %v561
  %v635 = vunpack.c.l.b16 %v562
  %v636 = vunpack.c.l.b16 %v563
  %v637 = vunpack.c.h.b16 %v563
  %v638 = vunpack.c.l.b16 %v564
  %v639 = vunpack.c.l.b16 %v565
  %v640 = vunpack.c.h.b16 %v565
  %v641 = vunpack.c.l.b16 %v566
  %v642 = vunpack.c.l.b16 %v567
  %v643 = vunpack.c.h.b16 %v567
  %v644 = vunpack.c.l.b16 %v568
  %v645 = vunpack.c.l.b16 %v569
  %v646 = vunpack.c.h.b16 %v569
  %v647 = vunpack.c.l.b16 %v570
  %v648 = vunpack.c.l.b16 %v571
  %v649 = vunpack.c.h.b16 %v571
  %v650 = vunpack.c.l.b16 %v572
  %v651 = vunpack.c.l.b16 %v573
  %v652 = vunpack.c.h.b16 %v573
  %v653 = vunpack.c.l.b16 %v574
  %v654 = vunpack.c.l.b16 %v575
  %v655 = vunpack.c.h.b16 %v575
  %v656 = vunpack.c.l.b16 %v576
  %v657 = vunpack.c.l.b16 %v577
  %v658 = vunpack.c.h.b16 %v577
  %v659 = vunpack.c.l.b16 %v578
  %v660 = vunpack.c.l.b16 %v579
  %v661 = vunpack.c.h.b16 %v579
  %v662 = vunpack.c.l.b16 %v580
  %v663 = vpack.c.b16 %v618, %v615
  %v664 = vpack.c.b16 %v619, %v616
  %v665 = vpack.c.b16 %v620, %v617
  %v666 = vpack.c.b16 %v624, %v621
  %v667 = vpack.c.b16 %v625, %v622
  %v668 = vpack.c.b16 %v626, %v623
  %v669 = vpack.c.b16 %v630, %v627
  %v670 = vpack.c.b16 %v631, %v628
  %v671 = vpack.c.b16 %v632, %v629
  %v672 = vpack.c.b16 %v636, %v633
  %v673 = vpack.c.b16 %v637, %v634
  %v674 = vpack.c.b16 %v638, %v635
  %v675 = vpack.c.b16 %v642, %v639
  %v676 = vpack.c.b16 %v643, %v640
  %v677 = vpack.c.b16 %v644, %v641
  %v678 = vpack.c.b16 %v648, %v645
  %v679 = vpack.c.b16 %v649, %v646
  %v680 = vpack.c.b16 %v650, %v647
  %v681 = vpack.c.b16 %v654, %v651
  %v682 = vpack.c.b16 %v655, %v652
  %v683 = vpack.c.b16 %v656, %v653
  %v684 = vpack.c.b16 %v660, %v657
  %v685 = vpack.c.b16 %v661, %v658
  %v686 = vpack.c.b16 %v662, %v659
  %711 = vmatprep.subr.bf16.mxu0 %v685
  %712 = vmatpush1.bf16.msra.mxu0 %v684
  %713 = vmatprep.subr.bf16.mxu0 %v682
  %714 = vmatpush1.bf16.msra.mxu0 %v681
  %715 = vmatprep.subr.bf16.mxu0 %v679
  %716 = vmatpush1.bf16.msra.mxu0 %v678
  %717 = vmatprep.subr.bf16.mxu0 %v676
  %718 = vmatpush1.bf16.msra.mxu0 %v675
  %719 = vmatprep.subr.bf16.mxu0 %v673
  %720 = vmatpush1.bf16.msra.mxu0 %v672
  %721 = vmatprep.subr.bf16.mxu0 %v670
  %722 = vmatpush1.bf16.msra.mxu0 %v669
  %723 = vmatprep.subr.bf16.mxu0 %v667
  %724 = vmatpush1.bf16.msra.mxu0 %v666
  %725 = vmatprep.subr.bf16.mxu0 %v664
  %726 = vmatpush1.bf16.msra.mxu0 %v663
  %727 = vmatprep.subr.bf16.mxu0 0
  %728 = vmatpush2.bf16.msra.mxu0 0
  %729 = vmatprep.subr.bf16.mxu0 0
  %730 = vmatpush2.bf16.msra.mxu0 0
  %731 = vmatprep.subr.bf16.mxu0 0
  %732 = vmatpush2.bf16.msra.mxu0 0
  %733 = vmatprep.subr.bf16.mxu0 0
  %734 = vmatpush2.bf16.msra.mxu0 0
  %735 = vmatprep.subr.bf16.mxu0 0
  %736 = vmatpush2.bf16.msra.mxu0 0
  %737 = vmatprep.subr.bf16.mxu0 0
  %738 = vmatpush2.bf16.msra.mxu0 0
  %739 = vmatprep.subr.bf16.mxu0 0
  %740 = vmatpush2.bf16.msra.mxu0 0
  %741 = vmatprep.subr.bf16.mxu0 0
  %742 = vmatpush2.bf16.msra.mxu0 0
  %743 = vmatprep.mubr.bf16.mxu0 0
  %744 = vmatmul.mubr.bf16.gmra.mxu0 %v581
  %v745 = vpop.f32.mrf.mxu0
  %v746 = vadd.f32 0.0, %v745
  %v747 = vpop.f32.mrf.mxu0
  %v748 = vadd.f32 0.0, %v747
  %v749 = vpop.f32.mrf.mxu0
  %v750 = vadd.f32 0.0, %v749
  %v751 = vpop.f32.mrf.mxu0
  %v752 = vadd.f32 0.0, %v751
  %753 = vmatprep.mubr.bf16.mxu0 0
  %754 = vmatmul.mubr.bf16.gmra.mxu0 %v582
  %v755 = vpop.f32.mrf.mxu0
  %v756 = vadd.f32 0.0, %v755
  %v757 = vpop.f32.mrf.mxu0
  %v758 = vadd.f32 0.0, %v757
  %v759 = vpop.f32.mrf.mxu0
  %v760 = vadd.f32 0.0, %v759
  %v761 = vpop.f32.mrf.mxu0
  %v762 = vadd.f32 0.0, %v761
  %763 = vdwg.mxu0
  %764 = vmatprep.subr.bf16.mxu0 0
  %765 = vmatpush1.bf16.msra.mxu0 %v686
  %766 = vmatprep.subr.bf16.mxu0 0
  %767 = vmatpush1.bf16.msra.mxu0 %v683
  %768 = vmatprep.subr.bf16.mxu0 0
  %769 = vmatpush1.bf16.msra.mxu0 %v680
  %770 = vmatprep.subr.bf16.mxu0 0
  %771 = vmatpush1.bf16.msra.mxu0 %v677
  %772 = vmatprep.subr.bf16.mxu0 0
  %773 = vmatpush1.bf16.msra.mxu0 %v674
  %774 = vmatprep.subr.bf16.mxu0 0
  %775 = vmatpush1.bf16.msra.mxu0 %v671
  %776 = vmatprep.subr.bf16.mxu0 0
  %777 = vmatpush1.bf16.msra.mxu0 %v668
  %778 = vmatprep.subr.bf16.mxu0 0
  %779 = vmatpush1.bf16.msra.mxu0 %v665
  %780 = vmatprep.subr.bf16.mxu0 0
  %781 = vmatpush2.bf16.msra.mxu0 0
  %782 = vmatprep.subr.bf16.mxu0 0
  %783 = vmatpush2.bf16.msra.mxu0 0
  %784 = vmatprep.subr.bf16.mxu0 0
  %785 = vmatpush2.bf16.msra.mxu0 0
  %786 = vmatprep.subr.bf16.mxu0 0
  %787 = vmatpush2.bf16.msra.mxu0 0
  %788 = vmatprep.subr.bf16.mxu0 0
  %789 = vmatpush2.bf16.msra.mxu0 0
  %790 = vmatprep.subr.bf16.mxu0 0
  %791 = vmatpush2.bf16.msra.mxu0 0
  %792 = vmatprep.subr.bf16.mxu0 0
  %793 = vmatpush2.bf16.msra.mxu0 0
  %794 = vmatprep.subr.bf16.mxu0 0
  %795 = vmatpush2.bf16.msra.mxu0 0
  %796 = vmatprep.mubr.bf16.mxu0 0
  %797 = vmatmul.mubr.bf16.gmra.mxu0 %v581
  %v798 = vpop.f32.mrf.mxu0
  %v799 = vadd.f32 0.0, %v798
  %v800 = vpop.f32.mrf.mxu0
  %v801 = vpop.f32.mrf.mxu0
  %v802 = vadd.f32 0.0, %v801
  %v803 = vpop.f32.mrf.mxu0
  %804 = vmatprep.mubr.bf16.mxu0 0
  %805 = vmatmul.mubr.bf16.gmra.mxu0 %v582
  %v806 = vpop.f32.mrf.mxu0
  %v807 = vadd.f32 0.0, %v806
  %v808 = vpop.f32.mrf.mxu0
  %v809 = vpop.f32.mrf.mxu0
  %v810 = vadd.f32 0.0, %v809
  %v811 = vpop.f32.mrf.mxu0
  %812 = vdwg.mxu0
  %s813 = scalar_lea.vmem %s3, 6
  %v814 = vld [vmem:[%s813] sm:$0x1]
  %v816 = vlaneseq
  %v817 = vshrl.u32 %v816, 7
  %v818 = vsub.s32 0, %v817
  %v819 = vrot.slane %v814, %v818
  %v821 = vadd.f32 %v746, %v819
  %v822 = vadd.f32 %v750, %v819
  %v823 = vadd.f32 %v756, %v819
  %v824 = vadd.f32 %v760, %v819
  %s825 = scalar_lea.vmem %s3, 7
  %v826 = vld [vmem:[%s825] sm:$0x1]
  %v828 = vlaneseq
  %v829 = vshrl.u32 %v828, 7
  %v830 = vsub.s32 0, %v829
  %v831 = vrot.slane %v826, %v830
  %v833 = vadd.f32 %v748, %v831
  %v834 = vadd.f32 %v752, %v831
  %v835 = vadd.f32 %v758, %v831
  %v836 = vadd.f32 %v762, %v831
  %s837 = scalar_lea.vmem %s3, 8
  %v838 = vld [vmem:[%s837] sm:$0x1]
  %v840 = vlaneseq
  %v841 = vshrl.u32 %v840, 7
  %v842 = vsub.s32 0, %v841
  %v843 = vrot.slane %v838, %v842
  %v845 = vadd.f32 %v799, %v843
  %v846 = vadd.f32 %v802, %v843
  %v847 = vadd.f32 %v807, %v843
  %v848 = vadd.f32 %v810, %v843
  %v849 = vmul.f32 %v821, %v833
  %v850 = vmul.f32 %v822, %v834
  %v851 = vmul.f32 %v821, %v835
  %v852 = vmul.f32 %v822, %v836
  %v853 = vmul.f32 %v823, %v833
  %v854 = vmul.f32 %v824, %v834
  %v855 = vmul.f32 %v823, %v835
  %v856 = vmul.f32 %v824, %v836
  %v857 = vpack.c.bf16 %v850, %v849
  %v858 = vpack.c.bf16 %v852, %v851
  %v859 = vpack.c.bf16 %v854, %v853
  %v860 = vpack.c.bf16 %v856, %v855
  %v877 = vunpack.c.l.b16 %v455
  %v878 = vunpack.c.l.b16 %v456
  %v879 = vunpack.c.l.b16 %v457
  %v880 = vunpack.c.l.b16 %v458
  %v881 = vunpack.c.l.b16 %v459
  %v882 = vunpack.c.l.b16 %v460
  %v883 = vunpack.c.l.b16 %v461
  %v884 = vunpack.c.l.b16 %v462
  %v885 = vunpack.c.l.b16 %v463
  %v886 = vunpack.c.l.b16 %v464
  %v887 = vunpack.c.l.b16 %v465
  %v888 = vunpack.c.l.b16 %v466
  %v889 = vunpack.c.l.b16 %v467
  %v890 = vunpack.c.l.b16 %v468
  %v891 = vunpack.c.l.b16 %v469
  %v892 = vunpack.c.l.b16 %v470
  %v893 = vpack.c.b16 %v878, %v877
  %v894 = vpack.c.b16 %v880, %v879
  %v895 = vpack.c.b16 %v882, %v881
  %v896 = vpack.c.b16 %v884, %v883
  %v897 = vpack.c.b16 %v886, %v885
  %v898 = vpack.c.b16 %v888, %v887
  %v899 = vpack.c.b16 %v890, %v889
  %v900 = vpack.c.b16 %v892, %v891
  %909 = vmatprep.subr.bf16.mxu0 0
  %910 = vmatpush1.bf16.msra.mxu0 %v900
  %911 = vmatprep.subr.bf16.mxu0 0
  %912 = vmatpush1.bf16.msra.mxu0 %v899
  %913 = vmatprep.subr.bf16.mxu0 0
  %914 = vmatpush1.bf16.msra.mxu0 %v898
  %915 = vmatprep.subr.bf16.mxu0 0
  %916 = vmatpush1.bf16.msra.mxu0 %v897
  %917 = vmatprep.subr.bf16.mxu0 0
  %918 = vmatpush1.bf16.msra.mxu0 %v896
  %919 = vmatprep.subr.bf16.mxu0 0
  %920 = vmatpush1.bf16.msra.mxu0 %v895
  %921 = vmatprep.subr.bf16.mxu0 0
  %922 = vmatpush1.bf16.msra.mxu0 %v894
  %923 = vmatprep.subr.bf16.mxu0 0
  %924 = vmatpush1.bf16.msra.mxu0 %v893
  %925 = vmatprep.subr.bf16.mxu0 0
  %926 = vmatpush2.bf16.msra.mxu0 0
  %927 = vmatprep.subr.bf16.mxu0 0
  %928 = vmatpush2.bf16.msra.mxu0 0
  %929 = vmatprep.subr.bf16.mxu0 0
  %930 = vmatpush2.bf16.msra.mxu0 0
  %931 = vmatprep.subr.bf16.mxu0 0
  %932 = vmatpush2.bf16.msra.mxu0 0
  %933 = vmatprep.subr.bf16.mxu0 0
  %934 = vmatpush2.bf16.msra.mxu0 0
  %935 = vmatprep.subr.bf16.mxu0 0
  %936 = vmatpush2.bf16.msra.mxu0 0
  %937 = vmatprep.subr.bf16.mxu0 0
  %938 = vmatpush2.bf16.msra.mxu0 0
  %939 = vmatprep.subr.bf16.mxu0 0
  %940 = vmatpush2.bf16.msra.mxu0 0
  %941 = vmatprep.mubr.bf16.mxu0 0
  %942 = vmatmul.mubr.bf16.gmra.mxu0 %v857
  %v943 = vpop.f32.mrf.mxu0
  %v944 = vadd.f32 0.0, %v943
  %v945 = vpop.f32.mrf.mxu0
  %v946 = vpop.f32.mrf.mxu0
  %v947 = vadd.f32 0.0, %v946
  %v948 = vpop.f32.mrf.mxu0
  %949 = vmatprep.mubr.bf16.mxu0 0
  %950 = vmatmul.mubr.bf16.gmra.mxu0 %v858
  %v951 = vpop.f32.mrf.mxu0
  %v952 = vadd.f32 0.0, %v951
  %v953 = vpop.f32.mrf.mxu0
  %v954 = vpop.f32.mrf.mxu0
  %v955 = vadd.f32 0.0, %v954
  %v956 = vpop.f32.mrf.mxu0
  %957 = vmatprep.mubr.bf16.mxu0 0
  %958 = vmatmul.mubr.bf16.gmra.mxu0 %v859
  %v959 = vpop.f32.mrf.mxu0
  %v960 = vadd.f32 0.0, %v959
  %v961 = vpop.f32.mrf.mxu0
  %v962 = vpop.f32.mrf.mxu0
  %v963 = vadd.f32 0.0, %v962
  %v964 = vpop.f32.mrf.mxu0
  %965 = vmatprep.mubr.bf16.mxu0 0
  %966 = vmatmul.mubr.bf16.gmra.mxu0 %v860
  %v967 = vpop.f32.mrf.mxu0
  %v968 = vadd.f32 0.0, %v967
  %v969 = vpop.f32.mrf.mxu0
  %v970 = vpop.f32.mrf.mxu0
  %v971 = vadd.f32 0.0, %v970
  %v972 = vpop.f32.mrf.mxu0
  %973 = vdwg.mxu0
  %v974 = vmul.f32 %v944, 0.25
  %v975 = vmul.f32 %v947, 0.25
  %v976 = vmul.f32 %v952, 0.25
  %v977 = vmul.f32 %v955, 0.25
  %v978 = vmul.f32 %v960, 0.25
  %v979 = vmul.f32 %v963, 0.25
  %v980 = vmul.f32 %v968, 0.25
  %v981 = vmul.f32 %v971, 0.25
  %v982 = vmax.f32 %v974, %v976
  %v983 = vmax.f32 %v975, %v977
  %v984 = vsub.f32 %v974, %v982
  %v985 = vsub.f32 %v975, %v983
  %v986 = vmul.f32 %v984, 1.442695
  %v987 = vpow.pop %v986
  %v988 = vmul.f32 %v985, 1.442695
  %v989 = vpow.pop %v988
  %v990 = vsub.f32 %v976, %v982
  %v991 = vsub.f32 %v977, %v983
  %v992 = vmul.f32 %v990, 1.442695
  %v993 = vpow.pop %v992
  %v994 = vmul.f32 %v991, 1.442695
  %v995 = vpow.pop %v994
  %v996 = vmul.f32 %v987, %v845
  %v997 = vmul.f32 %v989, %v846
  %v998 = vmul.f32 %v993, %v847
  %v999 = vmul.f32 %v995, %v848
  %v1000 = vadd.f32 %v996, %v998
  %v1001 = vadd.f32 %v997, %v999
  %v1002 = vadd.f32 %v987, %v993
  %v1003 = vadd.f32 %v989, %v995
  %v1004 = vrcp.pop %v1002
  %v1005 = vmul.f32 %v1000, %v1004
  %v1006 = vrcp.pop %v1003
  %v1007 = vmul.f32 %v1001, %v1006
  %v1008 = vmax.f32 %v978, %v980
  %v1009 = vmax.f32 %v979, %v981
  %v1010 = vsub.f32 %v978, %v1008
  %v1011 = vsub.f32 %v979, %v1009
  %v1012 = vmul.f32 %v1010, 1.442695
  %v1013 = vpow.pop %v1012
  %v1014 = vmul.f32 %v1011, 1.442695
  %v1015 = vpow.pop %v1014
  %v1016 = vsub.f32 %v980, %v1008
  %v1017 = vsub.f32 %v981, %v1009
  %v1018 = vmul.f32 %v1016, 1.442695
  %v1019 = vpow.pop %v1018
  %v1020 = vmul.f32 %v1017, 1.442695
  %v1021 = vpow.pop %v1020
  %v1022 = vmul.f32 %v1013, %v845
  %v1023 = vmul.f32 %v1015, %v846
  %v1024 = vmul.f32 %v1019, %v847
  %v1025 = vmul.f32 %v1021, %v848
  %v1026 = vadd.f32 %v1022, %v1024
  %v1027 = vadd.f32 %v1023, %v1025
  %v1028 = vadd.f32 %v1013, %v1019
  %v1029 = vadd.f32 %v1015, %v1021
  %v1030 = vrcp.pop %v1028
  %v1031 = vmul.f32 %v1026, %v1030
  %v1032 = vrcp.pop %v1029
  %v1033 = vmul.f32 %v1027, %v1032
  %v1034 = vld [vmem:[%s2 + $0x18] sm:$0xf]
  %v1035 = vld [vmem:[%s2 + $0x60] sm:$0xf]
  %v1036 = vld [vmem:[%s2 + $0xa8] sm:$0xf]
  %v1037 = vld [vmem:[%s2 + $0xf0] sm:$0xf]
  %v1038 = vld [vmem:[%s2 + $0x138] sm:$0xf]
  %v1039 = vld [vmem:[%s2 + $0x180] sm:$0xf]
  %v1040 = vld [vmem:[%s2 + $0x1c8] sm:$0xf]
  %v1041 = vld [vmem:[%s2 + $0x210] sm:$0xf]
  %v1042 = vld [vmem:[%s2 + $0x258] sm:$0xf]
  %v1043 = vld [vmem:[%s2 + $0x2a0] sm:$0xf]
  %v1044 = vld [vmem:[%s2 + $0x2e8] sm:$0xf]
  %v1045 = vld [vmem:[%s2 + $0x330] sm:$0xf]
  %v1046 = vld [vmem:[%s2 + $0x378] sm:$0xf]
  %v1047 = vld [vmem:[%s2 + $0x3c0] sm:$0xf]
  %v1048 = vld [vmem:[%s2 + $0x408] sm:$0xf]
  %v1049 = vld [vmem:[%s2 + $0x450] sm:$0xf]
  %v1050 = vpack.c.bf16 %v1007, %v1005
  %v1051 = vpack.c.bf16 %v1033, %v1031
  %v1068 = vunpack.c.l.b16 %v1034
  %v1069 = vunpack.c.l.b16 %v1035
  %v1070 = vunpack.c.l.b16 %v1036
  %v1071 = vunpack.c.l.b16 %v1037
  %v1072 = vunpack.c.l.b16 %v1038
  %v1073 = vunpack.c.l.b16 %v1039
  %v1074 = vunpack.c.l.b16 %v1040
  %v1075 = vunpack.c.l.b16 %v1041
  %v1076 = vunpack.c.l.b16 %v1042
  %v1077 = vunpack.c.l.b16 %v1043
  %v1078 = vunpack.c.l.b16 %v1044
  %v1079 = vunpack.c.l.b16 %v1045
  %v1080 = vunpack.c.l.b16 %v1046
  %v1081 = vunpack.c.l.b16 %v1047
  %v1082 = vunpack.c.l.b16 %v1048
  %v1083 = vunpack.c.l.b16 %v1049
  %v1084 = vpack.c.b16 %v1069, %v1068
  %v1085 = vpack.c.b16 %v1071, %v1070
  %v1086 = vpack.c.b16 %v1073, %v1072
  %v1087 = vpack.c.b16 %v1075, %v1074
  %v1088 = vpack.c.b16 %v1077, %v1076
  %v1089 = vpack.c.b16 %v1079, %v1078
  %v1090 = vpack.c.b16 %v1081, %v1080
  %v1091 = vpack.c.b16 %v1083, %v1082
  %1100 = vmatprep.subr.bf16.mxu0 0
  %1101 = vmatpush1.bf16.msra.mxu0 %v1091
  %1102 = vmatprep.subr.bf16.mxu0 0
  %1103 = vmatpush1.bf16.msra.mxu0 %v1090
  %1104 = vmatprep.subr.bf16.mxu0 0
  %1105 = vmatpush1.bf16.msra.mxu0 %v1089
  %1106 = vmatprep.subr.bf16.mxu0 0
  %1107 = vmatpush1.bf16.msra.mxu0 %v1088
  %1108 = vmatprep.subr.bf16.mxu0 0
  %1109 = vmatpush1.bf16.msra.mxu0 %v1087
  %1110 = vmatprep.subr.bf16.mxu0 0
  %1111 = vmatpush1.bf16.msra.mxu0 %v1086
  %1112 = vmatprep.subr.bf16.mxu0 0
  %1113 = vmatpush1.bf16.msra.mxu0 %v1085
  %1114 = vmatprep.subr.bf16.mxu0 0
  %1115 = vmatpush1.bf16.msra.mxu0 %v1084
  %1116 = vmatprep.subr.bf16.mxu0 0
  %1117 = vmatpush2.bf16.msra.mxu0 0
  %1118 = vmatprep.subr.bf16.mxu0 0
  %1119 = vmatpush2.bf16.msra.mxu0 0
  %1120 = vmatprep.subr.bf16.mxu0 0
  %1121 = vmatpush2.bf16.msra.mxu0 0
  %1122 = vmatprep.subr.bf16.mxu0 0
  %1123 = vmatpush2.bf16.msra.mxu0 0
  %1124 = vmatprep.subr.bf16.mxu0 0
  %1125 = vmatpush2.bf16.msra.mxu0 0
  %1126 = vmatprep.subr.bf16.mxu0 0
  %1127 = vmatpush2.bf16.msra.mxu0 0
  %1128 = vmatprep.subr.bf16.mxu0 0
  %1129 = vmatpush2.bf16.msra.mxu0 0
  %1130 = vmatprep.subr.bf16.mxu0 0
  %1131 = vmatpush2.bf16.msra.mxu0 0
  %1132 = vmatprep.mubr.bf16.mxu0 0
  %1133 = vmatmul.mubr.bf16.gmra.mxu0 %v1050
  %v1134 = vpop.f32.mrf.mxu0
  %v1135 = vadd.f32 0.0, %v1134
  %v1136 = vpop.f32.mrf.mxu0
  %v1137 = vpop.f32.mrf.mxu0
  %v1138 = vadd.f32 0.0, %v1137
  %v1139 = vpop.f32.mrf.mxu0
  %1140 = vmatprep.mubr.bf16.mxu0 0
  %1141 = vmatmul.mubr.bf16.gmra.mxu0 %v1051
  %v1142 = vpop.f32.mrf.mxu0
  %v1143 = vadd.f32 0.0, %v1142
  %v1144 = vpop.f32.mrf.mxu0
  %v1145 = vpop.f32.mrf.mxu0
  %v1146 = vadd.f32 0.0, %v1145
  %v1147 = vpop.f32.mrf.mxu0
  %1148 = vdwg.mxu0
  %v1149 = vadd.f32 %v449, %v1135
  %v1150 = vadd.f32 %v452, %v1138
  %v1151 = vadd.f32 %v336, %v1143
  %v1152 = vadd.f32 %v339, %v1146
  %s1153 = scalar_lea.vmem %s3, 9
  %v1154 = vld [vmem:[%s1153] sm:$0x1]
  %v1156 = vlaneseq
  %v1157 = vshrl.u32 %v1156, 7
  %v1158 = vsub.s32 0, %v1157
  %v1159 = vrot.slane %v1154, %v1158
  %v1161 = vadd.f32 %v1149, %v1159
  %v1162 = vadd.f32 %v1150, %v1159
  %v1163 = vadd.f32 %v1151, %v1159
  %v1164 = vadd.f32 %v1152, %v1159
  %s1165 = scalar_lea.vmem %s3, 10
  %v1166 = vld [vmem:[%s1165] sm:$0x1]
  %s1167 = scalar_lea.vmem %s3, 11
  %v1168 = vld [vmem:[%s1167] sm:$0x1]
  %1169 = vadd.xlane.f32.xlu0 %v1161
  %v1170 = vpop.xlane.xlu0 %1169
  %1171 = vadd.xlane.f32.xlu0 %v1162
  %v1172 = vpop.xlane.xlu0 %1171
  %1173 = vadd.xlane.f32.xlu0 %v1163
  %v1174 = vpop.xlane.xlu0 %1173
  %1175 = vadd.xlane.f32.xlu0 %v1164
  %v1176 = vpop.xlane.xlu0 %1175
  %v1177 = vmul.f32 %v1170, 0.03125
  %v1178 = vmul.f32 %v1172, 0.03125
  %v1179 = vmul.f32 %v1174, 0.03125
  %v1180 = vmul.f32 %v1176, 0.03125
  %v1181 = vsub.f32 %v1161, %v1177
  %v1182 = vsub.f32 %v1162, %v1178
  %v1183 = vsub.f32 %v1163, %v1179
  %v1184 = vsub.f32 %v1164, %v1180
  %v1185 = vmul.f32 %v1181, %v495
  %v1186 = vmul.f32 %v1182, %v495
  %v1187 = vmul.f32 %v1183, %v495
  %v1188 = vmul.f32 %v1184, %v495
  %v1189 = vmul.f32 %v1185, %v1185
  %v1190 = vmul.f32 %v1186, %v1186
  %v1191 = vmul.f32 %v1187, %v1187
  %v1192 = vmul.f32 %v1188, %v1188
  %1193 = vadd.xlane.f32.xlu0 %v1189
  %v1194 = vpop.xlane.xlu0 %1193
  %1195 = vadd.xlane.f32.xlu0 %v1190
  %v1196 = vpop.xlane.xlu0 %1195
  %1197 = vadd.xlane.f32.xlu0 %v1191
  %v1198 = vpop.xlane.xlu0 %1197
  %1199 = vadd.xlane.f32.xlu0 %v1192
  %v1200 = vpop.xlane.xlu0 %1199
  %v1201 = vmul.f32 %v1194, 0.03125
  %v1202 = vmul.f32 %v1196, 0.03125
  %v1203 = vmul.f32 %v1198, 0.03125
  %v1204 = vmul.f32 %v1200, 0.03125
  %v1205 = vadd.f32 %v1201, 1e-05
  %v1206 = vadd.f32 %v1202, 1e-05
  %v1207 = vadd.f32 %v1203, 1e-05
  %v1208 = vadd.f32 %v1204, 1e-05
  %v1209 = vrsqrt.pop %v1205
  %v1210 = vrsqrt.pop %v1206
  %v1211 = vrsqrt.pop %v1207
  %v1212 = vrsqrt.pop %v1208
  %v1213 = vmul.f32 %v1185, %v1209
  %v1214 = vmul.f32 %v1186, %v1210
  %v1215 = vmul.f32 %v1187, %v1211
  %v1216 = vmul.f32 %v1188, %v1212
  %v1218 = vlaneseq
  %v1219 = vshrl.u32 %v1218, 7
  %v1220 = vsub.s32 0, %v1219
  %v1221 = vrot.slane %v1166, %v1220
  %v1223 = vmul.f32 %v1213, %v1221
  %v1224 = vmul.f32 %v1214, %v1221
  %v1225 = vmul.f32 %v1215, %v1221
  %v1226 = vmul.f32 %v1216, %v1221
  %v1228 = vlaneseq
  %v1229 = vshrl.u32 %v1228, 7
  %v1230 = vsub.s32 0, %v1229
  %v1231 = vrot.slane %v1168, %v1230
  %v1233 = vadd.f32 %v1223, %v1231
  %v1234 = vadd.f32 %v1224, %v1231
  %v1235 = vadd.f32 %v1225, %v1231
  %v1236 = vadd.f32 %v1226, %v1231
  %v1237 = vld [vmem:[%s2 + $0x1c] sm:$0xf]
  %v1238 = vld [vmem:[%s2 + $0x64] sm:$0xf]
  %v1239 = vld [vmem:[%s2 + $0xac] sm:$0xf]
  %v1240 = vld [vmem:[%s2 + $0xf4] sm:$0xf]
  %v1241 = vld [vmem:[%s2 + $0x13c] sm:$0xf]
  %v1242 = vld [vmem:[%s2 + $0x184] sm:$0xf]
  %v1243 = vld [vmem:[%s2 + $0x1cc] sm:$0xf]
  %v1244 = vld [vmem:[%s2 + $0x214] sm:$0xf]
  %v1245 = vld [vmem:[%s2 + $0x25c] sm:$0xf]
  %v1246 = vld [vmem:[%s2 + $0x2a4] sm:$0xf]
  %v1247 = vld [vmem:[%s2 + $0x2ec] sm:$0xf]
  %v1248 = vld [vmem:[%s2 + $0x334] sm:$0xf]
  %v1249 = vld [vmem:[%s2 + $0x37c] sm:$0xf]
  %v1250 = vld [vmem:[%s2 + $0x3c4] sm:$0xf]
  %v1251 = vld [vmem:[%s2 + $0x40c] sm:$0xf]
  %v1252 = vld [vmem:[%s2 + $0x454] sm:$0xf]
  %v1253 = vpack.c.bf16 %v1234, %v1233
  %v1254 = vpack.c.bf16 %v1236, %v1235
  %s1255 = scalar_lea.vmem %s3, 12
  %v1256 = vld [vmem:[%s1255] sm:$0x1]
  %v1258 = vlaneseq
  %v1259 = vshrl.u32 %v1258, 7
  %v1260 = vsub.s32 0, %v1259
  %v1261 = vrot.slane %v1256, %v1260
  %v1279 = vunpack.c.l.b16 %v1237
  %v1280 = vunpack.c.l.b16 %v1238
  %v1281 = vunpack.c.l.b16 %v1239
  %v1282 = vunpack.c.l.b16 %v1240
  %v1283 = vunpack.c.l.b16 %v1241
  %v1284 = vunpack.c.l.b16 %v1242
  %v1285 = vunpack.c.l.b16 %v1243
  %v1286 = vunpack.c.l.b16 %v1244
  %v1287 = vunpack.c.l.b16 %v1245
  %v1288 = vunpack.c.l.b16 %v1246
  %v1289 = vunpack.c.l.b16 %v1247
  %v1290 = vunpack.c.l.b16 %v1248
  %v1291 = vunpack.c.l.b16 %v1249
  %v1292 = vunpack.c.l.b16 %v1250
  %v1293 = vunpack.c.l.b16 %v1251
  %v1294 = vunpack.c.l.b16 %v1252
  %v1295 = vpack.c.b16 %v1280, %v1279
  %v1296 = vpack.c.b16 %v1282, %v1281
  %v1297 = vpack.c.b16 %v1284, %v1283
  %v1298 = vpack.c.b16 %v1286, %v1285
  %v1299 = vpack.c.b16 %v1288, %v1287
  %v1300 = vpack.c.b16 %v1290, %v1289
  %v1301 = vpack.c.b16 %v1292, %v1291
  %v1302 = vpack.c.b16 %v1294, %v1293
  %1311 = vmatprep.subr.bf16.mxu0 0
  %1312 = vmatpush1.bf16.msra.mxu0 %v1302
  %1313 = vmatprep.subr.bf16.mxu0 0
  %1314 = vmatpush1.bf16.msra.mxu0 %v1301
  %1315 = vmatprep.subr.bf16.mxu0 0
  %1316 = vmatpush1.bf16.msra.mxu0 %v1300
  %1317 = vmatprep.subr.bf16.mxu0 0
  %1318 = vmatpush1.bf16.msra.mxu0 %v1299
  %1319 = vmatprep.subr.bf16.mxu0 0
  %1320 = vmatpush1.bf16.msra.mxu0 %v1298
  %1321 = vmatprep.subr.bf16.mxu0 0
  %1322 = vmatpush1.bf16.msra.mxu0 %v1297
  %1323 = vmatprep.subr.bf16.mxu0 0
  %1324 = vmatpush1.bf16.msra.mxu0 %v1296
  %1325 = vmatprep.subr.bf16.mxu0 0
  %1326 = vmatpush1.bf16.msra.mxu0 %v1295
  %1327 = vmatprep.subr.bf16.mxu0 0
  %1328 = vmatpush2.bf16.msra.mxu0 0
  %1329 = vmatprep.subr.bf16.mxu0 0
  %1330 = vmatpush2.bf16.msra.mxu0 0
  %1331 = vmatprep.subr.bf16.mxu0 0
  %1332 = vmatpush2.bf16.msra.mxu0 0
  %1333 = vmatprep.subr.bf16.mxu0 0
  %1334 = vmatpush2.bf16.msra.mxu0 0
  %1335 = vmatprep.subr.bf16.mxu0 0
  %1336 = vmatpush2.bf16.msra.mxu0 0
  %1337 = vmatprep.subr.bf16.mxu0 0
  %1338 = vmatpush2.bf16.msra.mxu0 0
  %1339 = vmatprep.subr.bf16.mxu0 0
  %1340 = vmatpush2.bf16.msra.mxu0 0
  %1341 = vmatprep.subr.bf16.mxu0 0
  %1342 = vmatpush2.bf16.msra.mxu0 0
  %1343 = vmatprep.mubr.bf16.mxu0 0
  %1344 = vmatmul.mubr.bf16.gmra.mxu0 %v1253
  %v1345 = vpop.f32.mrf.mxu0
  %v1346 = vadd.f32 %v1261, %v1345
  %v1347 = vpop.f32.mrf.mxu0
  %v1348 = vpop.f32.mrf.mxu0
  %v1349 = vadd.f32 %v1261, %v1348
  %v1350 = vpop.f32.mrf.mxu0
  %1351 = vmatprep.mubr.bf16.mxu0 0
  %1352 = vmatmul.mubr.bf16.gmra.mxu0 %v1254
  %v1353 = vpop.f32.mrf.mxu0
  %v1354 = vadd.f32 %v1261, %v1353
  %v1355 = vpop.f32.mrf.mxu0
  %v1356 = vpop.f32.mrf.mxu0
  %v1357 = vadd.f32 %v1261, %v1356
  %v1358 = vpop.f32.mrf.mxu0
  %1359 = vdwg.mxu0
  %v1360 = vmul.f32 %v1346, %v1346
  %v1361 = vmul.f32 %v1349, %v1349
  %v1362 = vmul.f32 %v1354, %v1354
  %v1363 = vmul.f32 %v1357, %v1357
  %v1364 = vmul.f32 %v1346, %v1360
  %v1365 = vmul.f32 %v1349, %v1361
  %v1366 = vmul.f32 %v1354, %v1362
  %v1367 = vmul.f32 %v1357, %v1363
  %v1368 = vmul.f32 %v1364, 0.044715
  %v1369 = vmul.f32 %v1365, 0.044715
  %v1370 = vmul.f32 %v1366, 0.044715
  %v1371 = vmul.f32 %v1367, 0.044715
  %v1372 = vadd.f32 %v1346, %v1368
  %v1373 = vadd.f32 %v1349, %v1369
  %v1374 = vadd.f32 %v1354, %v1370
  %v1375 = vadd.f32 %v1357, %v1371
  %v1376 = vmul.f32 %v1372, 0.7978846
  %v1377 = vmul.f32 %v1373, 0.7978846
  %v1378 = vmul.f32 %v1374, 0.7978846
  %v1379 = vmul.f32 %v1375, 0.7978846
  %v1380 = vtanh.pop %v1376
  %v1381 = vtanh.pop %v1377
  %v1382 = vtanh.pop %v1378
  %v1383 = vtanh.pop %v1379
  %v1384 = vadd.f32 %v1380, 1.0
  %v1385 = vadd.f32 %v1381, 1.0
  %v1386 = vadd.f32 %v1382, 1.0
  %v1387 = vadd.f32 %v1383, 1.0
  %v1388 = vmul.f32 %v1384, 0.5
  %v1389 = vmul.f32 %v1385, 0.5
  %v1390 = vmul.f32 %v1386, 0.5
  %v1391 = vmul.f32 %v1387, 0.5
  %v1392 = vmul.f32 %v1346, %v1388
  %v1393 = vmul.f32 %v1349, %v1389
  %v1394 = vmul.f32 %v1354, %v1390
  %v1395 = vmul.f32 %v1357, %v1391
  %v1396 = vld [vmem:[%s2 + $0x20] sm:$0xf]
  %v1397 = vld [vmem:[%s2 + $0x68] sm:$0xf]
  %v1398 = vld [vmem:[%s2 + $0xb0] sm:$0xf]
  %v1399 = vld [vmem:[%s2 + $0xf8] sm:$0xf]
  %v1400 = vld [vmem:[%s2 + $0x140] sm:$0xf]
  %v1401 = vld [vmem:[%s2 + $0x188] sm:$0xf]
  %v1402 = vld [vmem:[%s2 + $0x1d0] sm:$0xf]
  %v1403 = vld [vmem:[%s2 + $0x218] sm:$0xf]
  %v1404 = vld [vmem:[%s2 + $0x260] sm:$0xf]
  %v1405 = vld [vmem:[%s2 + $0x2a8] sm:$0xf]
  %v1406 = vld [vmem:[%s2 + $0x2f0] sm:$0xf]
  %v1407 = vld [vmem:[%s2 + $0x338] sm:$0xf]
  %v1408 = vld [vmem:[%s2 + $0x380] sm:$0xf]
  %v1409 = vld [vmem:[%s2 + $0x3c8] sm:$0xf]
  %v1410 = vld [vmem:[%s2 + $0x410] sm:$0xf]
  %v1411 = vld [vmem:[%s2 + $0x458] sm:$0xf]
  %v1412 = vpack.c.bf16 %v1393, %v1392
  %v1413 = vpack.c.bf16 %v1395, %v1394
  %v1430 = vunpack.c.l.b16 %v1396
  %v1431 = vunpack.c.l.b16 %v1397
  %v1432 = vunpack.c.l.b16 %v1398
  %v1433 = vunpack.c.l.b16 %v1399
  %v1434 = vunpack.c.l.b16 %v1400
  %v1435 = vunpack.c.l.b16 %v1401
  %v1436 = vunpack.c.l.b16 %v1402
  %v1437 = vunpack.c.l.b16 %v1403
  %v1438 = vunpack.c.l.b16 %v1404
  %v1439 = vunpack.c.l.b16 %v1405
  %v1440 = vunpack.c.l.b16 %v1406
  %v1441 = vunpack.c.l.b16 %v1407
  %v1442 = vunpack.c.l.b16 %v1408
  %v1443 = vunpack.c.l.b16 %v1409
  %v1444 = vunpack.c.l.b16 %v1410
  %v1445 = vunpack.c.l.b16 %v1411
  %v1446 = vpack.c.b16 %v1431, %v1430
  %v1447 = vpack.c.b16 %v1433, %v1432
  %v1448 = vpack.c.b16 %v1435, %v1434
  %v1449 = vpack.c.b16 %v1437, %v1436
  %v1450 = vpack.c.b16 %v1439, %v1438
  %v1451 = vpack.c.b16 %v1441, %v1440
  %v1452 = vpack.c.b16 %v1443, %v1442
  %v1453 = vpack.c.b16 %v1445, %v1444
  %1462 = vmatprep.subr.bf16.mxu0 0
  %1463 = vmatpush1.bf16.msra.mxu0 %v1453
  %1464 = vmatprep.subr.bf16.mxu0 0
  %1465 = vmatpush1.bf16.msra.mxu0 %v1452
  %1466 = vmatprep.subr.bf16.mxu0 0
  %1467 = vmatpush1.bf16.msra.mxu0 %v1451
  %1468 = vmatprep.subr.bf16.mxu0 0
  %1469 = vmatpush1.bf16.msra.mxu0 %v1450
  %1470 = vmatprep.subr.bf16.mxu0 0
  %1471 = vmatpush1.bf16.msra.mxu0 %v1449
  %1472 = vmatprep.subr.bf16.mxu0 0
  %1473 = vmatpush1.bf16.msra.mxu0 %v1448
  %1474 = vmatprep.subr.bf16.mxu0 0
  %1475 = vmatpush1.bf16.msra.mxu0 %v1447
  %1476 = vmatprep.subr.bf16.mxu0 0
  %1477 = vmatpush1.bf16.msra.mxu0 %v1446
  %1478 = vmatprep.subr.bf16.mxu0 0
  %1479 = vmatpush2.bf16.msra.mxu0 0
  %1480 = vmatprep.subr.bf16.mxu0 0
  %1481 = vmatpush2.bf16.msra.mxu0 0
  %1482 = vmatprep.subr.bf16.mxu0 0
  %1483 = vmatpush2.bf16.msra.mxu0 0
  %1484 = vmatprep.subr.bf16.mxu0 0
  %1485 = vmatpush2.bf16.msra.mxu0 0
  %1486 = vmatprep.subr.bf16.mxu0 0
  %1487 = vmatpush2.bf16.msra.mxu0 0
  %1488 = vmatprep.subr.bf16.mxu0 0
  %1489 = vmatpush2.bf16.msra.mxu0 0
  %1490 = vmatprep.subr.bf16.mxu0 0
  %1491 = vmatpush2.bf16.msra.mxu0 0
  %1492 = vmatprep.subr.bf16.mxu0 0
  %1493 = vmatpush2.bf16.msra.mxu0 0
  %1494 = vmatprep.mubr.bf16.mxu0 0
  %1495 = vmatmul.mubr.bf16.gmra.mxu0 %v1412
  %v1496 = vpop.f32.mrf.mxu0
  %v1497 = vadd.f32 0.0, %v1496
  %v1498 = vpop.f32.mrf.mxu0
  %v1499 = vpop.f32.mrf.mxu0
  %v1500 = vadd.f32 0.0, %v1499
  %v1501 = vpop.f32.mrf.mxu0
  %1502 = vmatprep.mubr.bf16.mxu0 0
  %1503 = vmatmul.mubr.bf16.gmra.mxu0 %v1413
  %v1504 = vpop.f32.mrf.mxu0
  %v1505 = vadd.f32 0.0, %v1504
  %v1506 = vpop.f32.mrf.mxu0
  %v1507 = vpop.f32.mrf.mxu0
  %v1508 = vadd.f32 0.0, %v1507
  %v1509 = vpop.f32.mrf.mxu0
  %1510 = vdwg.mxu0
  %v1511 = vadd.f32 %v1161, %v1497
  %v1512 = vadd.f32 %v1162, %v1500
  %v1513 = vadd.f32 %v1163, %v1505
  %v1514 = vadd.f32 %v1164, %v1508
  %s1515 = scalar_lea.vmem %s3, 13
  %v1516 = vld [vmem:[%s1515] sm:$0x1]
  %v1518 = vlaneseq
  %v1519 = vshrl.u32 %v1518, 7
  %v1520 = vsub.s32 0, %v1519
  %v1521 = vrot.slane %v1516, %v1520
  %v1523 = vadd.f32 %v1511, %v1521
  %v1524 = vadd.f32 %v1512, %v1521
  %v1525 = vadd.f32 %v1513, %v1521
  %v1526 = vadd.f32 %v1514, %v1521
  %s1527 = scalar_lea.vmem %s3, 14
  %v1528 = vld [vmem:[%s1527] sm:$0x1]
  %s1529 = scalar_lea.vmem %s3, 15
  %v1530 = vld [vmem:[%s1529] sm:$0x1]
  %1531 = vadd.xlane.f32.xlu0 %v1523
  %v1532 = vpop.xlane.xlu0 %1531
  %1533 = vadd.xlane.f32.xlu0 %v1524
  %v1534 = vpop.xlane.xlu0 %1533
  %1535 = vadd.xlane.f32.xlu0 %v1525
  %v1536 = vpop.xlane.xlu0 %1535
  %1537 = vadd.xlane.f32.xlu0 %v1526
  %v1538 = vpop.xlane.xlu0 %1537
  %v1539 = vmul.f32 %v1532, 0.03125
  %v1540 = vmul.f32 %v1534, 0.03125
  %v1541 = vmul.f32 %v1536, 0.03125
  %v1542 = vmul.f32 %v1538, 0.03125
  %v1543 = vsub.f32 %v1523, %v1539
  %v1544 = vsub.f32 %v1524, %v1540
  %v1545 = vsub.f32 %v1525, %v1541
  %v1546 = vsub.f32 %v1526, %v1542
  %v1547 = vmul.f32 %v1543, %v495
  %v1548 = vmul.f32 %v1544, %v495
  %v1549 = vmul.f32 %v1545, %v495
  %v1550 = vmul.f32 %v1546, %v495
  %v1551 = vmul.f32 %v1547, %v1547
  %v1552 = vmul.f32 %v1548, %v1548
  %v1553 = vmul.f32 %v1549, %v1549
  %v1554 = vmul.f32 %v1550, %v1550
  %1555 = vadd.xlane.f32.xlu0 %v1551
  %v1556 = vpop.xlane.xlu0 %1555
  %1557 = vadd.xlane.f32.xlu0 %v1552
  %v1558 = vpop.xlane.xlu0 %1557
  %1559 = vadd.xlane.f32.xlu0 %v1553
  %v1560 = vpop.xlane.xlu0 %1559
  %1561 = vadd.xlane.f32.xlu0 %v1554
  %v1562 = vpop.xlane.xlu0 %1561
  %v1563 = vmul.f32 %v1556, 0.03125
  %v1564 = vmul.f32 %v1558, 0.03125
  %v1565 = vmul.f32 %v1560, 0.03125
  %v1566 = vmul.f32 %v1562, 0.03125
  %v1567 = vadd.f32 %v1563, 1e-05
  %v1568 = vadd.f32 %v1564, 1e-05
  %v1569 = vadd.f32 %v1565, 1e-05
  %v1570 = vadd.f32 %v1566, 1e-05
  %v1571 = vrsqrt.pop %v1567
  %v1572 = vrsqrt.pop %v1568
  %v1573 = vrsqrt.pop %v1569
  %v1574 = vrsqrt.pop %v1570
  %v1575 = vmul.f32 %v1547, %v1571
  %v1576 = vmul.f32 %v1548, %v1572
  %v1577 = vmul.f32 %v1549, %v1573
  %v1578 = vmul.f32 %v1550, %v1574
  %v1580 = vlaneseq
  %v1581 = vshrl.u32 %v1580, 7
  %v1582 = vsub.s32 0, %v1581
  %v1583 = vrot.slane %v1528, %v1582
  %v1585 = vmul.f32 %v1575, %v1583
  %v1586 = vmul.f32 %v1576, %v1583
  %v1587 = vmul.f32 %v1577, %v1583
  %v1588 = vmul.f32 %v1578, %v1583
  %v1590 = vlaneseq
  %v1591 = vshrl.u32 %v1590, 7
  %v1592 = vsub.s32 0, %v1591
  %v1593 = vrot.slane %v1530, %v1592
  %v1595 = vadd.f32 %v1585, %v1593
  %v1596 = vadd.f32 %v1586, %v1593
  %v1597 = vadd.f32 %v1587, %v1593
  %v1598 = vadd.f32 %v1588, %v1593
  %v1599 = vld [vmem:[%s2 + $0x24] sm:$0xff]
  %v1600 = vld [vmem:[%s2 + $0x2c] sm:$0xf]
  %v1601 = vld [vmem:[%s2 + $0x6c] sm:$0xff]
  %v1602 = vld [vmem:[%s2 + $0x74] sm:$0xf]
  %v1603 = vld [vmem:[%s2 + $0xb4] sm:$0xff]
  %v1604 = vld [vmem:[%s2 + $0xbc] sm:$0xf]
  %v1605 = vld [vmem:[%s2 + $0xfc] sm:$0xff]
  %v1606 = vld [vmem:[%s2 + $0x104] sm:$0xf]
  %v1607 = vld [vmem:[%s2 + $0x144] sm:$0xff]
  %v1608 = vld [vmem:[%s2 + $0x14c] sm:$0xf]
  %v1609 = vld [vmem:[%s2 + $0x18c] sm:$0xff]
  %v1610 = vld [vmem:[%s2 + $0x194] sm:$0xf]
  %v1611 = vld [vmem:[%s2 + $0x1d4] sm:$0xff]
  %v1612 = vld [vmem:[%s2 + $0x1dc] sm:$0xf]
  %v1613 = vld [vmem:[%s2 + $0x21c] sm:$0xff]
  %v1614 = vld [vmem:[%s2 + $0x224] sm:$0xf]
  %v1615 = vld [vmem:[%s2 + $0x264] sm:$0xff]
  %v1616 = vld [vmem:[%s2 + $0x26c] sm:$0xf]
  %v1617 = vld [vmem:[%s2 + $0x2ac] sm:$0xff]
  %v1618 = vld [vmem:[%s2 + $0x2b4] sm:$0xf]
  %v1619 = vld [vmem:[%s2 + $0x2f4] sm:$0xff]
  %v1620 = vld [vmem:[%s2 + $0x2fc] sm:$0xf]
  %v1621 = vld [vmem:[%s2 + $0x33c] sm:$0xff]
  %v1622 = vld [vmem:[%s2 + $0x344] sm:$0xf]
  %v1623 = vld [vmem:[%s2 + $0x384] sm:$0xff]
  %v1624 = vld [vmem:[%s2 + $0x38c] sm:$0xf]
  %v1625 = vld [vmem:[%s2 + $0x3cc] sm:$0xff]
  %v1626 = vld [vmem:[%s2 + $0x3d4] sm:$0xf]
  %v1627 = vld [vmem:[%s2 + $0x414] sm:$0xff]
  %v1628 = vld [vmem:[%s2 + $0x41c] sm:$0xf]
  %v1629 = vld [vmem:[%s2 + $0x45c] sm:$0xff]
  %v1630 = vld [vmem:[%s2 + $0x464] sm:$0xf]
  %v1631 = vpack.c.bf16 %v1596, %v1595
  %v1632 = vpack.c.bf16 %v1598, %v1597
  %v1665 = vunpack.c.l.b16 %v1599
  %v1666 = vunpack.c.h.b16 %v1599
  %v1667 = vunpack.c.l.b16 %v1600
  %v1668 = vunpack.c.l.b16 %v1601
  %v1669 = vunpack.c.h.b16 %v1601
  %v1670 = vunpack.c.l.b16 %v1602
  %v1671 = vunpack.c.l.b16 %v1603
  %v1672 = vunpack.c.h.b16 %v1603
  %v1673 = vunpack.c.l.b16 %v1604
  %v1674 = vunpack.c.l.b16 %v1605
  %v1675 = vunpack.c.h.b16 %v1605
  %v1676 = vunpack.c.l.b16 %v1606
  %v1677 = vunpack.c.l.b16 %v1607
  %v1678 = vunpack.c.h.b16 %v1607
  %v1679 = vunpack.c.l.b16 %v1608
  %v1680 = vunpack.c.l.b16 %v1609
  %v1681 = vunpack.c.h.b16 %v1609
  %v1682 = vunpack.c.l.b16 %v1610
  %v1683 = vunpack.c.l.b16 %v1611
  %v1684 = vunpack.c.h.b16 %v1611
  %v1685 = vunpack.c.l.b16 %v1612
  %v1686 = vunpack.c.l.b16 %v1613
  %v1687 = vunpack.c.h.b16 %v1613
  %v1688 = vunpack.c.l.b16 %v1614
  %v1689 = vunpack.c.l.b16 %v1615
  %v1690 = vunpack.c.h.b16 %v1615
  %v1691 = vunpack.c.l.b16 %v1616
  %v1692 = vunpack.c.l.b16 %v1617
  %v1693 = vunpack.c.h.b16 %v1617
  %v1694 = vunpack.c.l.b16 %v1618
  %v1695 = vunpack.c.l.b16 %v1619
  %v1696 = vunpack.c.h.b16 %v1619
  %v1697 = vunpack.c.l.b16 %v1620
  %v1698 = vunpack.c.l.b16 %v1621
  %v1699 = vunpack.c.h.b16 %v1621
  %v1700 = vunpack.c.l.b16 %v1622
  %v1701 = vunpack.c.l.b16 %v1623
  %v1702 = vunpack.c.h.b16 %v1623
  %v1703 = vunpack.c.l.b16 %v1624
  %v1704 = vunpack.c.l.b16 %v1625
  %v1705 = vunpack.c.h.b16 %v1625
  %v1706 = vunpack.c.l.b16 %v1626
  %v1707 = vunpack.c.l.b16 %v1627
  %v1708 = vunpack.c.h.b16 %v1627
  %v1709 = vunpack.c.l.b16 %v1628
  %v1710 = vunpack.c.l.b16 %v1629
  %v1711 = vunpack.c.h.b16 %v1629
  %v1712 = vunpack.c.l.b16 %v1630
  %v1713 = vpack.c.b16 %v1668, %v1665
  %v1714 = vpack.c.b16 %v1669, %v1666
  %v1715 = vpack.c.b16 %v1670, %v1667
  %v1716 = vpack.c.b16 %v1674, %v1671
  %v1717 = vpack.c.b16 %v1675, %v1672
  %v1718 = vpack.c.b16 %v1676, %v1673
  %v1719 = vpack.c.b16 %v1680, %v1677
  %v1720 = vpack.c.b16 %v1681, %v1678
  %v1721 = vpack.c.b16 %v1682, %v1679
  %v1722 = vpack.c.b16 %v1686, %v1683
  %v1723 = vpack.c.b16 %v1687, %v1684
  %v1724 = vpack.c.b16 %v1688, %v1685
  %v1725 = vpack.c.b16 %v1692, %v1689
  %v1726 = vpack.c.b16 %v1693, %v1690
  %v1727 = vpack.c.b16 %v1694, %v1691
  %v1728 = vpack.c.b16 %v1698, %v1695
  %v1729 = vpack.c.b16 %v1699, %v1696
  %v1730 = vpack.c.b16 %v1700, %v1697
  %v1731 = vpack.c.b16 %v1704, %v1701
  %v1732 = vpack.c.b16 %v1705, %v1702
  %v1733 = vpack.c.b16 %v1706, %v1703
  %v1734 = vpack.c.b16 %v1710, %v1707
  %v1735 = vpack.c.b16 %v1711, %v1708
  %v1736 = vpack.c.b16 %v1712, %v1709
  %1761 = vmatprep.subr.bf16.mxu0 %v1735
  %1762 = vmatpush1.bf16.msra.mxu0 %v1734
  %1763 = vmatprep.subr.bf16.mxu0 %v1732
  %1764 = vmatpush1.bf16.msra.mxu0 %v1731
  %1765 = vmatprep.subr.bf16.mxu0 %v1729
  %1766 = vmatpush1.bf16.msra.mxu0 %v1728
  %1767 = vmatprep.subr.bf16.mxu0 %v1726
  %1768 = vmatpush1.bf16.msra.mxu0 %v1725
  %1769 = vmatprep.subr.bf16.mxu0 %v1723
  %1770 = vmatpush1.bf16.msra.mxu0 %v1722
  %1771 = vmatprep.subr.bf16.mxu0 %v1720
  %1772 = vmatpush1.bf16.msra.mxu0 %v1719
  %1773 = vmatprep.subr.bf16.mxu0 %v1717
  %1774 = vmatpush1.bf16.msra.mxu0 %v1716
  %1775 = vmatprep.subr.bf16.mxu0 %v1714
  %1776 = vmatpush1.bf16.msra.mxu0 %v1713
  %1777 = vmatprep.subr.bf16.mxu0 0
  %1778 = vmatpush2.bf16.msra.mxu0 0
  %1779 = vmatprep.subr.bf16.mxu0 0
  %1780 = vmatpush2.bf16.msra.mxu0 0
  %1781 = vmatprep.subr.bf16.mxu0 0
  %1782 = vmatpush2.bf16.msra.mxu0 0
  %1783 = vmatprep.subr.bf16.mxu0 0
  %1784 = vmatpush2.bf16.msra.mxu0 0
  %1785 = vmatprep.subr.bf16.mxu0 0
  %1786 = vmatpush2.bf16.msra.mxu0 0
  %1787 = vmatprep.subr.bf16.mxu0 0
  %1788 = vmatpush2.bf16.msra.mxu0 0
  %1789 = vmatprep.subr.bf16.mxu0 0
  %1790 = vmatpush2.bf16.msra.mxu0 0
  %1791 = vmatprep.subr.bf16.mxu0 0
  %1792 = vmatpush2.bf16.msra.mxu0 0
  %1793 = vmatprep.mubr.bf16.mxu0 0
  %1794 = vmatmul.mubr.bf16.gmra.mxu0 %v1631
  %v1795 = vpop.f32.mrf.mxu0
  %v1796 = vadd.f32 0.0, %v1795
  %v1797 = vpop.f32.mrf.mxu0
  %v1798 = vadd.f32 0.0, %v1797
  %v1799 = vpop.f32.mrf.mxu0
  %v1800 = vadd.f32 0.0, %v1799
  %v1801 = vpop.f32.mrf.mxu0
  %v1802 = vadd.f32 0.0, %v1801
  %1803 = vmatprep.mubr.bf16.mxu0 0
  %1804 = vmatmul.mubr.bf16.gmra.mxu0 %v1632
  %v1805 = vpop.f32.mrf.mxu0
  %v1806 = vadd.f32 0.0, %v1805
  %v1807 = vpop.f32.mrf.mxu0
  %v1808 = vadd.f32 0.0, %v1807
  %v1809 = vpop.f32.mrf.mxu0
  %v1810 = vadd.f32 0.0, %v1809
  %v1811 = vpop.f32.mrf.mxu0
  %v1812 = vadd.f32 0.0, %v1811
  %1813 = vdwg.mxu0
  %1814 = vmatprep.subr.bf16.mxu0 0
  %1815 = vmatpush1.bf16.msra.mxu0 %v1736
  %1816 = vmatprep.subr.bf16.mxu0 0
  %1817 = vmatpush1.bf16.msra.mxu0 %v1733
  %1818 = vmatprep.subr.bf16.mxu0 0
  %1819 = vmatpush1.bf16.msra.mxu0 %v1730
  %1820 = vmatprep.subr.bf16.mxu0 0
  %1821 = vmatpush1.bf16.msra.mxu0 %v1727
  %1822 = vmatprep.subr.bf16.mxu0 0
  %1823 = vmatpush1.bf16.msra.mxu0 %v1724
  %1824 = vmatprep.subr.bf16.mxu0 0
  %1825 = vmatpush1.bf16.msra.mxu0 %v1721
  %1826 = vmatprep.subr.bf16.mxu0 0
  %1827 = vmatpush1.bf16.msra.mxu0 %v1718
  %1828 = vmatprep.subr.bf16.mxu0 0
  %1829 = vmatpush1.bf16.msra.mxu0 %v1715
  %1830 = vmatprep.subr.bf16.mxu0 0
  %1831 = vmatpush2.bf16.msra.mxu0 0
  %1832 = vmatprep.subr.bf16.mxu0 0
  %1833 = vmatpush2.bf16.msra.mxu0 0
  %1834 = vmatprep.subr.bf16.mxu0 0
  %1835 = vmatpush2.bf16.msra.mxu0 0
  %1836 = vmatprep.subr.bf16.mxu0 0
  %1837 = vmatpush2.bf16.msra.mxu0 0
  %1838 = vmatprep.subr.bf16.mxu0 0
  %1839 = vmatpush2.bf16.msra.mxu0 0
  %1840 = vmatprep.subr.bf16.mxu0 0
  %1841 = vmatpush2.bf16.msra.mxu0 0
  %1842 = vmatprep.subr.bf16.mxu0 0
  %1843 = vmatpush2.bf16.msra.mxu0 0
  %1844 = vmatprep.subr.bf16.mxu0 0
  %1845 = vmatpush2.bf16.msra.mxu0 0
  %1846 = vmatprep.mubr.bf16.mxu0 0
  %1847 = vmatmul.mubr.bf16.gmra.mxu0 %v1631
  %v1848 = vpop.f32.mrf.mxu0
  %v1849 = vadd.f32 0.0, %v1848
  %v1850 = vpop.f32.mrf.mxu0
  %v1851 = vpop.f32.mrf.mxu0
  %v1852 = vadd.f32 0.0, %v1851
  %v1853 = vpop.f32.mrf.mxu0
  %1854 = vmatprep.mubr.bf16.mxu0 0
  %1855 = vmatmul.mubr.bf16.gmra.mxu0 %v1632
  %v1856 = vpop.f32.mrf.mxu0
  %v1857 = vadd.f32 0.0, %v1856
  %v1858 = vpop.f32.mrf.mxu0
  %v1859 = vpop.f32.mrf.mxu0
  %v1860 = vadd.f32 0.0, %v1859
  %v1861 = vpop.f32.mrf.mxu0
  %1862 = vdwg.mxu0
  %s1863 = scalar_lea.vmem %s3, 16
  %v1864 = vld [vmem:[%s1863] sm:$0x1]
  %v1866 = vlaneseq
  %v1867 = vshrl.u32 %v1866, 7
  %v1868 = vsub.s32 0, %v1867
  %v1869 = vrot.slane %v1864, %v1868
  %v1871 = vadd.f32 %v1796, %v1869
  %v1872 = vadd.f32 %v1800, %v1869
  %v1873 = vadd.f32 %v1806, %v1869
  %v1874 = vadd.f32 %v1810, %v1869
  %s1875 = scalar_lea.vmem %s3, 17
  %v1876 = vld [vmem:[%s1875] sm:$0x1]
  %v1878 = vlaneseq
  %v1879 = vshrl.u32 %v1878, 7
  %v1880 = vsub.s32 0, %v1879
  %v1881 = vrot.slane %v1876, %v1880
  %v1883 = vadd.f32 %v1798, %v1881
  %v1884 = vadd.f32 %v1802, %v1881
  %v1885 = vadd.f32 %v1808, %v1881
  %v1886 = vadd.f32 %v1812, %v1881
  %s1887 = scalar_lea.vmem %s3, 18
  %v1888 = vld [vmem:[%s1887] sm:$0x1]
  %v1890 = vlaneseq
  %v1891 = vshrl.u32 %v1890, 7
  %v1892 = vsub.s32 0, %v1891
  %v1893 = vrot.slane %v1888, %v1892
  %v1895 = vadd.f32 %v1849, %v1893
  %v1896 = vadd.f32 %v1852, %v1893
  %v1897 = vadd.f32 %v1857, %v1893
  %v1898 = vadd.f32 %v1860, %v1893
  %v1899 = vmul.f32 %v1871, %v1883
  %v1900 = vmul.f32 %v1872, %v1884
  %v1901 = vmul.f32 %v1871, %v1885
  %v1902 = vmul.f32 %v1872, %v1886
  %v1903 = vmul.f32 %v1873, %v1883
  %v1904 = vmul.f32 %v1874, %v1884
  %v1905 = vmul.f32 %v1873, %v1885
  %v1906 = vmul.f32 %v1874, %v1886
  %v1907 = vpack.c.bf16 %v1900, %v1899
  %v1908 = vpack.c.bf16 %v1902, %v1901
  %v1909 = vpack.c.bf16 %v1904, %v1903
  %v1910 = vpack.c.bf16 %v1906, %v1905
  %1911 = vmatprep.subr.bf16.mxu0 0
  %1912 = vmatpush1.bf16.msra.mxu0 %v900
  %1913 = vmatprep.subr.bf16.mxu0 0
  %1914 = vmatpush1.bf16.msra.mxu0 %v899
  %1915 = vmatprep.subr.bf16.mxu0 0
  %1916 = vmatpush1.bf16.msra.mxu0 %v898
  %1917 = vmatprep.subr.bf16.mxu0 0
  %1918 = vmatpush1.bf16.msra.mxu0 %v897
  %1919 = vmatprep.subr.bf16.mxu0 0
  %1920 = vmatpush1.bf16.msra.mxu0 %v896
  %1921 = vmatprep.subr.bf16.mxu0 0
  %1922 = vmatpush1.bf16.msra.mxu0 %v895
  %1923 = vmatprep.subr.bf16.mxu0 0
  %1924 = vmatpush1.bf16.msra.mxu0 %v894
  %1925 = vmatprep.subr.bf16.mxu0 0
  %1926 = vmatpush1.bf16.msra.mxu0 %v893
  %1927 = vmatprep.subr.bf16.mxu0 0
  %1928 = vmatpush2.bf16.msra.mxu0 0
  %1929 = vmatprep.subr.bf16.mxu0 0
  %1930 = vmatpush2.bf16.msra.mxu0 0
  %1931 = vmatprep.subr.bf16.mxu0 0
  %1932 = vmatpush2.bf16.msra.mxu0 0
  %1933 = vmatprep.subr.bf16.mxu0 0
  %1934 = vmatpush2.bf16.msra.mxu0 0
  %1935 = vmatprep.subr.bf16.mxu0 0
  %1936 = vmatpush2.bf16.msra.mxu0 0
  %1937 = vmatprep.subr.bf16.mxu0 0
  %1938 = vmatpush2.bf16.msra.mxu0 0
  %1939 = vmatprep.subr.bf16.mxu0 0
  %1940 = vmatpush2.bf16.msra.mxu0 0
  %1941 = vmatprep.subr.bf16.mxu0 0
  %1942 = vmatpush2.bf16.msra.mxu0 0
  %1943 = vmatprep.mubr.bf16.mxu0 0
  %1944 = vmatmul.mubr.bf16.gmra.mxu0 %v1907
  %v1945 = vpop.f32.mrf.mxu0
  %v1946 = vadd.f32 0.0, %v1945
  %v1947 = vpop.f32.mrf.mxu0
  %v1948 = vpop.f32.mrf.mxu0
  %v1949 = vadd.f32 0.0, %v1948
  %v1950 = vpop.f32.mrf.mxu0
  %1951 = vmatprep.mubr.bf16.mxu0 0
  %1952 = vmatmul.mubr.bf16.gmra.mxu0 %v1908
  %v1953 = vpop.f32.mrf.mxu0
  %v1954 = vadd.f32 0.0, %v1953
  %v1955 = vpop.f32.mrf.mxu0
  %v1956 = vpop.f32.mrf.mxu0
  %v1957 = vadd.f32 0.0, %v1956
  %v1958 = vpop.f32.mrf.mxu0
  %1959 = vmatprep.mubr.bf16.mxu0 0
  %1960 = vmatmul.mubr.bf16.gmra.mxu0 %v1909
  %v1961 = vpop.f32.mrf.mxu0
  %v1962 = vadd.f32 0.0, %v1961
  %v1963 = vpop.f32.mrf.mxu0
  %v1964 = vpop.f32.mrf.mxu0
  %v1965 = vadd.f32 0.0, %v1964
  %v1966 = vpop.f32.mrf.mxu0
  %1967 = vmatprep.mubr.bf16.mxu0 0
  %1968 = vmatmul.mubr.bf16.gmra.mxu0 %v1910
  %v1969 = vpop.f32.mrf.mxu0
  %v1970 = vadd.f32 0.0, %v1969
  %v1971 = vpop.f32.mrf.mxu0
  %v1972 = vpop.f32.mrf.mxu0
  %v1973 = vadd.f32 0.0, %v1972
  %v1974 = vpop.f32.mrf.mxu0
  %1975 = vdwg.mxu0
  %v1976 = vmul.f32 %v1946, 0.25
  %v1977 = vmul.f32 %v1949, 0.25
  %v1978 = vmul.f32 %v1954, 0.25
  %v1979 = vmul.f32 %v1957, 0.25
  %v1980 = vmul.f32 %v1962, 0.25
  %v1981 = vmul.f32 %v1965, 0.25
  %v1982 = vmul.f32 %v1970, 0.25
  %v1983 = vmul.f32 %v1973, 0.25
  %v1984 = vmax.f32 %v1976, %v1978
  %v1985 = vmax.f32 %v1977, %v1979
  %v1986 = vsub.f32 %v1976, %v1984
  %v1987 = vsub.f32 %v1977, %v1985
  %v1988 = vmul.f32 %v1986, 1.442695
  %v1989 = vpow.pop %v1988
  %v1990 = vmul.f32 %v1987, 1.442695
  %v1991 = vpow.pop %v1990
  %v1992 = vsub.f32 %v1978, %v1984
  %v1993 = vsub.f32 %v1979, %v1985
  %v1994 = vmul.f32 %v1992, 1.442695
  %v1995 = vpow.pop %v1994
  %v1996 = vmul.f32 %v1993, 1.442695
  %v1997 = vpow.pop %v1996
  %v1998 = vmul.f32 %v1989, %v1895
  %v1999 = vmul.f32 %v1991, %v1896
  %v2000 = vmul.f32 %v1995, %v1897
  %v2001 = vmul.f32 %v1997, %v1898
  %v2002 = vadd.f32 %v1998, %v2000
  %v2003 = vadd.f32 %v1999, %v2001
  %v2004 = vadd.f32 %v1989, %v1995
  %v2005 = vadd.f32 %v1991, %v1997
  %v2006 = vrcp.pop %v2004
  %v2007 = vmul.f32 %v2002, %v2006
  %v2008 = vrcp.pop %v2005
  %v2009 = vmul.f32 %v2003, %v2008
  %v2010 = vmax.f32 %v1980, %v1982
  %v2011 = vmax.f32 %v1981, %v1983
  %v2012 = vsub.f32 %v1980, %v2010
  %v2013 = vsub.f32 %v1981, %v2011
  %v2014 = vmul.f32 %v2012, 1.442695
  %v2015 = vpow.pop %v2014
  %v2016 = vmul.f32 %v2013, 1.442695
  %v2017 = vpow.pop %v2016
  %v2018 = vsub.f32 %v1982, %v2010
  %v2019 = vsub.f32 %v1983, %v2011
  %v2020 = vmul.f32 %v2018, 1.442695
  %v2021 = vpow.pop %v2020
  %v2022 = vmul.f32 %v2019, 1.442695
  %v2023 = vpow.pop %v2022
  %v2024 = vmul.f32 %v2015, %v1895
  %v2025 = vmul.f32 %v2017, %v1896
  %v2026 = vmul.f32 %v2021, %v1897
  %v2027 = vmul.f32 %v2023, %v1898
  %v2028 = vadd.f32 %v2024, %v2026
  %v2029 = vadd.f32 %v2025, %v2027
  %v2030 = vadd.f32 %v2015, %v2021
  %v2031 = vadd.f32 %v2017, %v2023
  %v2032 = vrcp.pop %v2030
  %v2033 = vmul.f32 %v2028, %v2032
  %v2034 = vrcp.pop %v2031
  %v2035 = vmul.f32 %v2029, %v2034
  %v2036 = vld [vmem:[%s2 + $0x30] sm:$0xf]
  %v2037 = vld [vmem:[%s2 + $0x78] sm:$0xf]
  %v2038 = vld [vmem:[%s2 + $0xc0] sm:$0xf]
  %v2039 = vld [vmem:[%s2 + $0x108] sm:$0xf]
  %v2040 = vld [vmem:[%s2 + $0x150] sm:$0xf]
  %v2041 = vld [vmem:[%s2 + $0x198] sm:$0xf]
  %v2042 = vld [vmem:[%s2 + $0x1e0] sm:$0xf]
  %v2043 = vld [vmem:[%s2 + $0x228] sm:$0xf]
  %v2044 = vld [vmem:[%s2 + $0x270] sm:$0xf]
  %v2045 = vld [vmem:[%s2 + $0x2b8] sm:$0xf]
  %v2046 = vld [vmem:[%s2 + $0x300] sm:$0xf]
  %v2047 = vld [vmem:[%s2 + $0x348] sm:$0xf]
  %v2048 = vld [vmem:[%s2 + $0x390] sm:$0xf]
  %v2049 = vld [vmem:[%s2 + $0x3d8] sm:$0xf]
  %v2050 = vld [vmem:[%s2 + $0x420] sm:$0xf]
  %v2051 = vld [vmem:[%s2 + $0x468] sm:$0xf]
  %v2052 = vpack.c.bf16 %v2009, %v2007
  %v2053 = vpack.c.bf16 %v2035, %v2033
  %v2070 = vunpack.c.l.b16 %v2036
  %v2071 = vunpack.c.l.b16 %v2037
  %v2072 = vunpack.c.l.b16 %v2038
  %v2073 = vunpack.c.l.b16 %v2039
  %v2074 = vunpack.c.l.b16 %v2040
  %v2075 = vunpack.c.l.b16 %v2041
  %v2076 = vunpack.c.l.b16 %v2042
  %v2077 = vunpack.c.l.b16 %v2043
  %v2078 = vunpack.c.l.b16 %v2044
  %v2079 = vunpack.c.l.b16 %v2045
  %v2080 = vunpack.c.l.b16 %v2046
  %v2081 = vunpack.c.l.b16 %v2047
  %v2082 = vunpack.c.l.b16 %v2048
  %v2083 = vunpack.c.l.b16 %v2049
  %v2084 = vunpack.c.l.b16 %v2050
  %v2085 = vunpack.c.l.b16 %v2051
  %v2086 = vpack.c.b16 %v2071, %v2070
  %v2087 = vpack.c.b16 %v2073, %v2072
  %v2088 = vpack.c.b16 %v2075, %v2074
  %v2089 = vpack.c.b16 %v2077, %v2076
  %v2090 = vpack.c.b16 %v2079, %v2078
  %v2091 = vpack.c.b16 %v2081, %v2080
  %v2092 = vpack.c.b16 %v2083, %v2082
  %v2093 = vpack.c.b16 %v2085, %v2084
  %2102 = vmatprep.subr.bf16.mxu0 0
  %2103 = vmatpush1.bf16.msra.mxu0 %v2093
  %2104 = vmatprep.subr.bf16.mxu0 0
  %2105 = vmatpush1.bf16.msra.mxu0 %v2092
  %2106 = vmatprep.subr.bf16.mxu0 0
  %2107 = vmatpush1.bf16.msra.mxu0 %v2091
  %2108 = vmatprep.subr.bf16.mxu0 0
  %2109 = vmatpush1.bf16.msra.mxu0 %v2090
  %2110 = vmatprep.subr.bf16.mxu0 0
  %2111 = vmatpush1.bf16.msra.mxu0 %v2089
  %2112 = vmatprep.subr.bf16.mxu0 0
  %2113 = vmatpush1.bf16.msra.mxu0 %v2088
  %2114 = vmatprep.subr.bf16.mxu0 0
  %2115 = vmatpush1.bf16.msra.mxu0 %v2087
  %2116 = vmatprep.subr.bf16.mxu0 0
  %2117 = vmatpush1.bf16.msra.mxu0 %v2086
  %2118 = vmatprep.subr.bf16.mxu0 0
  %2119 = vmatpush2.bf16.msra.mxu0 0
  %2120 = vmatprep.subr.bf16.mxu0 0
  %2121 = vmatpush2.bf16.msra.mxu0 0
  %2122 = vmatprep.subr.bf16.mxu0 0
  %2123 = vmatpush2.bf16.msra.mxu0 0
  %2124 = vmatprep.subr.bf16.mxu0 0
  %2125 = vmatpush2.bf16.msra.mxu0 0
  %2126 = vmatprep.subr.bf16.mxu0 0
  %2127 = vmatpush2.bf16.msra.mxu0 0
  %2128 = vmatprep.subr.bf16.mxu0 0
  %2129 = vmatpush2.bf16.msra.mxu0 0
  %2130 = vmatprep.subr.bf16.mxu0 0
  %2131 = vmatpush2.bf16.msra.mxu0 0
  %2132 = vmatprep.subr.bf16.mxu0 0
  %2133 = vmatpush2.bf16.msra.mxu0 0
  %2134 = vmatprep.mubr.bf16.mxu0 0
  %2135 = vmatmul.mubr.bf16.gmra.mxu0 %v2052
  %v2136 = vpop.f32.mrf.mxu0
  %v2137 = vadd.f32 0.0, %v2136
  %v2138 = vpop.f32.mrf.mxu0
  %v2139 = vpop.f32.mrf.mxu0
  %v2140 = vadd.f32 0.0, %v2139
  %v2141 = vpop.f32.mrf.mxu0
  %2142 = vmatprep.mubr.bf16.mxu0 0
  %2143 = vmatmul.mubr.bf16.gmra.mxu0 %v2053
  %v2144 = vpop.f32.mrf.mxu0
  %v2145 = vadd.f32 0.0, %v2144
  %v2146 = vpop.f32.mrf.mxu0
  %v2147 = vpop.f32.mrf.mxu0
  %v2148 = vadd.f32 0.0, %v2147
  %v2149 = vpop.f32.mrf.mxu0
  %2150 = vdwg.mxu0
  %v2151 = vadd.f32 %v1523, %v2137
  %v2152 = vadd.f32 %v1524, %v2140
  %v2153 = vadd.f32 %v1525, %v2145
  %v2154 = vadd.f32 %v1526, %v2148
  %s2155 = scalar_lea.vmem %s3, 19
  %v2156 = vld [vmem:[%s2155] sm:$0x1]
  %v2158 = vlaneseq
  %v2159 = vshrl.u32 %v2158, 7
  %v2160 = vsub.s32 0, %v2159
  %v2161 = vrot.slane %v2156, %v2160
  %v2163 = vadd.f32 %v2151, %v2161
  %v2164 = vadd.f32 %v2152, %v2161
  %v2165 = vadd.f32 %v2153, %v2161
  %v2166 = vadd.f32 %v2154, %v2161
  %s2167 = scalar_lea.vmem %s3, 20
  %v2168 = vld [vmem:[%s2167] sm:$0x1]
  %s2169 = scalar_lea.vmem %s3, 21
  %v2170 = vld [vmem:[%s2169] sm:$0x1]
  %2171 = vadd.xlane.f32.xlu0 %v2163
  %v2172 = vpop.xlane.xlu0 %2171
  %2173 = vadd.xlane.f32.xlu0 %v2164
  %v2174 = vpop.xlane.xlu0 %2173
  %2175 = vadd.xlane.f32.xlu0 %v2165
  %v2176 = vpop.xlane.xlu0 %2175
  %2177 = vadd.xlane.f32.xlu0 %v2166
  %v2178 = vpop.xlane.xlu0 %2177
  %v2179 = vmul.f32 %v2172, 0.03125
  %v2180 = vmul.f32 %v2174, 0.03125
  %v2181 = vmul.f32 %v2176, 0.03125
  %v2182 = vmul.f32 %v2178, 0.03125
  %v2183 = vsub.f32 %v2163, %v2179
  %v2184 = vsub.f32 %v2164, %v2180
  %v2185 = vsub.f32 %v2165, %v2181
  %v2186 = vsub.f32 %v2166, %v2182
  %v2187 = vmul.f32 %v2183, %v495
  %v2188 = vmul.f32 %v2184, %v495
  %v2189 = vmul.f32 %v2185, %v495
  %v2190 = vmul.f32 %v2186, %v495
  %v2191 = vmul.f32 %v2187, %v2187
  %v2192 = vmul.f32 %v2188, %v2188
  %v2193 = vmul.f32 %v2189, %v2189
  %v2194 = vmul.f32 %v2190, %v2190
  %2195 = vadd.xlane.f32.xlu0 %v2191
  %v2196 = vpop.xlane.xlu0 %2195
  %2197 = vadd.xlane.f32.xlu0 %v2192
  %v2198 = vpop.xlane.xlu0 %2197
  %2199 = vadd.xlane.f32.xlu0 %v2193
  %v2200 = vpop.xlane.xlu0 %2199
  %2201 = vadd.xlane.f32.xlu0 %v2194
  %v2202 = vpop.xlane.xlu0 %2201
  %v2203 = vmul.f32 %v2196, 0.03125
  %v2204 = vmul.f32 %v2198, 0.03125
  %v2205 = vmul.f32 %v2200, 0.03125
  %v2206 = vmul.f32 %v2202, 0.03125
  %v2207 = vadd.f32 %v2203, 1e-05
  %v2208 = vadd.f32 %v2204, 1e-05
  %v2209 = vadd.f32 %v2205, 1e-05
  %v2210 = vadd.f32 %v2206, 1e-05
  %v2211 = vrsqrt.pop %v2207
  %v2212 = vrsqrt.pop %v2208
  %v2213 = vrsqrt.pop %v2209
  %v2214 = vrsqrt.pop %v2210
  %v2215 = vmul.f32 %v2187, %v2211
  %v2216 = vmul.f32 %v2188, %v2212
  %v2217 = vmul.f32 %v2189, %v2213
  %v2218 = vmul.f32 %v2190, %v2214
  %v2220 = vlaneseq
  %v2221 = vshrl.u32 %v2220, 7
  %v2222 = vsub.s32 0, %v2221
  %v2223 = vrot.slane %v2168, %v2222
  %v2225 = vmul.f32 %v2215, %v2223
  %v2226 = vmul.f32 %v2216, %v2223
  %v2227 = vmul.f32 %v2217, %v2223
  %v2228 = vmul.f32 %v2218, %v2223
  %v2230 = vlaneseq
  %v2231 = vshrl.u32 %v2230, 7
  %v2232 = vsub.s32 0, %v2231
  %v2233 = vrot.slane %v2170, %v2232
  %v2235 = vadd.f32 %v2225, %v2233
  %v2236 = vadd.f32 %v2226, %v2233
  %v2237 = vadd.f32 %v2227, %v2233
  %v2238 = vadd.f32 %v2228, %v2233
  %v2239 = vld [vmem:[%s2 + $0x34] sm:$0xf]
  %v2240 = vld [vmem:[%s2 + $0x7c] sm:$0xf]
  %v2241 = vld [vmem:[%s2 + $0xc4] sm:$0xf]
  %v2242 = vld [vmem:[%s2 + $0x10c] sm:$0xf]
  %v2243 = vld [vmem:[%s2 + $0x154] sm:$0xf]
  %v2244 = vld [vmem:[%s2 + $0x19c] sm:$0xf]
  %v2245 = vld [vmem:[%s2 + $0x1e4] sm:$0xf]
  %v2246 = vld [vmem:[%s2 + $0x22c] sm:$0xf]
  %v2247 = vld [vmem:[%s2 + $0x274] sm:$0xf]
  %v2248 = vld [vmem:[%s2 + $0x2bc] sm:$0xf]
  %v2249 = vld [vmem:[%s2 + $0x304] sm:$0xf]
  %v2250 = vld [vmem:[%s2 + $0x34c] sm:$0xf]
  %v2251 = vld [vmem:[%s2 + $0x394] sm:$0xf]
  %v2252 = vld [vmem:[%s2 + $0x3dc] sm:$0xf]
  %v2253 = vld [vmem:[%s2 + $0x424] sm:$0xf]
  %v2254 = vld [vmem:[%s2 + $0x46c] sm:$0xf]
  %v2255 = vpack.c.bf16 %v2236, %v2235
  %v2256 = vpack.c.bf16 %v2238, %v2237
  %s2257 = scalar_lea.vmem %s3, 22
  %v2258 = vld [vmem:[%s2257] sm:$0x1]
  %v2260 = vlaneseq
  %v2261 = vshrl.u32 %v2260, 7
  %v2262 = vsub.s32 0, %v2261
  %v2263 = vrot.slane %v2258, %v2262
  %v2281 = vunpack.c.l.b16 %v2239
  %v2282 = vunpack.c.l.b16 %v2240
  %v2283 = vunpack.c.l.b16 %v2241
  %v2284 = vunpack.c.l.b16 %v2242
  %v2285 = vunpack.c.l.b16 %v2243
  %v2286 = vunpack.c.l.b16 %v2244
  %v2287 = vunpack.c.l.b16 %v2245
  %v2288 = vunpack.c.l.b16 %v2246
  %v2289 = vunpack.c.l.b16 %v2247
  %v2290 = vunpack.c.l.b16 %v2248
  %v2291 = vunpack.c.l.b16 %v2249
  %v2292 = vunpack.c.l.b16 %v2250
  %v2293 = vunpack.c.l.b16 %v2251
  %v2294 = vunpack.c.l.b16 %v2252
  %v2295 = vunpack.c.l.b16 %v2253
  %v2296 = vunpack.c.l.b16 %v2254
  %v2297 = vpack.c.b16 %v2282, %v2281
  %v2298 = vpack.c.b16 %v2284, %v2283
  %v2299 = vpack.c.b16 %v2286, %v2285
  %v2300 = vpack.c.b16 %v2288, %v2287
  %v2301 = vpack.c.b16 %v2290, %v2289
  %v2302 = vpack.c.b16 %v2292, %v2291
  %v2303 = vpack.c.b16 %v2294, %v2293
  %v2304 = vpack.c.b16 %v2296, %v2295
  %2313 = vmatprep.subr.bf16.mxu0 0
  %2314 = vmatpush1.bf16.msra.mxu0 %v2304
  %2315 = vmatprep.subr.bf16.mxu0 0
  %2316 = vmatpush1.bf16.msra.mxu0 %v2303
  %2317 = vmatprep.subr.bf16.mxu0 0
  %2318 = vmatpush1.bf16.msra.mxu0 %v2302
  %2319 = vmatprep.subr.bf16.mxu0 0
  %2320 = vmatpush1.bf16.msra.mxu0 %v2301
  %2321 = vmatprep.subr.bf16.mxu0 0
  %2322 = vmatpush1.bf16.msra.mxu0 %v2300
  %2323 = vmatprep.subr.bf16.mxu0 0
  %2324 = vmatpush1.bf16.msra.mxu0 %v2299
  %2325 = vmatprep.subr.bf16.mxu0 0
  %2326 = vmatpush1.bf16.msra.mxu0 %v2298
  %2327 = vmatprep.subr.bf16.mxu0 0
  %2328 = vmatpush1.bf16.msra.mxu0 %v2297
  %2329 = vmatprep.subr.bf16.mxu0 0
  %2330 = vmatpush2.bf16.msra.mxu0 0
  %2331 = vmatprep.subr.bf16.mxu0 0
  %2332 = vmatpush2.bf16.msra.mxu0 0
  %2333 = vmatprep.subr.bf16.mxu0 0
  %2334 = vmatpush2.bf16.msra.mxu0 0
  %2335 = vmatprep.subr.bf16.mxu0 0
  %2336 = vmatpush2.bf16.msra.mxu0 0
  %2337 = vmatprep.subr.bf16.mxu0 0
  %2338 = vmatpush2.bf16.msra.mxu0 0
  %2339 = vmatprep.subr.bf16.mxu0 0
  %2340 = vmatpush2.bf16.msra.mxu0 0
  %2341 = vmatprep.subr.bf16.mxu0 0
  %2342 = vmatpush2.bf16.msra.mxu0 0
  %2343 = vmatprep.subr.bf16.mxu0 0
  %2344 = vmatpush2.bf16.msra.mxu0 0
  %2345 = vmatprep.mubr.bf16.mxu0 0
  %2346 = vmatmul.mubr.bf16.gmra.mxu0 %v2255
  %v2347 = vpop.f32.mrf.mxu0
  %v2348 = vadd.f32 %v2263, %v2347
  %v2349 = vpop.f32.mrf.mxu0
  %v2350 = vpop.f32.mrf.mxu0
  %v2351 = vadd.f32 %v2263, %v2350
  %v2352 = vpop.f32.mrf.mxu0
  %2353 = vmatprep.mubr.bf16.mxu0 0
  %2354 = vmatmul.mubr.bf16.gmra.mxu0 %v2256
  %v2355 = vpop.f32.mrf.mxu0
  %v2356 = vadd.f32 %v2263, %v2355
  %v2357 = vpop.f32.mrf.mxu0
  %v2358 = vpop.f32.mrf.mxu0
  %v2359 = vadd.f32 %v2263, %v2358
  %v2360 = vpop.f32.mrf.mxu0
  %2361 = vdwg.mxu0
  %v2362 = vmul.f32 %v2348, %v2348
  %v2363 = vmul.f32 %v2351, %v2351
  %v2364 = vmul.f32 %v2356, %v2356
  %v2365 = vmul.f32 %v2359, %v2359
  %v2366 = vmul.f32 %v2348, %v2362
  %v2367 = vmul.f32 %v2351, %v2363
  %v2368 = vmul.f32 %v2356, %v2364
  %v2369 = vmul.f32 %v2359, %v2365
  %v2370 = vmul.f32 %v2366, 0.044715
  %v2371 = vmul.f32 %v2367, 0.044715
  %v2372 = vmul.f32 %v2368, 0.044715
  %v2373 = vmul.f32 %v2369, 0.044715
  %v2374 = vadd.f32 %v2348, %v2370
  %v2375 = vadd.f32 %v2351, %v2371
  %v2376 = vadd.f32 %v2356, %v2372
  %v2377 = vadd.f32 %v2359, %v2373
  %v2378 = vmul.f32 %v2374, 0.7978846
  %v2379 = vmul.f32 %v2375, 0.7978846
  %v2380 = vmul.f32 %v2376, 0.7978846
  %v2381 = vmul.f32 %v2377, 0.7978846
  %v2382 = vtanh.pop %v2378
  %v2383 = vtanh.pop %v2379
  %v2384 = vtanh.pop %v2380
  %v2385 = vtanh.pop %v2381
  %v2386 = vadd.f32 %v2382, 1.0
  %v2387 = vadd.f32 %v2383, 1.0
  %v2388 = vadd.f32 %v2384, 1.0
  %v2389 = vadd.f32 %v2385, 1.0
  %v2390 = vmul.f32 %v2386, 0.5
  %v2391 = vmul.f32 %v2387, 0.5
  %v2392 = vmul.f32 %v2388, 0.5
  %v2393 = vmul.f32 %v2389, 0.5
  %v2394 = vmul.f32 %v2348, %v2390
  %v2395 = vmul.f32 %v2351, %v2391
  %v2396 = vmul.f32 %v2356, %v2392
  %v2397 = vmul.f32 %v2359, %v2393
  %v2398 = vld [vmem:[%s2 + $0x38] sm:$0xf]
  %v2399 = vld [vmem:[%s2 + $0x80] sm:$0xf]
  %v2400 = vld [vmem:[%s2 + $0xc8] sm:$0xf]
  %v2401 = vld [vmem:[%s2 + $0x110] sm:$0xf]
  %v2402 = vld [vmem:[%s2 + $0x158] sm:$0xf]
  %v2403 = vld [vmem:[%s2 + $0x1a0] sm:$0xf]
  %v2404 = vld [vmem:[%s2 + $0x1e8] sm:$0xf]
  %v2405 = vld [vmem:[%s2 + $0x230] sm:$0xf]
  %v2406 = vld [vmem:[%s2 + $0x278] sm:$0xf]
  %v2407 = vld [vmem:[%s2 + $0x2c0] sm:$0xf]
  %v2408 = vld [vmem:[%s2 + $0x308] sm:$0xf]
  %v2409 = vld [vmem:[%s2 + $0x350] sm:$0xf]
  %v2410 = vld [vmem:[%s2 + $0x398] sm:$0xf]
  %v2411 = vld [vmem:[%s2 + $0x3e0] sm:$0xf]
  %v2412 = vld [vmem:[%s2 + $0x428] sm:$0xf]
  %v2413 = vld [vmem:[%s2 + $0x470] sm:$0xf]
  %v2414 = vpack.c.bf16 %v2395, %v2394
  %v2415 = vpack.c.bf16 %v2397, %v2396
  %v2432 = vunpack.c.l.b16 %v2398
  %v2433 = vunpack.c.l.b16 %v2399
  %v2434 = vunpack.c.l.b16 %v2400
  %v2435 = vunpack.c.l.b16 %v2401
  %v2436 = vunpack.c.l.b16 %v2402
  %v2437 = vunpack.c.l.b16 %v2403
  %v2438 = vunpack.c.l.b16 %v2404
  %v2439 = vunpack.c.l.b16 %v2405
  %v2440 = vunpack.c.l.b16 %v2406
  %v2441 = vunpack.c.l.b16 %v2407
  %v2442 = vunpack.c.l.b16 %v2408
  %v2443 = vunpack.c.l.b16 %v2409
  %v2444 = vunpack.c.l.b16 %v2410
  %v2445 = vunpack.c.l.b16 %v2411
  %v2446 = vunpack.c.l.b16 %v2412
  %v2447 = vunpack.c.l.b16 %v2413
  %v2448 = vpack.c.b16 %v2433, %v2432
  %v2449 = vpack.c.b16 %v2435, %v2434
  %v2450 = vpack.c.b16 %v2437, %v2436
  %v2451 = vpack.c.b16 %v2439, %v2438
  %v2452 = vpack.c.b16 %v2441, %v2440
  %v2453 = vpack.c.b16 %v2443, %v2442
  %v2454 = vpack.c.b16 %v2445, %v2444
  %v2455 = vpack.c.b16 %v2447, %v2446
  %2464 = vmatprep.subr.bf16.mxu0 0
  %2465 = vmatpush1.bf16.msra.mxu0 %v2455
  %2466 = vmatprep.subr.bf16.mxu0 0
  %2467 = vmatpush1.bf16.msra.mxu0 %v2454
  %2468 = vmatprep.subr.bf16.mxu0 0
  %2469 = vmatpush1.bf16.msra.mxu0 %v2453
  %2470 = vmatprep.subr.bf16.mxu0 0
  %2471 = vmatpush1.bf16.msra.mxu0 %v2452
  %2472 = vmatprep.subr.bf16.mxu0 0
  %2473 = vmatpush1.bf16.msra.mxu0 %v2451
  %2474 = vmatprep.subr.bf16.mxu0 0
  %2475 = vmatpush1.bf16.msra.mxu0 %v2450
  %2476 = vmatprep.subr.bf16.mxu0 0
  %2477 = vmatpush1.bf16.msra.mxu0 %v2449
  %2478 = vmatprep.subr.bf16.mxu0 0
  %2479 = vmatpush1.bf16.msra.mxu0 %v2448
  %2480 = vmatprep.subr.bf16.mxu0 0
  %2481 = vmatpush2.bf16.msra.mxu0 0
  %2482 = vmatprep.subr.bf16.mxu0 0
  %2483 = vmatpush2.bf16.msra.mxu0 0
  %2484 = vmatprep.subr.bf16.mxu0 0
  %2485 = vmatpush2.bf16.msra.mxu0 0
  %2486 = vmatprep.subr.bf16.mxu0 0
  %2487 = vmatpush2.bf16.msra.mxu0 0
  %2488 = vmatprep.subr.bf16.mxu0 0
  %2489 = vmatpush2.bf16.msra.mxu0 0
  %2490 = vmatprep.subr.bf16.mxu0 0
  %2491 = vmatpush2.bf16.msra.mxu0 0
  %2492 = vmatprep.subr.bf16.mxu0 0
  %2493 = vmatpush2.bf16.msra.mxu0 0
  %2494 = vmatprep.subr.bf16.mxu0 0
  %2495 = vmatpush2.bf16.msra.mxu0 0
  %2496 = vmatprep.mubr.bf16.mxu0 0
  %2497 = vmatmul.mubr.bf16.gmra.mxu0 %v2414
  %v2498 = vpop.f32.mrf.mxu0
  %v2499 = vadd.f32 0.0, %v2498
  %v2500 = vpop.f32.mrf.mxu0
  %v2501 = vpop.f32.mrf.mxu0
  %v2502 = vadd.f32 0.0, %v2501
  %v2503 = vpop.f32.mrf.mxu0
  %2504 = vmatprep.mubr.bf16.mxu0 0
  %2505 = vmatmul.mubr.bf16.gmra.mxu0 %v2415
  %v2506 = vpop.f32.mrf.mxu0
  %v2507 = vpop.f32.mrf.mxu0
  %v2508 = vpop.f32.mrf.mxu0
  %v2509 = vpop.f32.mrf.mxu0
  %2510 = vdwg.mxu0
  %v2511 = vadd.f32 %v2163, %v2499
  %v2512 = vadd.f32 %v2164, %v2502
  %s2513 = scalar_lea.vmem %s3, 23
  %v2514 = vld [vmem:[%s2513] sm:$0x1]
  %v2516 = vlaneseq
  %v2517 = vshrl.u32 %v2516, 7
  %v2518 = vsub.s32 0, %v2517
  %v2519 = vrot.slane %v2514, %v2518
  %v2521 = vadd.f32 %v2511, %v2519
  %v2522 = vadd.f32 %v2512, %v2519
  %v2523 = vld [vmem:[%s2 + $0x3c] sm:$0xf]
  %v2524 = vld [vmem:[%s2 + $0x84] sm:$0xf]
  %v2525 = vld [vmem:[%s2 + $0xcc] sm:$0xf]
  %v2526 = vld [vmem:[%s2 + $0x114] sm:$0xf]
  %v2527 = vld [vmem:[%s2 + $0x15c] sm:$0xf]
  %v2528 = vld [vmem:[%s2 + $0x1a4] sm:$0xf]
  %v2529 = vld [vmem:[%s2 + $0x1ec] sm:$0xf]
  %v2530 = vld [vmem:[%s2 + $0x234] sm:$0xf]
  %v2531 = vld [vmem:[%s2 + $0x27c] sm:$0xf]
  %v2532 = vld [vmem:[%s2 + $0x2c4] sm:$0xf]
  %v2533 = vld [vmem:[%s2 + $0x30c] sm:$0xf]
  %v2534 = vld [vmem:[%s2 + $0x354] sm:$0xf]
  %v2535 = vld [vmem:[%s2 + $0x39c] sm:$0xf]
  %v2536 = vld [vmem:[%s2 + $0x3e4] sm:$0xf]
  %v2537 = vld [vmem:[%s2 + $0x42c] sm:$0xf]
  %v2538 = vld [vmem:[%s2 + $0x474] sm:$0xf]
  %v2539 = vpack.c.bf16 %v2522, %v2521
  %s2540 = scalar_lea.vmem %s3, 24
  %v2541 = vld [vmem:[%s2540] sm:$0x1]
  %v2543 = vlaneseq
  %v2544 = vshrl.u32 %v2543, 7
  %v2545 = vsub.s32 0, %v2544
  %v2546 = vrot.slane %v2541, %v2545
  %v2564 = vunpack.c.l.b16 %v2523
  %v2565 = vunpack.c.l.b16 %v2524
  %v2566 = vunpack.c.l.b16 %v2525
  %v2567 = vunpack.c.l.b16 %v2526
  %v2568 = vunpack.c.l.b16 %v2527
  %v2569 = vunpack.c.l.b16 %v2528
  %v2570 = vunpack.c.l.b16 %v2529
  %v2571 = vunpack.c.l.b16 %v2530
  %v2572 = vunpack.c.l.b16 %v2531
  %v2573 = vunpack.c.l.b16 %v2532
  %v2574 = vunpack.c.l.b16 %v2533
  %v2575 = vunpack.c.l.b16 %v2534
  %v2576 = vunpack.c.l.b16 %v2535
  %v2577 = vunpack.c.l.b16 %v2536
  %v2578 = vunpack.c.l.b16 %v2537
  %v2579 = vunpack.c.l.b16 %v2538
  %v2580 = vpack.c.b16 %v2565, %v2564
  %v2581 = vpack.c.b16 %v2567, %v2566
  %v2582 = vpack.c.b16 %v2569, %v2568
  %v2583 = vpack.c.b16 %v2571, %v2570
  %v2584 = vpack.c.b16 %v2573, %v2572
  %v2585 = vpack.c.b16 %v2575, %v2574
  %v2586 = vpack.c.b16 %v2577, %v2576
  %v2587 = vpack.c.b16 %v2579, %v2578
  %2596 = vmatprep.subr.bf16.mxu0 0
  %2597 = vmatpush1.bf16.msra.mxu0 %v2587
  %2598 = vmatprep.subr.bf16.mxu0 0
  %2599 = vmatpush1.bf16.msra.mxu0 %v2586
  %2600 = vmatprep.subr.bf16.mxu0 0
  %2601 = vmatpush1.bf16.msra.mxu0 %v2585
  %2602 = vmatprep.subr.bf16.mxu0 0
  %2603 = vmatpush1.bf16.msra.mxu0 %v2584
  %2604 = vmatprep.subr.bf16.mxu0 0
  %2605 = vmatpush1.bf16.msra.mxu0 %v2583
  %2606 = vmatprep.subr.bf16.mxu0 0
  %2607 = vmatpush1.bf16.msra.mxu0 %v2582
  %2608 = vmatprep.subr.bf16.mxu0 0
  %2609 = vmatpush1.bf16.msra.mxu0 %v2581
  %2610 = vmatprep.subr.bf16.mxu0 0
  %2611 = vmatpush1.bf16.msra.mxu0 %v2580
  %2612 = vmatprep.subr.bf16.mxu0 0
  %2613 = vmatpush2.bf16.msra.mxu0 0
  %2614 = vmatprep.subr.bf16.mxu0 0
  %2615 = vmatpush2.bf16.msra.mxu0 0
  %2616 = vmatprep.subr.bf16.mxu0 0
  %2617 = vmatpush2.bf16.msra.mxu0 0
  %2618 = vmatprep.subr.bf16.mxu0 0
  %2619 = vmatpush2.bf16.msra.mxu0 0
  %2620 = vmatprep.subr.bf16.mxu0 0
  %2621 = vmatpush2.bf16.msra.mxu0 0
  %2622 = vmatprep.subr.bf16.mxu0 0
  %2623 = vmatpush2.bf16.msra.mxu0 0
  %2624 = vmatprep.subr.bf16.mxu0 0
  %2625 = vmatpush2.bf16.msra.mxu0 0
  %2626 = vmatprep.subr.bf16.mxu0 0
  %2627 = vmatpush2.bf16.msra.mxu0 0
  %2628 = vmatprep.mubr.bf16.mxu0 0
  %2629 = vmatmul.mubr.bf16.gmra.mxu0 %v2539
  %v2630 = vpop.f32.mrf.mxu0
  %v2631 = vadd.f32 %v2546, %v2630
  %v2632 = vpop.f32.mrf.mxu0
  %v2633 = vpop.f32.mrf.mxu0
  %v2634 = vadd.f32 %v2546, %v2633
  %v2635 = vpop.f32.mrf.mxu0
  %2636 = vdwg.mxu0
  %v2637 = vmax.f32 %v2631, 0.0
  %v2638 = vmax.f32 %v2634, 0.0
  %v2639 = vld [vmem:[%s2 + $0x40] sm:$0xf]
  %v2640 = vld [vmem:[%s2 + $0x88] sm:$0xf]
  %v2641 = vld [vmem:[%s2 + $0xd0] sm:$0xf]
  %v2642 = vld [vmem:[%s2 + $0x118] sm:$0xf]
  %v2643 = vld [vmem:[%s2 + $0x160] sm:$0xf]
  %v2644 = vld [vmem:[%s2 + $0x1a8] sm:$0xf]
  %v2645 = vld [vmem:[%s2 + $0x1f0] sm:$0xf]
  %v2646 = vld [vmem:[%s2 + $0x238] sm:$0xf]
  %v2647 = vld [vmem:[%s2 + $0x280] sm:$0xf]
  %v2648 = vld [vmem:[%s2 + $0x2c8] sm:$0xf]
  %v2649 = vld [vmem:[%s2 + $0x310] sm:$0xf]
  %v2650 = vld [vmem:[%s2 + $0x358] sm:$0xf]
  %v2651 = vld [vmem:[%s2 + $0x3a0] sm:$0xf]
  %v2652 = vld [vmem:[%s2 + $0x3e8] sm:$0xf]
  %v2653 = vld [vmem:[%s2 + $0x430] sm:$0xf]
  %v2654 = vld [vmem:[%s2 + $0x478] sm:$0xf]
  %v2655 = vpack.c.bf16 %v2638, %v2637
  %s2656 = scalar_lea.vmem %s3, 25
  %v2657 = vld [vmem:[%s2656] sm:$0x1]
  %v2659 = vlaneseq
  %v2660 = vshrl.u32 %v2659, 7
  %v2661 = vsub.s32 0, %v2660
  %v2662 = vrot.slane %v2657, %v2661
  %v2680 = vunpack.c.l.b16 %v2639
  %v2681 = vunpack.c.l.b16 %v2640
  %v2682 = vunpack.c.l.b16 %v2641
  %v2683 = vunpack.c.l.b16 %v2642
  %v2684 = vunpack.c.l.b16 %v2643
  %v2685 = vunpack.c.l.b16 %v2644
  %v2686 = vunpack.c.l.b16 %v2645
  %v2687 = vunpack.c.l.b16 %v2646
  %v2688 = vunpack.c.l.b16 %v2647
  %v2689 = vunpack.c.l.b16 %v2648
  %v2690 = vunpack.c.l.b16 %v2649
  %v2691 = vunpack.c.l.b16 %v2650
  %v2692 = vunpack.c.l.b16 %v2651
  %v2693 = vunpack.c.l.b16 %v2652
  %v2694 = vunpack.c.l.b16 %v2653
  %v2695 = vunpack.c.l.b16 %v2654
  %v2696 = vpack.c.b16 %v2681, %v2680
  %v2697 = vpack.c.b16 %v2683, %v2682
  %v2698 = vpack.c.b16 %v2685, %v2684
  %v2699 = vpack.c.b16 %v2687, %v2686
  %v2700 = vpack.c.b16 %v2689, %v2688
  %v2701 = vpack.c.b16 %v2691, %v2690
  %v2702 = vpack.c.b16 %v2693, %v2692
  %v2703 = vpack.c.b16 %v2695, %v2694
  %2712 = vmatprep.subr.bf16.mxu0 0
  %2713 = vmatpush1.bf16.msra.mxu0 %v2703
  %2714 = vmatprep.subr.bf16.mxu0 0
  %2715 = vmatpush1.bf16.msra.mxu0 %v2702
  %2716 = vmatprep.subr.bf16.mxu0 0
  %2717 = vmatpush1.bf16.msra.mxu0 %v2701
  %2718 = vmatprep.subr.bf16.mxu0 0
  %2719 = vmatpush1.bf16.msra.mxu0 %v2700
  %2720 = vmatprep.subr.bf16.mxu0 0
  %2721 = vmatpush1.bf16.msra.mxu0 %v2699
  %2722 = vmatprep.subr.bf16.mxu0 0
  %2723 = vmatpush1.bf16.msra.mxu0 %v2698
  %2724 = vmatprep.subr.bf16.mxu0 0
  %2725 = vmatpush1.bf16.msra.mxu0 %v2697
  %2726 = vmatprep.subr.bf16.mxu0 0
  %2727 = vmatpush1.bf16.msra.mxu0 %v2696
  %2728 = vmatprep.subr.bf16.mxu0 0
  %2729 = vmatpush2.bf16.msra.mxu0 0
  %2730 = vmatprep.subr.bf16.mxu0 0
  %2731 = vmatpush2.bf16.msra.mxu0 0
  %2732 = vmatprep.subr.bf16.mxu0 0
  %2733 = vmatpush2.bf16.msra.mxu0 0
  %2734 = vmatprep.subr.bf16.mxu0 0
  %2735 = vmatpush2.bf16.msra.mxu0 0
  %2736 = vmatprep.subr.bf16.mxu0 0
  %2737 = vmatpush2.bf16.msra.mxu0 0
  %2738 = vmatprep.subr.bf16.mxu0 0
  %2739 = vmatpush2.bf16.msra.mxu0 0
  %2740 = vmatprep.subr.bf16.mxu0 0
  %2741 = vmatpush2.bf16.msra.mxu0 0
  %2742 = vmatprep.subr.bf16.mxu0 0
  %2743 = vmatpush2.bf16.msra.mxu0 0
  %2744 = vmatprep.mubr.bf16.mxu0 0
  %2745 = vmatmul.mubr.bf16.gmra.mxu0 %v2655
  %v2746 = vpop.f32.mrf.mxu0
  %v2747 = vadd.f32 %v2662, %v2746
  %v2748 = vpop.f32.mrf.mxu0
  %v2749 = vpop.f32.mrf.mxu0
  %v2750 = vadd.f32 %v2662, %v2749
  %v2751 = vpop.f32.mrf.mxu0
  %2752 = vdwg.mxu0
  %2753 = vst [vmem:[%s4] sm:$0xff] %v2747
  %2754 = vst [vmem:[%s4 + $0x8] sm:$0xff] %v2750
  // Predicated region
  $region18: #{sgnn_forward.1} parent=0 // pred_check
    _
  $region19: #{sgnn_forward.1} parent=0 // pred_check_branch
    %2756 = sbr.rel (0) target = $region21
  $region20: #{sgnn_forward.1} parent=0 // pred_region
    _
  $region21: #{sgnn_forward.1} parent=0 // pred_fallthru
    _
  // Predicated region
  $region22: #{sgnn_forward.1} parent=0 // pred_check
    _
  $region23: #{sgnn_forward.1} parent=0 // pred_check_branch
    %2758 = sbr.rel (0) target = $region25
  $region24: #{sgnn_forward.1} parent=0 // pred_region
    _
  $region25: #{sgnn_forward.1} parent=0 // pred_fallthru
    _

</llo_original>
